<compile_context>
chip_gen: v5e
topology: v5e:2x2
jax: 0.10.0
libtpu: 0.0.40
codegen_flags: <defaults>
</compile_context>

<pallas_src>
import functools
import math

import jax
import jax.numpy as jnp
from jax.experimental import pallas as pl
from jax.experimental.pallas import tpu as pltpu


# ----------------------------------------------------------------------------
# Small helpers
# ----------------------------------------------------------------------------
def _round_up(x, m):
    return ((x + m - 1) // m) * m


def _vmem_limit_bytes():
    """Per-generation scoped-VMEM limit (3/4 of physical, capped), else default."""
    try:
        cap = int(pltpu.get_tpu_info().vmem_capacity_bytes)
        return min((cap * 3) // 4, 100 * 1024 * 1024)
    except Exception:
        return None


# ----------------------------------------------------------------------------
# Fused bottleneck kernel (one grid step == one batch image)
# ----------------------------------------------------------------------------
def _bottleneck_kernel(*refs, H, W, OH, OW, d, stride, has_down):
    if has_down:
        (x_ref, w1_ref, b1_ref, w2_ref, b2_ref, w3_ref, b3_ref,
         wd_ref, bd_ref, o_ref, out1p_ref) = refs
    else:
        (x_ref, w1_ref, b1_ref, w2_ref, b2_ref, w3_ref, b3_ref,
         o_ref, out1p_ref) = refs

    cin_p = x_ref.shape[-1]
    p_p = w1_ref.shape[-1]
    c4_p = w3_ref.shape[-1]

    # ---- conv1 (1x1) + folded BN + ReLU ------------------------------------
    x_flat = x_ref[...].reshape(H * W, cin_p)                    # bf16
    out1 = jnp.dot(x_flat, w1_ref[...], preferred_element_type=jnp.float32)
    out1 = jnp.maximum(out1 + b1_ref[...], 0.0).astype(jnp.bfloat16)

    # Spatially zero-padded conv2 input kept entirely in VMEM (no HBM pad pass).
    # Re-zeroed every step: with a "parallel" grid each core owns its own scratch.
    out1p_ref[...] = jnp.zeros_like(out1p_ref)
    out1p_ref[d:d + H, d:d + W, :] = out1.reshape(H, W, p_p)

    # ---- conv2 (3x3, dilation=d, padding=d, stride) + folded BN + ReLU ------
    # 9 taps = shifted in-VMEM windows; single local f32 accumulator, one store.
    acc2 = None
    for t in range(9):
        i, j = divmod(t, 3)
        if stride == 1:
            a = out1p_ref[i * d:i * d + OH, j * d:j * d + OW, :]
        else:
            a = out1p_ref[pl.ds(i * d, OH, stride=stride),
                          pl.ds(j * d, OW, stride=stride), :]
        a = a.reshape(OH * OW, p_p)
        dt = jnp.dot(a, w2_ref[t], preferred_element_type=jnp.float32)
        acc2 = dt if acc2 is None else acc2 + dt
    out2 = jnp.maximum(acc2 + b2_ref[...], 0.0).astype(jnp.bfloat16)

    # ---- conv3 (1x1) + folded BN --------------------------------------------
    y = jnp.dot(out2, w3_ref[...], preferred_element_type=jnp.float32) + b3_ref[...]

    # ---- residual branch + fused add + ReLU epilogue -------------------------
    if has_down:
        if stride == 1:
            xs = x_flat
        else:
            xs = x_ref[0, pl.ds(0, OH, stride=stride),
                       pl.ds(0, OW, stride=stride), :].reshape(OH * OW, cin_p)
        res = jnp.dot(xs, wd_ref[...], preferred_element_type=jnp.float32) + bd_ref[...]
    else:
        # identity path: stride == 1 and cin_p == c4_p by module construction
        res = x_flat.astype(jnp.float32)

    o = jnp.maximum(y + res, 0.0)
    o_ref[...] = o.reshape(1, OH, OW, c4_p).astype(o_ref.dtype)


# ----------------------------------------------------------------------------
# pallas_call builder (cached per distinct shape/config)
# ----------------------------------------------------------------------------
@functools.lru_cache(maxsize=None)
def _build_bottleneck(n, h, w, cin_p, p_p, c4_p, d, stride, has_down):
    oh = (h - 1) // stride + 1
    ow = (w - 1) // stride + 1
    hp, wp = h + 2 * d, w + 2 * d

    kernel = functools.partial(_bottleneck_kernel, H=h, W=w, OH=oh, OW=ow,
                               d=d, stride=stride, has_down=has_down)

    in_specs = [
        pl.BlockSpec((1, h, w, cin_p), lambda b: (b, 0, 0, 0)),   # x
        pl.BlockSpec((cin_p, p_p), lambda b: (0, 0)),             # w1 (BN folded)
        pl.BlockSpec((1, p_p), lambda b: (0, 0)),                 # b1
        pl.BlockSpec((9, p_p, p_p), lambda b: (0, 0, 0)),         # w2 (9 taps)
        pl.BlockSpec((1, p_p), lambda b: (0, 0)),                 # b2
        pl.BlockSpec((p_p, c4_p), lambda b: (0, 0)),              # w3
        pl.BlockSpec((1, c4_p), lambda b: (0, 0)),                # b3
    ]
    if has_down:
        in_specs += [
            pl.BlockSpec((cin_p, c4_p), lambda b: (0, 0)),        # wd
            pl.BlockSpec((1, c4_p), lambda b: (0, 0)),            # bd
        ]

    return pl.pallas_call(
        kernel,
        out_shape=jax.ShapeDtypeStruct((n, oh, ow, c4_p), jnp.bfloat16),
        grid_spec=pltpu.PrefetchScalarGridSpec(
            num_scalar_prefetch=0,
            grid=(n,),                                            # parallel over batch
            in_specs=in_specs,
            out_specs=pl.BlockSpec((1, oh, ow, c4_p), lambda b: (b, 0, 0, 0)),
            scratch_shapes=[pltpu.VMEM((hp, wp, p_p), jnp.bfloat16)],
        ),
        compiler_params=pltpu.CompilerParams(
            dimension_semantics=("parallel",),
            vmem_limit_bytes=_vmem_limit_bytes()),
    )


# ----------------------------------------------------------------------------
# Parameters (deterministic init, eval-mode BN folded, channel-padded bf16 copies)
# ----------------------------------------------------------------------------
def make_bottleneck_params(seed, inplanes, planes, dilation, stride=1):
    downsample = (stride != 1) or (inplanes != planes * 4)
    keys = iter(jax.random.split(jax.random.PRNGKey(seed), 32))

    def conv_w(cin, cout, k):
        fan_in = k * k * cin
        return jax.random.normal(next(keys), (k, k, cin, cout),
                                 jnp.float32) * math.sqrt(2.0 / fan_in)

    def bn(c):
        gamma = 1.0 + 0.1 * jax.random.normal(next(keys), (c,), jnp.float32)
        beta = 0.1 * jax.random.normal(next(keys), (c,), jnp.float32)
        mean = 0.1 * jax.random.normal(next(keys), (c,), jnp.float32)
        var = jax.random.uniform(next(keys), (c,), jnp.float32, 0.5, 1.5)
        return gamma, beta, mean, var

    def fold(w, bn_params, eps=1e-5):
        gamma, beta, mean, var = bn_params
        scale = gamma / jnp.sqrt(var + eps)
        return w * scale, beta - mean * scale        # eval-mode BN folded into conv

    w1, b1 = fold(conv_w(inplanes, planes, 1), bn(planes))
    w2, b2 = fold(conv_w(planes, planes, 3), bn(planes))
    w3, b3 = fold(conv_w(planes, planes * 4, 1), bn(planes * 4))

    p = dict(inplanes=inplanes, planes=planes, dilation=dilation, stride=stride,
             has_down=downsample, w1=w1, b1=b1, w2=w2, b2=b2, w3=w3, b3=b3)
    if downsample:
        wd, bd = fold(conv_w(inplanes, planes * 4, 1), bn(planes * 4))
        p['wd'], p['bd'] = wd, bd

    # --- Pallas-side copies: channels padded to 128 lanes, bf16 weights, f32 bias ---
    def pad_mm_w(w):                     # (k,k,cin,cout) -> (k*k, cin_p, cout_p) bf16
        k, _, cin, cout = w.shape
        cin_p, cout_p = _round_up(cin, 128), _round_up(cout, 128)
        wpad = jnp.pad(w, ((0, 0), (0, 0), (0, cin_p - cin), (0, cout_p - cout)))
        return wpad.reshape(k * k, cin_p, cout_p).astype(jnp.bfloat16)

    def pad_bias(b):
        cp = _round_up(b.shape[0], 128)
        return jnp.pad(b, (0, cp - b.shape[0])).reshape(1, cp).astype(jnp.float32)

    p['p_w1'] = pad_mm_w(w1)[0]          # (Cin_p, P_p)
    p['p_b1'] = pad_bias(b1)
    p['p_w2'] = pad_mm_w(w2)             # (9, P_p, P_p)
    p['p_b2'] = pad_bias(b2)
    p['p_w3'] = pad_mm_w(w3)[0]          # (P_p, C4_p)
    p['p_b3'] = pad_bias(b3)
    if downsample:
        p['p_wd'] = pad_mm_w(p['wd'])[0]
        p['p_bd'] = pad_bias(p['bd'])
    return p


# ----------------------------------------------------------------------------
# Forward passes
# ----------------------------------------------------------------------------
def to_nhwc_padded(x_nchw):
    """NCHW f32 -> NHWC bf16 with channels zero-padded to a multiple of 128."""
    x = jnp.transpose(x_nchw, (0, 2, 3, 1)).astype(jnp.float32)
    c = x.shape[-1]
    cp = _round_up(c, 128)
    if cp != c:
        x = jnp.pad(x, ((0, 0), (0, 0), (0, 0), (0, cp - c)))
    return x.astype(jnp.bfloat16)


def bottleneck_forward_nhwc(p, x):
    """x: (N, H, W, Cin_p) bf16 (padded channels zero) -> (N, OH, OW, C4_p) bf16."""
    n, h, w, cin_p = x.shape
    p_p = p['p_w1'].shape[-1]
    c4_p = p['p_w3'].shape[-1]
    fn = _build_bottleneck(n, h, w, cin_p, p_p, c4_p,
                           p['dilation'], p['stride'], p['has_down'])
    args = [x, p['p_w1'], p['p_b1'], p['p_w2'], p['p_b2'], p['p_w3'], p['p_b3']]
    if p['has_down']:
        args += [p['p_wd'], p['p_bd']]
    return fn(*args)


def bottleneck_forward(p, x_nchw):
    """NCHW f32 in / NCHW f32 out, matching the PyTorch Bottleneck.forward contract."""
    y = bottleneck_forward_nhwc(p, to_nhwc_padded(x_nchw))
    c_out = 4 * p['planes']
    return jnp.transpose(y[..., :c_out].astype(jnp.float32), (0, 3, 1, 2))


# ----------------------------------------------------------------------------
# Pure-JAX f32 reference (lax.conv), for a numerics sanity check
# ----------------------------------------------------------------------------
def bottleneck_ref(p, x_nchw):
    x = jnp.transpose(x_nchw, (0, 2, 3, 1)).astype(jnp.float32)

    def conv(a, w, stride=1, dilation=1, padding=0):
        return jax.lax.conv_general_dilated(
            a, w, (stride, stride), [(padding, padding)] * 2,
            rhs_dilation=(dilation, dilation),
            dimension_numbers=('NHWC', 'HWIO', 'NHWC'))

    out = jax.nn.relu(conv(x, p['w1']) + p['b1'])
    out = jax.nn.relu(conv(out, p['w2'], stride=p['stride'],
                           dilation=p['dilation'], padding=p['dilation']) + p['b2'])
    out = conv(out, p['w3']) + p['b3']
    if p['has_down']:
        res = conv(x, p['wd'], stride=p['stride']) + p['bd']
    else:
        res = x
    return jnp.transpose(jax.nn.relu(out + res), (0, 3, 1, 2))


# ----------------------------------------------------------------------------
if __name__ == "__main__":
    N, CIN, H, W = 2, 64, 16, 16
    PLANES = 32

    key = jax.random.PRNGKey(0)
    x_nchw = jax.random.normal(key, (N, CIN, H, W), jnp.float32)

    # Block 1: dilated bottleneck with 1x1 downsample (inplanes != planes*4).
    blk1 = make_bottleneck_params(seed=1, inplanes=CIN, planes=PLANES, dilation=2, stride=1)
    # Block 2: identity-residual bottleneck (no downsample).
    blk2 = make_bottleneck_params(seed=2, inplanes=4 * PLANES, planes=PLANES, dilation=1, stride=1)

    # Pallas path: chain the two fused blocks in the padded-NHWC bf16 layout.
    x_nhwc = to_nhwc_padded(x_nchw)
    y = bottleneck_forward_nhwc(blk1, x_nhwc)
    y = bottleneck_forward_nhwc(blk2, y)
    y = jnp.transpose(y[..., :4 * PLANES].astype(jnp.float32), (0, 3, 1, 2))
    y = jax.block_until_ready(y)

    # Reference (f32, lax.conv) with the same folded parameters.
    y_ref = bottleneck_ref(blk2, bottleneck_ref(blk1, x_nchw))

    assert y.shape == (N, 4 * PLANES, H, W), y.shape
    assert bool(jnp.all(jnp.isfinite(y)))
    rel_err = float(jnp.max(jnp.abs(y - y_ref)) / (jnp.max(jnp.abs(y_ref)) + 1e-6))
    assert rel_err < 8e-2, f"relative error too large: {rel_err}"
    print("KERNEL_OK")
</pallas_src>

<mosaic_0001>
module attributes {stable_mosaic.version = 11 : i64} {
  func.func @_bottleneck_kernel(%arg0: i32, %arg1: memref<1x16x16x128xbf16, #tpu.memory_space<vmem>>, %arg2: memref<128x128xbf16, #tpu.memory_space<vmem>>, %arg3: memref<1x128xf32, #tpu.memory_space<vmem>>, %arg4: memref<9x128x128xbf16, #tpu.memory_space<vmem>>, %arg5: memref<1x128xf32, #tpu.memory_space<vmem>>, %arg6: memref<128x128xbf16, #tpu.memory_space<vmem>>, %arg7: memref<1x128xf32, #tpu.memory_space<vmem>>, %arg8: memref<128x128xbf16, #tpu.memory_space<vmem>>, %arg9: memref<1x128xf32, #tpu.memory_space<vmem>>, %arg10: memref<1x16x16x128xbf16, #tpu.memory_space<vmem>>, %arg11: memref<20x20x128xbf16, #tpu.memory_space<vmem>>) attributes {dimension_semantics = [#tpu.dimension_semantics<parallel>], iteration_bounds = array<i64: 2>, scalar_prefetch = 0 : i64, scratch_operands = 1 : i64, tpu.core_type = #tpu.core_type<tc>, window_params = [{transform_indices = @transform_0, window_bounds = array<i64: 1, 16, 16, 128>}, {pipeline_mode = #tpu.pipeline_mode<synchronous>, transform_indices = @transform_1, window_bounds = array<i64: 128, 128>}, {pipeline_mode = #tpu.pipeline_mode<synchronous>, transform_indices = @transform_2, window_bounds = array<i64: 1, 128>}, {pipeline_mode = #tpu.pipeline_mode<synchronous>, transform_indices = @transform_3, window_bounds = array<i64: 9, 128, 128>}, {pipeline_mode = #tpu.pipeline_mode<synchronous>, transform_indices = @transform_4, window_bounds = array<i64: 1, 128>}, {pipeline_mode = #tpu.pipeline_mode<synchronous>, transform_indices = @transform_5, window_bounds = array<i64: 128, 128>}, {pipeline_mode = #tpu.pipeline_mode<synchronous>, transform_indices = @transform_6, window_bounds = array<i64: 1, 128>}, {pipeline_mode = #tpu.pipeline_mode<synchronous>, transform_indices = @transform_7, window_bounds = array<i64: 128, 128>}, {pipeline_mode = #tpu.pipeline_mode<synchronous>, transform_indices = @transform_8, window_bounds = array<i64: 1, 128>}, {transform_indices = @transform_9, window_bounds = array<i64: 1, 16, 16, 128>}]} {
    %c0 = arith.constant 0 : index
    %c0_0 = arith.constant 0 : index
    %c0_1 = arith.constant 0 : index
    %c0_2 = arith.constant 0 : index
    %0 = vector.load %arg1[%c0, %c0_0, %c0_1, %c0_2] : memref<1x16x16x128xbf16, #tpu.memory_space<vmem>>, vector<1x16x16x128xbf16>
    %1 = vector.shape_cast %0 : vector<1x16x16x128xbf16> to vector<256x128xbf16>
    %c0_3 = arith.constant 0 : index
    %c0_4 = arith.constant 0 : index
    %2 = vector.load %arg2[%c0_3, %c0_4] : memref<128x128xbf16, #tpu.memory_space<vmem>>, vector<128x128xbf16>
    %cst = arith.constant dense<0.000000e+00> : vector<256x128xf32>
    %3 = tpu.matmul %1, %2, %cst {dimension_numbers = #tpu.dot_dimension_numbers<[1], [0], [0], [1], [0, 0, 1, 1], [], []>} : vector<256x128xbf16>, vector<128x128xbf16>, vector<256x128xf32> -> vector<256x128xf32>
    %c0_5 = arith.constant 0 : index
    %c0_6 = arith.constant 0 : index
    %4 = vector.load %arg3[%c0_5, %c0_6] : memref<1x128xf32, #tpu.memory_space<vmem>>, vector<1x128xf32>
    %5 = vector.broadcast %4 : vector<1x128xf32> to vector<256x128xf32>
    %6 = arith.addf %3, %5 : vector<256x128xf32>
    %cst_7 = arith.constant 0.000000e+00 : f32
    %7 = vector.broadcast %cst_7 : f32 to vector<256x128xf32>
    %8 = arith.maximumf %6, %7 : vector<256x128xf32>
    %9 = arith.truncf %8 : vector<256x128xf32> to vector<256x128xbf16>
    %cst_8 = arith.constant 0.000000e+00 : bf16
    %10 = vector.broadcast %cst_8 : bf16 to vector<20x20x128xbf16>
    %c0_9 = arith.constant 0 : index
    %c0_10 = arith.constant 0 : index
    %c0_11 = arith.constant 0 : index
    %11 = vector.load %arg11[%c0_9, %c0_10, %c0_11] : memref<20x20x128xbf16, #tpu.memory_space<vmem>>, vector<20x20x128xbf16>
    tpu.vector_store %arg11[%c0_9, %c0_10, %c0_11], %10 {strides = array<i32>} : memref<20x20x128xbf16, #tpu.memory_space<vmem>>, vector<20x20x128xbf16>,
    %12 = vector.shape_cast %9 : vector<256x128xbf16> to vector<16x16x128xbf16>
    %c2 = arith.constant 2 : index
    %c2_12 = arith.constant 2 : index
    %c0_13 = arith.constant 0 : index
    %13 = vector.load %arg11[%c2, %c2_12, %c0_13] : memref<20x20x128xbf16, #tpu.memory_space<vmem>>, vector<16x16x128xbf16>
    tpu.vector_store %arg11[%c2, %c2_12, %c0_13], %12 {strides = array<i32>} : memref<20x20x128xbf16, #tpu.memory_space<vmem>>, vector<16x16x128xbf16>,
    %c0_14 = arith.constant 0 : index
    %c0_15 = arith.constant 0 : index
    %c0_16 = arith.constant 0 : index
    %14 = vector.load %arg11[%c0_14, %c0_15, %c0_16] : memref<20x20x128xbf16, #tpu.memory_space<vmem>>, vector<16x16x128xbf16>
    %15 = vector.shape_cast %14 : vector<16x16x128xbf16> to vector<256x128xbf16>
    %c0_17 = arith.constant 0 : index
    %c0_18 = arith.constant 0 : index
    %c0_19 = arith.constant 0 : index
    %16 = vector.load %arg4[%c0_17, %c0_18, %c0_19] : memref<9x128x128xbf16, #tpu.memory_space<vmem>>, vector<1x128x128xbf16>
    %17 = vector.shape_cast %16 : vector<1x128x128xbf16> to vector<128x128xbf16>
    %cst_20 = arith.constant dense<0.000000e+00> : vector<256x128xf32>
    %18 = tpu.matmul %15, %17, %cst_20 {dimension_numbers = #tpu.dot_dimension_numbers<[1], [0], [0], [1], [0, 0, 1, 1], [], []>} : vector<256x128xbf16>, vector<128x128xbf16>, vector<256x128xf32> -> vector<256x128xf32>
    %c0_21 = arith.constant 0 : index
    %c2_22 = arith.constant 2 : index
    %c0_23 = arith.constant 0 : index
    %19 = vector.load %arg11[%c0_21, %c2_22, %c0_23] : memref<20x20x128xbf16, #tpu.memory_space<vmem>>, vector<16x16x128xbf16>
    %20 = vector.shape_cast %19 : vector<16x16x128xbf16> to vector<256x128xbf16>
    %c1 = arith.constant 1 : index
    %c0_24 = arith.constant 0 : index
    %c0_25 = arith.constant 0 : index
    %21 = vector.load %arg4[%c1, %c0_24, %c0_25] : memref<9x128x128xbf16, #tpu.memory_space<vmem>>, vector<1x128x128xbf16>
    %22 = vector.shape_cast %21 : vector<1x128x128xbf16> to vector<128x128xbf16>
    %cst_26 = arith.constant dense<0.000000e+00> : vector<256x128xf32>
    %23 = tpu.matmul %20, %22, %cst_26 {dimension_numbers = #tpu.dot_dimension_numbers<[1], [0], [0], [1], [0, 0, 1, 1], [], []>} : vector<256x128xbf16>, vector<128x128xbf16>, vector<256x128xf32> -> vector<256x128xf32>
    %24 = arith.addf %18, %23 : vector<256x128xf32>
    %c0_27 = arith.constant 0 : index
    %c4 = arith.constant 4 : index
    %c0_28 = arith.constant 0 : index
    %25 = vector.load %arg11[%c0_27, %c4, %c0_28] : memref<20x20x128xbf16, #tpu.memory_space<vmem>>, vector<16x16x128xbf16>
    %26 = vector.shape_cast %25 : vector<16x16x128xbf16> to vector<256x128xbf16>
    %c2_29 = arith.constant 2 : index
    %c0_30 = arith.constant 0 : index
    %c0_31 = arith.constant 0 : index
    %27 = vector.load %arg4[%c2_29, %c0_30, %c0_31] : memref<9x128x128xbf16, #tpu.memory_space<vmem>>, vector<1x128x128xbf16>
    %28 = vector.shape_cast %27 : vector<1x128x128xbf16> to vector<128x128xbf16>
    %cst_32 = arith.constant dense<0.000000e+00> : vector<256x128xf32>
    %29 = tpu.matmul %26, %28, %cst_32 {dimension_numbers = #tpu.dot_dimension_numbers<[1], [0], [0], [1], [0, 0, 1, 1], [], []>} : vector<256x128xbf16>, vector<128x128xbf16>, vector<256x128xf32> -> vector<256x128xf32>
    %30 = arith.addf %24, %29 : vector<256x128xf32>
    %c2_33 = arith.constant 2 : index
    %c0_34 = arith.constant 0 : index
    %c0_35 = arith.constant 0 : index
    %31 = vector.load %arg11[%c2_33, %c0_34, %c0_35] : memref<20x20x128xbf16, #tpu.memory_space<vmem>>, vector<16x16x128xbf16>
    %32 = vector.shape_cast %31 : vector<16x16x128xbf16> to vector<256x128xbf16>
    %c3 = arith.constant 3 : index
    %c0_36 = arith.constant 0 : index
    %c0_37 = arith.constant 0 : index
    %33 = vector.load %arg4[%c3, %c0_36, %c0_37] : memref<9x128x128xbf16, #tpu.memory_space<vmem>>, vector<1x128x128xbf16>
    %34 = vector.shape_cast %33 : vector<1x128x128xbf16> to vector<128x128xbf16>
    %cst_38 = arith.constant dense<0.000000e+00> : vector<256x128xf32>
    %35 = tpu.matmul %32, %34, %cst_38 {dimension_numbers = #tpu.dot_dimension_numbers<[1], [0], [0], [1], [0, 0, 1, 1], [], []>} : vector<256x128xbf16>, vector<128x128xbf16>, vector<256x128xf32> -> vector<256x128xf32>
    %36 = arith.addf %30, %35 : vector<256x128xf32>
    %c2_39 = arith.constant 2 : index
    %c2_40 = arith.constant 2 : index
    %c0_41 = arith.constant 0 : index
    %37 = vector.load %arg11[%c2_39, %c2_40, %c0_41] : memref<20x20x128xbf16, #tpu.memory_space<vmem>>, vector<16x16x128xbf16>
    %38 = vector.shape_cast %37 : vector<16x16x128xbf16> to vector<256x128xbf16>
    %c4_42 = arith.constant 4 : index
    %c0_43 = arith.constant 0 : index
    %c0_44 = arith.constant 0 : index
    %39 = vector.load %arg4[%c4_42, %c0_43, %c0_44] : memref<9x128x128xbf16, #tpu.memory_space<vmem>>, vector<1x128x128xbf16>
    %40 = vector.shape_cast %39 : vector<1x128x128xbf16> to vector<128x128xbf16>
    %cst_45 = arith.constant dense<0.000000e+00> : vector<256x128xf32>
    %41 = tpu.matmul %38, %40, %cst_45 {dimension_numbers = #tpu.dot_dimension_numbers<[1], [0], [0], [1], [0, 0, 1, 1], [], []>} : vector<256x128xbf16>, vector<128x128xbf16>, vector<256x128xf32> -> vector<256x128xf32>
    %42 = arith.addf %36, %41 : vector<256x128xf32>
    %c2_46 = arith.constant 2 : index
    %c4_47 = arith.constant 4 : index
    %c0_48 = arith.constant 0 : index
    %43 = vector.load %arg11[%c2_46, %c4_47, %c0_48] : memref<20x20x128xbf16, #tpu.memory_space<vmem>>, vector<16x16x128xbf16>
    %44 = vector.shape_cast %43 : vector<16x16x128xbf16> to vector<256x128xbf16>
    %c5 = arith.constant 5 : index
    %c0_49 = arith.constant 0 : index
    %c0_50 = arith.constant 0 : index
    %45 = vector.load %arg4[%c5, %c0_49, %c0_50] : memref<9x128x128xbf16, #tpu.memory_space<vmem>>, vector<1x128x128xbf16>
    %46 = vector.shape_cast %45 : vector<1x128x128xbf16> to vector<128x128xbf16>
    %cst_51 = arith.constant dense<0.000000e+00> : vector<256x128xf32>
    %47 = tpu.matmul %44, %46, %cst_51 {dimension_numbers = #tpu.dot_dimension_numbers<[1], [0], [0], [1], [0, 0, 1, 1], [], []>} : vector<256x128xbf16>, vector<128x128xbf16>, vector<256x128xf32> -> vector<256x128xf32>
    %48 = arith.addf %42, %47 : vector<256x128xf32>
    %c4_52 = arith.constant 4 : index
    %c0_53 = arith.constant 0 : index
    %c0_54 = arith.constant 0 : index
    %49 = vector.load %arg11[%c4_52, %c0_53, %c0_54] : memref<20x20x128xbf16, #tpu.memory_space<vmem>>, vector<16x16x128xbf16>
    %50 = vector.shape_cast %49 : vector<16x16x128xbf16> to vector<256x128xbf16>
    %c6 = arith.constant 6 : index
    %c0_55 = arith.constant 0 : index
    %c0_56 = arith.constant 0 : index
    %51 = vector.load %arg4[%c6, %c0_55, %c0_56] : memref<9x128x128xbf16, #tpu.memory_space<vmem>>, vector<1x128x128xbf16>
    %52 = vector.shape_cast %51 : vector<1x128x128xbf16> to vector<128x128xbf16>
    %cst_57 = arith.constant dense<0.000000e+00> : vector<256x128xf32>
    %53 = tpu.matmul %50, %52, %cst_57 {dimension_numbers = #tpu.dot_dimension_numbers<[1], [0], [0], [1], [0, 0, 1, 1], [], []>} : vector<256x128xbf16>, vector<128x128xbf16>, vector<256x128xf32> -> vector<256x128xf32>
    %54 = arith.addf %48, %53 : vector<256x128xf32>
    %c4_58 = arith.constant 4 : index
    %c2_59 = arith.constant 2 : index
    %c0_60 = arith.constant 0 : index
    %55 = vector.load %arg11[%c4_58, %c2_59, %c0_60] : memref<20x20x128xbf16, #tpu.memory_space<vmem>>, vector<16x16x128xbf16>
    %56 = vector.shape_cast %55 : vector<16x16x128xbf16> to vector<256x128xbf16>
    %c7 = arith.constant 7 : index
    %c0_61 = arith.constant 0 : index
    %c0_62 = arith.constant 0 : index
    %57 = vector.load %arg4[%c7, %c0_61, %c0_62] : memref<9x128x128xbf16, #tpu.memory_space<vmem>>, vector<1x128x128xbf16>
    %58 = vector.shape_cast %57 : vector<1x128x128xbf16> to vector<128x128xbf16>
    %cst_63 = arith.constant dense<0.000000e+00> : vector<256x128xf32>
    %59 = tpu.matmul %56, %58, %cst_63 {dimension_numbers = #tpu.dot_dimension_numbers<[1], [0], [0], [1], [0, 0, 1, 1], [], []>} : vector<256x128xbf16>, vector<128x128xbf16>, vector<256x128xf32> -> vector<256x128xf32>
    %60 = arith.addf %54, %59 : vector<256x128xf32>
    %c4_64 = arith.constant 4 : index
    %c4_65 = arith.constant 4 : index
    %c0_66 = arith.constant 0 : index
    %61 = vector.load %arg11[%c4_64, %c4_65, %c0_66] : memref<20x20x128xbf16, #tpu.memory_space<vmem>>, vector<16x16x128xbf16>
    %62 = vector.shape_cast %61 : vector<16x16x128xbf16> to vector<256x128xbf16>
    %c8 = arith.constant 8 : index
    %c0_67 = arith.constant 0 : index
    %c0_68 = arith.constant 0 : index
    %63 = vector.load %arg4[%c8, %c0_67, %c0_68] : memref<9x128x128xbf16, #tpu.memory_space<vmem>>, vector<1x128x128xbf16>
    %64 = vector.shape_cast %63 : vector<1x128x128xbf16> to vector<128x128xbf16>
    %cst_69 = arith.constant dense<0.000000e+00> : vector<256x128xf32>
    %65 = tpu.matmul %62, %64, %cst_69 {dimension_numbers = #tpu.dot_dimension_numbers<[1], [0], [0], [1], [0, 0, 1, 1], [], []>} : vector<256x128xbf16>, vector<128x128xbf16>, vector<256x128xf32> -> vector<256x128xf32>
    %66 = arith.addf %60, %65 : vector<256x128xf32>
    %c0_70 = arith.constant 0 : index
    %c0_71 = arith.constant 0 : index
    %67 = vector.load %arg5[%c0_70, %c0_71] : memref<1x128xf32, #tpu.memory_space<vmem>>, vector<1x128xf32>
    %68 = vector.broadcast %67 : vector<1x128xf32> to vector<256x128xf32>
    %69 = arith.addf %66, %68 : vector<256x128xf32>
    %cst_72 = arith.constant 0.000000e+00 : f32
    %70 = vector.broadcast %cst_72 : f32 to vector<256x128xf32>
    %71 = arith.maximumf %69, %70 : vector<256x128xf32>
    %72 = arith.truncf %71 : vector<256x128xf32> to vector<256x128xbf16>
    %c0_73 = arith.constant 0 : index
    %c0_74 = arith.constant 0 : index
    %73 = vector.load %arg6[%c0_73, %c0_74] : memref<128x128xbf16, #tpu.memory_space<vmem>>, vector<128x128xbf16>
    %cst_75 = arith.constant dense<0.000000e+00> : vector<256x128xf32>
    %74 = tpu.matmul %72, %73, %cst_75 {dimension_numbers = #tpu.dot_dimension_numbers<[1], [0], [0], [1], [0, 0, 1, 1], [], []>} : vector<256x128xbf16>, vector<128x128xbf16>, vector<256x128xf32> -> vector<256x128xf32>
    %c0_76 = arith.constant 0 : index
    %c0_77 = arith.constant 0 : index
    %75 = vector.load %arg7[%c0_76, %c0_77] : memref<1x128xf32, #tpu.memory_space<vmem>>, vector<1x128xf32>
    %76 = vector.broadcast %75 : vector<1x128xf32> to vector<256x128xf32>
    %77 = arith.addf %74, %76 : vector<256x128xf32>
    %c0_78 = arith.constant 0 : index
    %c0_79 = arith.constant 0 : index
    %78 = vector.load %arg8[%c0_78, %c0_79] : memref<128x128xbf16, #tpu.memory_space<vmem>>, vector<128x128xbf16>
    %cst_80 = arith.constant dense<0.000000e+00> : vector<256x128xf32>
    %79 = tpu.matmul %1, %78, %cst_80 {dimension_numbers = #tpu.dot_dimension_numbers<[1], [0], [0], [1], [0, 0, 1, 1], [], []>} : vector<256x128xbf16>, vector<128x128xbf16>, vector<256x128xf32> -> vector<256x128xf32>
    %c0_81 = arith.constant 0 : index
    %c0_82 = arith.constant 0 : index
    %80 = vector.load %arg9[%c0_81, %c0_82] : memref<1x128xf32, #tpu.memory_space<vmem>>, vector<1x128xf32>
    %81 = vector.broadcast %80 : vector<1x128xf32> to vector<256x128xf32>
    %82 = arith.addf %79, %81 : vector<256x128xf32>
    %83 = arith.addf %77, %82 : vector<256x128xf32>
    %cst_83 = arith.constant 0.000000e+00 : f32
    %84 = vector.broadcast %cst_83 : f32 to vector<256x128xf32>
    %85 = arith.maximumf %83, %84 : vector<256x128xf32>
    %86 = vector.shape_cast %85 : vector<256x128xf32> to vector<1x16x16x128xf32>
    %87 = arith.truncf %86 : vector<1x16x16x128xf32> to vector<1x16x16x128xbf16>
    %c0_84 = arith.constant 0 : index
    %c0_85 = arith.constant 0 : index
    %c0_86 = arith.constant 0 : index
    %c0_87 = arith.constant 0 : index
    %88 = vector.load %arg10[%c0_84, %c0_85, %c0_86, %c0_87] : memref<1x16x16x128xbf16, #tpu.memory_space<vmem>>, vector<1x16x16x128xbf16>
    tpu.vector_store %arg10[%c0_84, %c0_85, %c0_86, %c0_87], %87 {strides = array<i32>} : memref<1x16x16x128xbf16, #tpu.memory_space<vmem>>, vector<1x16x16x128xbf16>,
    return
  }
  func.func @transform_0(%arg0: i32) -> (i32, i32, i32, i32) {
    %c0_i32 = arith.constant 0 : i32
    %c0_i32_0 = arith.constant 0 : i32
    %c0_i32_1 = arith.constant 0 : i32
    %c0_i32_2 = arith.constant 0 : i32
    return %arg0, %c0_i32, %c0_i32_0, %c0_i32_1 : i32, i32, i32, i32
  }
  func.func @transform_1(%arg0: i32) -> (i32, i32) {
    %c0_i32 = arith.constant 0 : i32
    %c0_i32_0 = arith.constant 0 : i32
    %c0_i32_1 = arith.constant 0 : i32
    return %c0_i32, %c0_i32_0 : i32, i32
  }
  func.func @transform_2(%arg0: i32) -> (i32, i32) {
    %c0_i32 = arith.constant 0 : i32
    %c0_i32_0 = arith.constant 0 : i32
    %c0_i32_1 = arith.constant 0 : i32
    return %c0_i32, %c0_i32_0 : i32, i32
  }
  func.func @transform_3(%arg0: i32) -> (i32, i32, i32) {
    %c0_i32 = arith.constant 0 : i32
    %c0_i32_0 = arith.constant 0 : i32
    %c0_i32_1 = arith.constant 0 : i32
    %c0_i32_2 = arith.constant 0 : i32
    return %c0_i32, %c0_i32_0, %c0_i32_1 : i32, i32, i32
  }
  func.func @transform_4(%arg0: i32) -> (i32, i32) {
    %c0_i32 = arith.constant 0 : i32
    %c0_i32_0 = arith.constant 0 : i32
    %c0_i32_1 = arith.constant 0 : i32
    return %c0_i32, %c0_i32_0 : i32, i32
  }
  func.func @transform_5(%arg0: i32) -> (i32, i32) {
    %c0_i32 = arith.constant 0 : i32
    %c0_i32_0 = arith.constant 0 : i32
    %c0_i32_1 = arith.constant 0 : i32
    return %c0_i32, %c0_i32_0 : i32, i32
  }
  func.func @transform_6(%arg0: i32) -> (i32, i32) {
    %c0_i32 = arith.constant 0 : i32
    %c0_i32_0 = arith.constant 0 : i32
    %c0_i32_1 = arith.constant 0 : i32
    return %c0_i32, %c0_i32_0 : i32, i32
  }
  func.func @transform_7(%arg0: i32) -> (i32, i32) {
    %c0_i32 = arith.constant 0 : i32
    %c0_i32_0 = arith.constant 0 : i32
    %c0_i32_1 = arith.constant 0 : i32
    return %c0_i32, %c0_i32_0 : i32, i32
  }
  func.func @transform_8(%arg0: i32) -> (i32, i32) {
    %c0_i32 = arith.constant 0 : i32
    %c0_i32_0 = arith.constant 0 : i32
    %c0_i32_1 = arith.constant 0 : i32
    return %c0_i32, %c0_i32_0 : i32, i32
  }
  func.func @transform_9(%arg0: i32) -> (i32, i32, i32, i32) {
    %c0_i32 = arith.constant 0 : i32
    %c0_i32_0 = arith.constant 0 : i32
    %c0_i32_1 = arith.constant 0 : i32
    %c0_i32_2 = arith.constant 0 : i32
    return %arg0, %c0_i32, %c0_i32_0, %c0_i32_1 : i32, i32, i32, i32
  }
}

</mosaic_0001>

<llo_original>
// kernel: tpu_custom_call.1
$region0: #{tpu_custom_call.1}
  #allocation0 [shape = 'u32[]', space=smem, size = 0x4, offset = 0x4, fixed_abs, tag = 'smem constant byte address 0x4 - core index']
  #allocation1 [shape = 'u32[72,128]{1,0:T(1,128)}', space=vmem, size = 0x9000, scoped, tag = 'internal scratch']
  #allocation2 [shape = 'bf16[20,20,128]{2,1,0:T(8,128)(2,1)}', space=vmem, size = 0x1e000, scoped, tag = 'scratch operand']
  %s0 = inlined_call_operand.hbm [shape: bf16[2,16,16,128], index: 0, kind: input, shape index: {}]
  %s1 = inlined_call_operand.hbm [shape: bf16[128,128], index: 1, kind: input, shape index: {}]
  %s2 = inlined_call_operand.vmem [shape: f32[1,128], index: 2, kind: input, shape index: {}]
  %s3 = inlined_call_operand.hbm [shape: bf16[9,128,128], index: 3, kind: input, shape index: {}]
  %s4 = inlined_call_operand.vmem [shape: f32[1,128], index: 4, kind: input, shape index: {}]
  %s5 = inlined_call_operand.hbm [shape: bf16[128,128], index: 5, kind: input, shape index: {}]
  %s6 = inlined_call_operand.vmem [shape: f32[1,128], index: 6, kind: input, shape index: {}]
  %s7 = inlined_call_operand.hbm [shape: bf16[128,128], index: 7, kind: input, shape index: {}]
  %s8 = inlined_call_operand.vmem [shape: f32[1,128], index: 8, kind: input, shape index: {}]
  %s9 = inlined_call_operand.hbm [shape: bf16[2,16,16,128], index: 9, kind: output, shape index: {}]
  %s10 = sld [smem:[#allocation0]]
  $region89: #{tpu_custom_call.1} parent=0
    _
  %s12 = ssub.s32 1, %s10
  %s13 = scalar_select 0, %s12, %s10
  $region1: #{tpu_custom_call.1} parent=0
    #allocation3 [shape = 'u8[131072]{0}', space=vmem, size = 0x20000, scoped, tag = 'input window, operand 0']
    #allocation4 [shape = 's32[2]{0}', space=sflag, size = 0x8, scoped, tag = 'scoped memory for tpu_custom_call.1']
    #allocation5 [shape = 's32[2]{0}', space=sflag, size = 0x8, scoped, tag = 'scoped memory for tpu_custom_call.1']
    #allocation6 [shape = 'u8[32768]{0}', space=vmem, size = 0x8000, scoped, tag = 'input window, operand 1, single buffered']
    #allocation7 [shape = 's32[1]{0}', space=sflag, size = 0x4, scoped, tag = 'scoped memory for tpu_custom_call.1']
    #allocation8 [shape = 'u8[294912]{0}', space=vmem, size = 0x48000, scoped, tag = 'input window, operand 3, single buffered']
    #allocation9 [shape = 'u8[32768]{0}', space=vmem, size = 0x8000, scoped, tag = 'input window, operand 5, single buffered']
    #allocation10 [shape = 's32[1]{0}', space=sflag, size = 0x4, scoped, tag = 'scoped memory for tpu_custom_call.1']
    #allocation11 [shape = 'u8[32768]{0}', space=vmem, size = 0x8000, scoped, tag = 'input window, operand 7, single buffered']
    #allocation12 [shape = 'u8[131072]{0}', space=vmem, size = 0x20000, scoped, tag = 'output window, operand 0']
    %14 = vsyncpa [#allocation4], 0
    %s15 = scalar_lea.sflag [#allocation4], 1
    %16 = vsyncpa %s15, 0
    %17 = vsyncpa [#allocation7], 0
    %18 = vsyncpa [#allocation10], 0
    %19 = vsyncpa [#allocation5], 0
    %s20 = scalar_lea.sflag [#allocation5], 1
    %21 = vsyncpa %s20, 0
    loop: start=0, step=1, limit=4
    $region2: #{tpu_custom_call.1} parent=1 // loop_pre_header
      _
    $region3: #{tpu_custom_call.1} parent=1 // loop_header
      %s23 = sphi 0, %s27
      %p24 = scmp.ge.s32.totalorder %s23, 4
      %s33 = sphi 0, %s35
      %s36 = sphi 0, %s33
      %s37 = sphi 0, %s36
      %s53 = sphi 0, %s37
      %s57 = sphi 0, %s57
      %s59 = sphi 0, %s57
      %s60 = sphi 0, %s59
      %s74 = sphi 0, %s60
      %s78 = sphi 0, %s78
      %s80 = sphi 0, %s78
      %s81 = sphi 0, %s80
      %s95 = sphi 0, %s81
      %s99 = sphi 0, %s99
      %s101 = sphi 0, %s99
      %s102 = sphi 0, %s101
      %s116 = sphi 0, %s102
      %s120 = sphi 0, %s120
      %s122 = sphi 0, %s120
      %s123 = sphi 0, %s122
      %s137 = sphi 0, %s123
      %s141 = sphi 0, %s141
      %s143 = sphi 0, %s141
      %s144 = sphi 0, %s143
      %s158 = sphi 0, %s144
      %s162 = sphi 0, %s162
      %s164 = sphi 0, %s162
      %s165 = sphi 0, %s164
      %s179 = sphi 0, %s165
      %s183 = sphi 0, %s183
      %s185 = sphi 0, %s183
      %s186 = sphi 0, %s185
      %s200 = sphi 0, %s186
      %s204 = sphi 0, %s204
      %s206 = sphi 0, %s204
      %s207 = sphi 0, %s206
      %s221 = sphi 0, %s207
      %s227 = sphi 0, %s229
      %s230 = sphi 0, %s227
      %s231 = sphi 0, %s230
      %s247 = sphi 0, %s231
    $region4: #{tpu_custom_call.1} parent=1 // loop_header_branch
      %26 = sbr.rel (%p24) target = $region8
    $region5: #{tpu_custom_call.1} parent=1 // loop_body
      %s28 = ssub.s32 %s23, 1
      %s29 = ssub.s32 %s23, 2
      %s30 = sadd.s32 %s23, 1
      %s31 = ssub.s32 %s23, %s30
      %p32 = scmp.eq.s32.totalorder %s31, 0
      %s34 = sadd.s32 %s33, 1
      %s35 = scalar_select %p32, %s33, %s34
      %p38 = pneg %p32
      %p39 = scmp.eq.s32.totalorder %s23, 1
      %p40 = por %p38, %p39
      %p41 = scmp.ne.s32.totalorder %s33, %s36
      %p42 = scmp.eq.s32.totalorder %s23, 0
      %p43 = por %p41, %p42
      %p44 = scmp.ne.s32.totalorder %s33, %s36
      %p45 = scmp.eq.s32.totalorder %s28, 1
      %p46 = por %p44, %p45
      %p47 = scmp.ne.s32.totalorder %s36, %s37
      %p48 = scmp.eq.s32.totalorder %s28, 0
      %p49 = por %p47, %p48
      %p50 = scmp.ne.s32.totalorder %s36, %s37
      %p51 = scmp.eq.s32.totalorder %s29, 1
      %p52 = por %p50, %p51
      %p54 = scmp.ne.s32.totalorder %s37, %s53
      %p55 = scmp.eq.s32.totalorder %s29, 0
      %p56 = por %p54, %p55
      %s58 = sadd.s32 %s57, 1
      %p61 = scmp.eq.s32.totalorder %s23, 1
      %p62 = scmp.ne.s32.totalorder %s57, %s59
      %p63 = scmp.eq.s32.totalorder %s23, 0
      %p64 = por %p62, %p63
      %p65 = scmp.ne.s32.totalorder %s57, %s59
      %p66 = scmp.eq.s32.totalorder %s28, 1
      %p67 = por %p65, %p66
      %p68 = scmp.ne.s32.totalorder %s59, %s60
      %p69 = scmp.eq.s32.totalorder %s28, 0
      %p70 = por %p68, %p69
      %p71 = scmp.ne.s32.totalorder %s59, %s60
      %p72 = scmp.eq.s32.totalorder %s29, 1
      %p73 = por %p71, %p72
      %p75 = scmp.ne.s32.totalorder %s60, %s74
      %p76 = scmp.eq.s32.totalorder %s29, 0
      %p77 = por %p75, %p76
      %s79 = sadd.s32 %s78, 1
      %p82 = scmp.eq.s32.totalorder %s23, 1
      %p83 = scmp.ne.s32.totalorder %s78, %s80
      %p84 = scmp.eq.s32.totalorder %s23, 0
      %p85 = por %p83, %p84
      %p86 = scmp.ne.s32.totalorder %s78, %s80
      %p87 = scmp.eq.s32.totalorder %s28, 1
      %p88 = por %p86, %p87
      %p89 = scmp.ne.s32.totalorder %s80, %s81
      %p90 = scmp.eq.s32.totalorder %s28, 0
      %p91 = por %p89, %p90
      %p92 = scmp.ne.s32.totalorder %s80, %s81
      %p93 = scmp.eq.s32.totalorder %s29, 1
      %p94 = por %p92, %p93
      %p96 = scmp.ne.s32.totalorder %s81, %s95
      %p97 = scmp.eq.s32.totalorder %s29, 0
      %p98 = por %p96, %p97
      %s100 = sadd.s32 %s99, 1
      %p103 = scmp.eq.s32.totalorder %s23, 1
      %p104 = scmp.ne.s32.totalorder %s99, %s101
      %p105 = scmp.eq.s32.totalorder %s23, 0
      %p106 = por %p104, %p105
      %p107 = scmp.ne.s32.totalorder %s99, %s101
      %p108 = scmp.eq.s32.totalorder %s28, 1
      %p109 = por %p107, %p108
      %p110 = scmp.ne.s32.totalorder %s101, %s102
      %p111 = scmp.eq.s32.totalorder %s28, 0
      %p112 = por %p110, %p111
      %p113 = scmp.ne.s32.totalorder %s101, %s102
      %p114 = scmp.eq.s32.totalorder %s29, 1
      %p115 = por %p113, %p114
      %p117 = scmp.ne.s32.totalorder %s102, %s116
      %p118 = scmp.eq.s32.totalorder %s29, 0
      %p119 = por %p117, %p118
      %s121 = sadd.s32 %s120, 1
      %p124 = scmp.eq.s32.totalorder %s23, 1
      %p125 = scmp.ne.s32.totalorder %s120, %s122
      %p126 = scmp.eq.s32.totalorder %s23, 0
      %p127 = por %p125, %p126
      %p128 = scmp.ne.s32.totalorder %s120, %s122
      %p129 = scmp.eq.s32.totalorder %s28, 1
      %p130 = por %p128, %p129
      %p131 = scmp.ne.s32.totalorder %s122, %s123
      %p132 = scmp.eq.s32.totalorder %s28, 0
      %p133 = por %p131, %p132
      %p134 = scmp.ne.s32.totalorder %s122, %s123
      %p135 = scmp.eq.s32.totalorder %s29, 1
      %p136 = por %p134, %p135
      %p138 = scmp.ne.s32.totalorder %s123, %s137
      %p139 = scmp.eq.s32.totalorder %s29, 0
      %p140 = por %p138, %p139
      %s142 = sadd.s32 %s141, 1
      %p145 = scmp.eq.s32.totalorder %s23, 1
      %p146 = scmp.ne.s32.totalorder %s141, %s143
      %p147 = scmp.eq.s32.totalorder %s23, 0
      %p148 = por %p146, %p147
      %p149 = scmp.ne.s32.totalorder %s141, %s143
      %p150 = scmp.eq.s32.totalorder %s28, 1
      %p151 = por %p149, %p150
      %p152 = scmp.ne.s32.totalorder %s143, %s144
      %p153 = scmp.eq.s32.totalorder %s28, 0
      %p154 = por %p152, %p153
      %p155 = scmp.ne.s32.totalorder %s143, %s144
      %p156 = scmp.eq.s32.totalorder %s29, 1
      %p157 = por %p155, %p156
      %p159 = scmp.ne.s32.totalorder %s144, %s158
      %p160 = scmp.eq.s32.totalorder %s29, 0
      %p161 = por %p159, %p160
      %s163 = sadd.s32 %s162, 1
      %p166 = scmp.eq.s32.totalorder %s23, 1
      %p167 = scmp.ne.s32.totalorder %s162, %s164
      %p168 = scmp.eq.s32.totalorder %s23, 0
      %p169 = por %p167, %p168
      %p170 = scmp.ne.s32.totalorder %s162, %s164
      %p171 = scmp.eq.s32.totalorder %s28, 1
      %p172 = por %p170, %p171
      %p173 = scmp.ne.s32.totalorder %s164, %s165
      %p174 = scmp.eq.s32.totalorder %s28, 0
      %p175 = por %p173, %p174
      %p176 = scmp.ne.s32.totalorder %s164, %s165
      %p177 = scmp.eq.s32.totalorder %s29, 1
      %p178 = por %p176, %p177
      %p180 = scmp.ne.s32.totalorder %s165, %s179
      %p181 = scmp.eq.s32.totalorder %s29, 0
      %p182 = por %p180, %p181
      %s184 = sadd.s32 %s183, 1
      %p187 = scmp.eq.s32.totalorder %s23, 1
      %p188 = scmp.ne.s32.totalorder %s183, %s185
      %p189 = scmp.eq.s32.totalorder %s23, 0
      %p190 = por %p188, %p189
      %p191 = scmp.ne.s32.totalorder %s183, %s185
      %p192 = scmp.eq.s32.totalorder %s28, 1
      %p193 = por %p191, %p192
      %p194 = scmp.ne.s32.totalorder %s185, %s186
      %p195 = scmp.eq.s32.totalorder %s28, 0
      %p196 = por %p194, %p195
      %p197 = scmp.ne.s32.totalorder %s185, %s186
      %p198 = scmp.eq.s32.totalorder %s29, 1
      %p199 = por %p197, %p198
      %p201 = scmp.ne.s32.totalorder %s186, %s200
      %p202 = scmp.eq.s32.totalorder %s29, 0
      %p203 = por %p201, %p202
      %s205 = sadd.s32 %s204, 1
      %p208 = scmp.eq.s32.totalorder %s23, 1
      %p209 = scmp.ne.s32.totalorder %s204, %s206
      %p210 = scmp.eq.s32.totalorder %s23, 0
      %p211 = por %p209, %p210
      %p212 = scmp.ne.s32.totalorder %s204, %s206
      %p213 = scmp.eq.s32.totalorder %s28, 1
      %p214 = por %p212, %p213
      %p215 = scmp.ne.s32.totalorder %s206, %s207
      %p216 = scmp.eq.s32.totalorder %s28, 0
      %p217 = por %p215, %p216
      %p218 = scmp.ne.s32.totalorder %s206, %s207
      %p219 = scmp.eq.s32.totalorder %s29, 1
      %p220 = por %p218, %p219
      %p222 = scmp.ne.s32.totalorder %s207, %s221
      %p223 = scmp.eq.s32.totalorder %s29, 0
      %p224 = por %p222, %p223
      %s225 = ssub.s32 %s23, %s30
      %p226 = scmp.eq.s32.totalorder %s225, 0
      %s228 = sadd.s32 %s227, 1
      %s229 = scalar_select %p226, %s227, %s228
      %p232 = pneg %p226
      %p233 = scmp.eq.s32.totalorder %s23, 1
      %p234 = por %p232, %p233
      %p235 = scmp.ne.s32.totalorder %s227, %s230
      %p236 = scmp.eq.s32.totalorder %s23, 0
      %p237 = por %p235, %p236
      %p238 = scmp.ne.s32.totalorder %s227, %s230
      %p239 = scmp.eq.s32.totalorder %s28, 1
      %p240 = por %p238, %p239
      %p241 = scmp.ne.s32.totalorder %s230, %s231
      %p242 = scmp.eq.s32.totalorder %s28, 0
      %p243 = por %p241, %p242
      %p244 = scmp.ne.s32.totalorder %s230, %s231
      %p245 = scmp.eq.s32.totalorder %s29, 1
      %p246 = por %p244, %p245
      %p248 = scmp.ne.s32.totalorder %s231, %s247
      %p249 = scmp.eq.s32.totalorder %s29, 0
      %p250 = por %p248, %p249
      %p251 = scmp.le.s32.totalorder 1, %s23
      %p252 = scmp.lt.s32.totalorder %s23, 3
      %p253 = pnand %p251, %p252
      %p254 = pneg %p253
      // Predicated region
      $region9: #{tpu_custom_call.1} parent=5 // pred_check
        _
      $region10: #{tpu_custom_call.1} parent=5 // pred_check_branch
        %256 = sbr.rel (%p253) target = $region12
      $region11: #{tpu_custom_call.1} parent=5 // pred_region
        %s257 = ssub.s32 %s23, 1
        // Predicated region
        $region13: #{tpu_custom_call.1} parent=11 // pred_check
          %p258 = pneg %p70
        $region14: #{tpu_custom_call.1} parent=11 // pred_check_branch
          %260 = sbr.rel (%p258) target = $region16
        $region15: #{tpu_custom_call.1} parent=11 // pred_region
          %262 = vsyncadd [#allocation7], 0
          %s263 = sshll.u32 %s1, 4
          %s264 = int_to_ptr.hbm [resolvable:$true] %s263
          %s265 = sshll.u32 [#allocation6], 4
          %s266 = int_to_ptr.vmem [resolvable:$true] %s265
          %271 = dma.hbm_to_vmem [thread:$0]  %s264, 1024, %s266, [#allocation7], 64, 64, 4
        $region16: #{tpu_custom_call.1} parent=11 // pred_fallthru
          _
        // Predicated region
        $region17: #{tpu_custom_call.1} parent=11 // pred_check
          %p272 = pneg %p91
        $region18: #{tpu_custom_call.1} parent=11 // pred_check_branch
          %274 = sbr.rel (%p272) target = $region20
        $region19: #{tpu_custom_call.1} parent=11 // pred_region
          _
        $region20: #{tpu_custom_call.1} parent=11 // pred_fallthru
          _
        // Predicated region
        $region21: #{tpu_custom_call.1} parent=11 // pred_check
          %p275 = pneg %p112
        $region22: #{tpu_custom_call.1} parent=11 // pred_check_branch
          %277 = sbr.rel (%p275) target = $region24
        $region23: #{tpu_custom_call.1} parent=11 // pred_region
          %279 = vsyncadd [#allocation7], 0
          %s280 = sshll.u32 %s3, 4
          %s281 = int_to_ptr.hbm [resolvable:$true] %s280
          %s282 = sshll.u32 [#allocation8], 4
          %s283 = int_to_ptr.vmem [resolvable:$true] %s282
          %288 = dma.hbm_to_vmem [thread:$0]  %s281, 9216, %s283, [#allocation7], 64, 64, 4
        $region24: #{tpu_custom_call.1} parent=11 // pred_fallthru
          _
        // Predicated region
        $region25: #{tpu_custom_call.1} parent=11 // pred_check
          %p289 = pneg %p133
        $region26: #{tpu_custom_call.1} parent=11 // pred_check_branch
          %291 = sbr.rel (%p289) target = $region28
        $region27: #{tpu_custom_call.1} parent=11 // pred_region
          _
        $region28: #{tpu_custom_call.1} parent=11 // pred_fallthru
          _
        // Predicated region
        $region29: #{tpu_custom_call.1} parent=11 // pred_check
          %p292 = pneg %p154
        $region30: #{tpu_custom_call.1} parent=11 // pred_check_branch
          %294 = sbr.rel (%p292) target = $region32
        $region31: #{tpu_custom_call.1} parent=11 // pred_region
          %296 = vsyncadd [#allocation10], 0
          %s297 = sshll.u32 %s5, 4
          %s298 = int_to_ptr.hbm [resolvable:$true] %s297
          %s299 = sshll.u32 [#allocation9], 4
          %s300 = int_to_ptr.vmem [resolvable:$true] %s299
          %305 = dma.hbm_to_vmem [thread:$0]  %s298, 1024, %s300, [#allocation10], 64, 64, 4
        $region32: #{tpu_custom_call.1} parent=11 // pred_fallthru
          _
        // Predicated region
        $region33: #{tpu_custom_call.1} parent=11 // pred_check
          %p306 = pneg %p175
        $region34: #{tpu_custom_call.1} parent=11 // pred_check_branch
          %308 = sbr.rel (%p306) target = $region36
        $region35: #{tpu_custom_call.1} parent=11 // pred_region
          _
        $region36: #{tpu_custom_call.1} parent=11 // pred_fallthru
          _
        // Predicated region
        $region37: #{tpu_custom_call.1} parent=11 // pred_check
          %p309 = pneg %p196
        $region38: #{tpu_custom_call.1} parent=11 // pred_check_branch
          %311 = sbr.rel (%p309) target = $region40
        $region39: #{tpu_custom_call.1} parent=11 // pred_region
          %313 = vsyncadd [#allocation10], 0
          %s314 = sshll.u32 %s7, 4
          %s315 = int_to_ptr.hbm [resolvable:$true] %s314
          %s316 = sshll.u32 [#allocation11], 4
          %s317 = int_to_ptr.vmem [resolvable:$true] %s316
          %322 = dma.hbm_to_vmem [thread:$0]  %s315, 1024, %s317, [#allocation10], 64, 64, 4
        $region40: #{tpu_custom_call.1} parent=11 // pred_fallthru
          _
        // Predicated region
        $region41: #{tpu_custom_call.1} parent=11 // pred_check
          %p323 = pneg %p217
        $region42: #{tpu_custom_call.1} parent=11 // pred_check_branch
          %325 = sbr.rel (%p323) target = $region44
        $region43: #{tpu_custom_call.1} parent=11 // pred_region
          _
        $region44: #{tpu_custom_call.1} parent=11 // pred_fallthru
          _
      $region12: #{tpu_custom_call.1} parent=5 // pred_fallthru
        _
      %p326 = scmp.lt.s32.totalorder %s23, 2
      // Predicated region
      $region45: #{tpu_custom_call.1} parent=5 // pred_check
        %p327 = pneg %p326
      $region46: #{tpu_custom_call.1} parent=5 // pred_check_branch
        %329 = sbr.rel (%p327) target = $region48
      $region47: #{tpu_custom_call.1} parent=5 // pred_region
        // Predicated region
        $region49: #{tpu_custom_call.1} parent=47 // pred_check
          %p330 = pneg %p43
        $region50: #{tpu_custom_call.1} parent=47 // pred_check_branch
          %332 = sbr.rel (%p330) target = $region52
        $region51: #{tpu_custom_call.1} parent=47 // pred_region
          %s333 = sand.u32 %s33, 1
          %s334 = scalar_lea.sflag [#allocation4], %s333
          %s335 = sand.u32 %s33, 1
          %s336 = smul.addr %s335, 128
          %s337 = scalar_lea.vmem [#allocation3], %s336
          %339 = vsyncadd %s334, 0
          %s340 = smul.addr %s23, 32
          %s341 = smul.addr %s340, 4
          %s342 = scalar_lea.hbm %s0, %s341
          %s343 = sshll.u32 %s342, 4
          %s344 = int_to_ptr.hbm [resolvable:$true] %s343
          %s345 = sshll.u32 %s337, 4
          %s346 = int_to_ptr.vmem [resolvable:$true] %s345
          %351 = dma.hbm_to_vmem [thread:$0]  %s344, 2048, %s346, %s334, 64, 64, 4
        $region52: #{tpu_custom_call.1} parent=47 // pred_fallthru
          _
      $region48: #{tpu_custom_call.1} parent=5 // pred_fallthru
        _
      %p352 = scmp.le.s32.totalorder 1, %s23
      %p353 = scmp.lt.s32.totalorder %s23, 3
      %p354 = pnand %p352, %p353
      %p355 = pneg %p354
      // Predicated region
      $region53: #{tpu_custom_call.1} parent=5 // pred_check
        _
      $region54: #{tpu_custom_call.1} parent=5 // pred_check_branch
        %357 = sbr.rel (%p354) target = $region56
      $region55: #{tpu_custom_call.1} parent=5 // pred_region
        %s358 = ssub.s32 %s23, 1
        %s359 = sand.u32 %s36, 1
        %s360 = scalar_lea.sflag [#allocation4], %s359
        %s361 = sand.u32 %s36, 1
        %s362 = smul.addr %s361, 128
        %s363 = scalar_lea.vmem [#allocation3], %s362
        // Predicated region
        $region57: #{tpu_custom_call.1} parent=55 // pred_check
          %p364 = pneg %p49
        $region58: #{tpu_custom_call.1} parent=55 // pred_check_branch
          %366 = sbr.rel (%p364) target = $region60
        $region59: #{tpu_custom_call.1} parent=55 // pred_region
          %368 = dma.done %s360, 2048
        $region60: #{tpu_custom_call.1} parent=55 // pred_fallthru
          _
        // Predicated region
        $region61: #{tpu_custom_call.1} parent=55 // pred_check
          %p369 = pneg %p70
        $region62: #{tpu_custom_call.1} parent=55 // pred_check_branch
          %371 = sbr.rel (%p369) target = $region64
        $region63: #{tpu_custom_call.1} parent=55 // pred_region
          %373 = dma.done [#allocation7], 1024
        $region64: #{tpu_custom_call.1} parent=55 // pred_fallthru
          _
        // Predicated region
        $region65: #{tpu_custom_call.1} parent=55 // pred_check
          %p374 = pneg %p112
        $region66: #{tpu_custom_call.1} parent=55 // pred_check_branch
          %376 = sbr.rel (%p374) target = $region68
        $region67: #{tpu_custom_call.1} parent=55 // pred_region
          %378 = dma.done [#allocation7], 9216
        $region68: #{tpu_custom_call.1} parent=55 // pred_fallthru
          _
        // Predicated region
        $region69: #{tpu_custom_call.1} parent=55 // pred_check
          %p379 = pneg %p154
        $region70: #{tpu_custom_call.1} parent=55 // pred_check_branch
          %381 = sbr.rel (%p379) target = $region72
        $region71: #{tpu_custom_call.1} parent=55 // pred_region
          %383 = dma.done [#allocation10], 1024
        $region72: #{tpu_custom_call.1} parent=55 // pred_fallthru
          _
        // Predicated region
        $region73: #{tpu_custom_call.1} parent=55 // pred_check
          %p384 = pneg %p196
        $region74: #{tpu_custom_call.1} parent=55 // pred_check_branch
          %386 = sbr.rel (%p384) target = $region76
        $region75: #{tpu_custom_call.1} parent=55 // pred_region
          %388 = dma.done [#allocation10], 1024
        $region76: #{tpu_custom_call.1} parent=55 // pred_fallthru
          _
        %s389 = sand.u32 %s36, 1
        %s390 = scalar_lea.sflag [#allocation4], %s389
        %s391 = sand.u32 %s36, 1
        %s392 = smul.addr %s391, 128
        %s393 = scalar_lea.vmem [#allocation3], %s392
        %p394 = pneg %p49
        %p395 = pneg %p46
        %p396 = pneg %p70
        %p397 = pneg %p67
        %p398 = pneg %p91
        %p399 = pneg %p88
        %p400 = pneg %p112
        %p401 = pneg %p109
        %p402 = pneg %p133
        %p403 = pneg %p130
        %p404 = pneg %p154
        %p405 = pneg %p151
        %p406 = pneg %p175
        %p407 = pneg %p172
        %p408 = pneg %p196
        %p409 = pneg %p193
        %p410 = pneg %p217
        %p411 = pneg %p214
        %p412 = pneg %p243
        %p413 = pneg %p240
        %s414 = sand.u32 %s230, 1
        %s415 = scalar_lea.sflag [#allocation5], %s414
        %s416 = sand.u32 %s230, 1
        %s417 = smul.addr %s416, 128
        %s418 = scalar_lea.vmem [#allocation12], %s417
        %v420 = vld [vmem:[%s363] sm:$0xf]
        %v421 = vld [vmem:[%s363 + $0x4] sm:$0xf]
        %v422 = vld [vmem:[%s363 + $0x8] sm:$0xf]
        %v423 = vld [vmem:[%s363 + $0xc] sm:$0xf]
        %v424 = vld [vmem:[%s363 + $0x10] sm:$0xf]
        %v425 = vld [vmem:[%s363 + $0x14] sm:$0xf]
        %v426 = vld [vmem:[%s363 + $0x18] sm:$0xf]
        %v427 = vld [vmem:[%s363 + $0x1c] sm:$0xf]
        %v428 = vld [vmem:[%s363 + $0x20] sm:$0xf]
        %v429 = vld [vmem:[%s363 + $0x24] sm:$0xf]
        %v430 = vld [vmem:[%s363 + $0x28] sm:$0xf]
        %v431 = vld [vmem:[%s363 + $0x2c] sm:$0xf]
        %v432 = vld [vmem:[%s363 + $0x30] sm:$0xf]
        %v433 = vld [vmem:[%s363 + $0x34] sm:$0xf]
        %v434 = vld [vmem:[%s363 + $0x38] sm:$0xf]
        %v435 = vld [vmem:[%s363 + $0x3c] sm:$0xf]
        %v436 = vld [vmem:[%s363 + $0x40] sm:$0xf]
        %v437 = vld [vmem:[%s363 + $0x44] sm:$0xf]
        %v438 = vld [vmem:[%s363 + $0x48] sm:$0xf]
        %v439 = vld [vmem:[%s363 + $0x4c] sm:$0xf]
        %v440 = vld [vmem:[%s363 + $0x50] sm:$0xf]
        %v441 = vld [vmem:[%s363 + $0x54] sm:$0xf]
        %v442 = vld [vmem:[%s363 + $0x58] sm:$0xf]
        %v443 = vld [vmem:[%s363 + $0x5c] sm:$0xf]
        %v444 = vld [vmem:[%s363 + $0x60] sm:$0xf]
        %v445 = vld [vmem:[%s363 + $0x64] sm:$0xf]
        %v446 = vld [vmem:[%s363 + $0x68] sm:$0xf]
        %v447 = vld [vmem:[%s363 + $0x6c] sm:$0xf]
        %v448 = vld [vmem:[%s363 + $0x70] sm:$0xf]
        %v449 = vld [vmem:[%s363 + $0x74] sm:$0xf]
        %v450 = vld [vmem:[%s363 + $0x78] sm:$0xf]
        %v451 = vld [vmem:[%s363 + $0x7c] sm:$0xf]
        %v452 = vld [vmem:[#allocation6] sm:$0xf]
        %v453 = vld [vmem:[#allocation6 + $0x4] sm:$0xf]
        %v454 = vld [vmem:[#allocation6 + $0x8] sm:$0xf]
        %v455 = vld [vmem:[#allocation6 + $0xc] sm:$0xf]
        %v456 = vld [vmem:[#allocation6 + $0x10] sm:$0xf]
        %v457 = vld [vmem:[#allocation6 + $0x14] sm:$0xf]
        %v458 = vld [vmem:[#allocation6 + $0x18] sm:$0xf]
        %v459 = vld [vmem:[#allocation6 + $0x1c] sm:$0xf]
        %v460 = vld [vmem:[#allocation6 + $0x20] sm:$0xf]
        %v461 = vld [vmem:[#allocation6 + $0x24] sm:$0xf]
        %v462 = vld [vmem:[#allocation6 + $0x28] sm:$0xf]
        %v463 = vld [vmem:[#allocation6 + $0x2c] sm:$0xf]
        %v464 = vld [vmem:[#allocation6 + $0x30] sm:$0xf]
        %v465 = vld [vmem:[#allocation6 + $0x34] sm:$0xf]
        %v466 = vld [vmem:[#allocation6 + $0x38] sm:$0xf]
        %v467 = vld [vmem:[#allocation6 + $0x3c] sm:$0xf]
        %v468 = vld [vmem:[%s2] sm:$0x1]
        %v470 = vperm.slane %v468, 0
        %v504 = vunpack.c.l.b16 %v420
        %v505 = vunpack.c.l.b16 %v421
        %v506 = vunpack.c.l.b16 %v422
        %v507 = vunpack.c.l.b16 %v423
        %v508 = vunpack.c.l.b16 %v424
        %v509 = vunpack.c.l.b16 %v425
        %v510 = vunpack.c.l.b16 %v426
        %v511 = vunpack.c.l.b16 %v427
        %v512 = vunpack.c.l.b16 %v428
        %v513 = vunpack.c.l.b16 %v429
        %v514 = vunpack.c.l.b16 %v430
        %v515 = vunpack.c.l.b16 %v431
        %v516 = vunpack.c.l.b16 %v432
        %v517 = vunpack.c.l.b16 %v433
        %v518 = vunpack.c.l.b16 %v434
        %v519 = vunpack.c.l.b16 %v435
        %v520 = vunpack.c.l.b16 %v436
        %v521 = vunpack.c.l.b16 %v437
        %v522 = vunpack.c.l.b16 %v438
        %v523 = vunpack.c.l.b16 %v439
        %v524 = vunpack.c.l.b16 %v440
        %v525 = vunpack.c.l.b16 %v441
        %v526 = vunpack.c.l.b16 %v442
        %v527 = vunpack.c.l.b16 %v443
        %v528 = vunpack.c.l.b16 %v444
        %v529 = vunpack.c.l.b16 %v445
        %v530 = vunpack.c.l.b16 %v446
        %v531 = vunpack.c.l.b16 %v447
        %v532 = vunpack.c.l.b16 %v448
        %v533 = vunpack.c.l.b16 %v449
        %v534 = vunpack.c.l.b16 %v450
        %v535 = vunpack.c.l.b16 %v451
        %v536 = vpack.c.b16 %v505, %v504
        %v537 = vpack.c.b16 %v507, %v506
        %v538 = vpack.c.b16 %v509, %v508
        %v539 = vpack.c.b16 %v511, %v510
        %v540 = vpack.c.b16 %v513, %v512
        %v541 = vpack.c.b16 %v515, %v514
        %v542 = vpack.c.b16 %v517, %v516
        %v543 = vpack.c.b16 %v519, %v518
        %v544 = vpack.c.b16 %v521, %v520
        %v545 = vpack.c.b16 %v523, %v522
        %v546 = vpack.c.b16 %v525, %v524
        %v547 = vpack.c.b16 %v527, %v526
        %v548 = vpack.c.b16 %v529, %v528
        %v549 = vpack.c.b16 %v531, %v530
        %v550 = vpack.c.b16 %v533, %v532
        %v551 = vpack.c.b16 %v535, %v534
        %v584 = vunpack.c.l.b16 %v452
        %v585 = vunpack.c.l.b16 %v453
        %v586 = vunpack.c.l.b16 %v454
        %v587 = vunpack.c.l.b16 %v455
        %v588 = vunpack.c.l.b16 %v456
        %v589 = vunpack.c.l.b16 %v457
        %v590 = vunpack.c.l.b16 %v458
        %v591 = vunpack.c.l.b16 %v459
        %v592 = vunpack.c.l.b16 %v460
        %v593 = vunpack.c.l.b16 %v461
        %v594 = vunpack.c.l.b16 %v462
        %v595 = vunpack.c.l.b16 %v463
        %v596 = vunpack.c.l.b16 %v464
        %v597 = vunpack.c.l.b16 %v465
        %v598 = vunpack.c.l.b16 %v466
        %v599 = vunpack.c.l.b16 %v467
        %v600 = vpack.c.b16 %v585, %v584
        %v601 = vpack.c.b16 %v587, %v586
        %v602 = vpack.c.b16 %v589, %v588
        %v603 = vpack.c.b16 %v591, %v590
        %v604 = vpack.c.b16 %v593, %v592
        %v605 = vpack.c.b16 %v595, %v594
        %v606 = vpack.c.b16 %v597, %v596
        %v607 = vpack.c.b16 %v599, %v598
        %616 = vmatpush.bf16.msra.mxu0 %v607
        %617 = vmatpush.bf16.msra.mxu0 %v606
        %618 = vmatpush.bf16.msra.mxu0 %v605
        %619 = vmatpush.bf16.msra.mxu0 %v604
        %620 = vmatpush.bf16.msra.mxu0 %v603
        %621 = vmatpush.bf16.msra.mxu0 %v602
        %622 = vmatpush.bf16.msra.mxu0 %v601
        %623 = vmatpush.bf16.msra.mxu0 %v600
        %624 = vmatmul.bf16.gmra.mxu0 %v536
        %v625 = vpop.f32.mrf.mxu0
        %v626 = vadd.f32 %v470, %v625
        %v627 = vpop.f32.mrf.mxu0
        %v628 = vadd.f32 %v470, %v627
        %629 = vmatmul.bf16.gmra.mxu0 %v537
        %v630 = vpop.f32.mrf.mxu0
        %v631 = vadd.f32 %v470, %v630
        %v632 = vpop.f32.mrf.mxu0
        %v633 = vadd.f32 %v470, %v632
        %634 = vmatmul.bf16.gmra.mxu0 %v538
        %v635 = vpop.f32.mrf.mxu0
        %v636 = vadd.f32 %v470, %v635
        %v637 = vpop.f32.mrf.mxu0
        %v638 = vadd.f32 %v470, %v637
        %639 = vmatmul.bf16.gmra.mxu0 %v539
        %v640 = vpop.f32.mrf.mxu0
        %v641 = vadd.f32 %v470, %v640
        %v642 = vpop.f32.mrf.mxu0
        %v643 = vadd.f32 %v470, %v642
        %644 = vmatmul.bf16.gmra.mxu0 %v540
        %v645 = vpop.f32.mrf.mxu0
        %v646 = vadd.f32 %v470, %v645
        %v647 = vpop.f32.mrf.mxu0
        %v648 = vadd.f32 %v470, %v647
        %649 = vmatmul.bf16.gmra.mxu0 %v541
        %v650 = vpop.f32.mrf.mxu0
        %v651 = vadd.f32 %v470, %v650
        %v652 = vpop.f32.mrf.mxu0
        %v653 = vadd.f32 %v470, %v652
        %654 = vmatmul.bf16.gmra.mxu0 %v542
        %v655 = vpop.f32.mrf.mxu0
        %v656 = vadd.f32 %v470, %v655
        %v657 = vpop.f32.mrf.mxu0
        %v658 = vadd.f32 %v470, %v657
        %659 = vmatmul.bf16.gmra.mxu0 %v543
        %v660 = vpop.f32.mrf.mxu0
        %v661 = vadd.f32 %v470, %v660
        %v662 = vpop.f32.mrf.mxu0
        %v663 = vadd.f32 %v470, %v662
        %664 = vmatmul.bf16.gmra.mxu0 %v544
        %v665 = vpop.f32.mrf.mxu0
        %v666 = vadd.f32 %v470, %v665
        %v667 = vpop.f32.mrf.mxu0
        %v668 = vadd.f32 %v470, %v667
        %669 = vmatmul.bf16.gmra.mxu0 %v545
        %v670 = vpop.f32.mrf.mxu0
        %v671 = vadd.f32 %v470, %v670
        %v672 = vpop.f32.mrf.mxu0
        %v673 = vadd.f32 %v470, %v672
        %674 = vmatmul.bf16.gmra.mxu0 %v546
        %v675 = vpop.f32.mrf.mxu0
        %v676 = vadd.f32 %v470, %v675
        %v677 = vpop.f32.mrf.mxu0
        %v678 = vadd.f32 %v470, %v677
        %679 = vmatmul.bf16.gmra.mxu0 %v547
        %v680 = vpop.f32.mrf.mxu0
        %v681 = vadd.f32 %v470, %v680
        %v682 = vpop.f32.mrf.mxu0
        %v683 = vadd.f32 %v470, %v682
        %684 = vmatmul.bf16.gmra.mxu0 %v548
        %v685 = vpop.f32.mrf.mxu0
        %v686 = vadd.f32 %v470, %v685
        %v687 = vpop.f32.mrf.mxu0
        %v688 = vadd.f32 %v470, %v687
        %689 = vmatmul.bf16.gmra.mxu0 %v549
        %v690 = vpop.f32.mrf.mxu0
        %v691 = vadd.f32 %v470, %v690
        %v692 = vpop.f32.mrf.mxu0
        %v693 = vadd.f32 %v470, %v692
        %694 = vmatmul.bf16.gmra.mxu0 %v550
        %v695 = vpop.f32.mrf.mxu0
        %v696 = vadd.f32 %v470, %v695
        %v697 = vpop.f32.mrf.mxu0
        %v698 = vadd.f32 %v470, %v697
        %699 = vmatmul.bf16.gmra.mxu0 %v551
        %v700 = vpop.f32.mrf.mxu0
        %v701 = vadd.f32 %v470, %v700
        %v702 = vpop.f32.mrf.mxu0
        %v703 = vadd.f32 %v470, %v702
        %704 = vdwg.mxu0
        %v705 = vmax.f32 %v626, 0.0
        %v706 = vmax.f32 %v628, 0.0
        %v707 = vmax.f32 %v631, 0.0
        %v708 = vmax.f32 %v633, 0.0
        %v709 = vmax.f32 %v636, 0.0
        %v710 = vmax.f32 %v638, 0.0
        %v711 = vmax.f32 %v641, 0.0
        %v712 = vmax.f32 %v643, 0.0
        %v713 = vmax.f32 %v646, 0.0
        %v714 = vmax.f32 %v648, 0.0
        %v715 = vmax.f32 %v651, 0.0
        %v716 = vmax.f32 %v653, 0.0
        %v717 = vmax.f32 %v656, 0.0
        %v718 = vmax.f32 %v658, 0.0
        %v719 = vmax.f32 %v661, 0.0
        %v720 = vmax.f32 %v663, 0.0
        %v721 = vmax.f32 %v666, 0.0
        %v722 = vmax.f32 %v668, 0.0
        %v723 = vmax.f32 %v671, 0.0
        %v724 = vmax.f32 %v673, 0.0
        %v725 = vmax.f32 %v676, 0.0
        %v726 = vmax.f32 %v678, 0.0
        %v727 = vmax.f32 %v681, 0.0
        %v728 = vmax.f32 %v683, 0.0
        %v729 = vmax.f32 %v686, 0.0
        %v730 = vmax.f32 %v688, 0.0
        %v731 = vmax.f32 %v691, 0.0
        %v732 = vmax.f32 %v693, 0.0
        %v733 = vmax.f32 %v696, 0.0
        %v734 = vmax.f32 %v698, 0.0
        %v735 = vmax.f32 %v701, 0.0
        %v736 = vmax.f32 %v703, 0.0
        %v737 = vpack.c.bf16 %v705, %v705
        %v738 = vpack.c.bf16 %v706, %v706
        %v739 = vpack.c.bf16 %v707, %v707
        %v740 = vpack.c.bf16 %v708, %v708
        %v741 = vpack.c.bf16 %v709, %v709
        %v742 = vpack.c.bf16 %v710, %v710
        %v743 = vpack.c.bf16 %v711, %v711
        %v744 = vpack.c.bf16 %v712, %v712
        %v745 = vpack.c.bf16 %v713, %v713
        %v746 = vpack.c.bf16 %v714, %v714
        %v747 = vpack.c.bf16 %v715, %v715
        %v748 = vpack.c.bf16 %v716, %v716
        %v749 = vpack.c.bf16 %v717, %v717
        %v750 = vpack.c.bf16 %v718, %v718
        %v751 = vpack.c.bf16 %v719, %v719
        %v752 = vpack.c.bf16 %v720, %v720
        %v753 = vpack.c.bf16 %v721, %v721
        %v754 = vpack.c.bf16 %v722, %v722
        %v755 = vpack.c.bf16 %v723, %v723
        %v756 = vpack.c.bf16 %v724, %v724
        %v757 = vpack.c.bf16 %v725, %v725
        %v758 = vpack.c.bf16 %v726, %v726
        %v759 = vpack.c.bf16 %v727, %v727
        %v760 = vpack.c.bf16 %v728, %v728
        %v761 = vpack.c.bf16 %v729, %v729
        %v762 = vpack.c.bf16 %v730, %v730
        %v763 = vpack.c.bf16 %v731, %v731
        %v764 = vpack.c.bf16 %v732, %v732
        %v765 = vpack.c.bf16 %v733, %v733
        %v766 = vpack.c.bf16 %v734, %v734
        %v767 = vpack.c.bf16 %v735, %v735
        %v768 = vpack.c.bf16 %v736, %v736
        %769 = vst [vmem:[#allocation2] sm:$0xf] 0
        %770 = vst [vmem:[#allocation2 + $0x4] sm:$0xf] 0
        %771 = vst [vmem:[#allocation2 + $0x8] sm:$0x3] 0
        %772 = vst [vmem:[#allocation2 + $0xc] sm:$0xf] 0
        %773 = vst [vmem:[#allocation2 + $0x10] sm:$0xf] 0
        %774 = vst [vmem:[#allocation2 + $0x14] sm:$0x3] 0
        %775 = vst [vmem:[#allocation2 + $0x18] sm:$0xf] 0
        %776 = vst [vmem:[#allocation2 + $0x1c] sm:$0xf] 0
        %777 = vst [vmem:[#allocation2 + $0x20] sm:$0x3] 0
        %778 = vst [vmem:[#allocation2 + $0x24] sm:$0xf] 0
        %779 = vst [vmem:[#allocation2 + $0x28] sm:$0xf] 0
        %780 = vst [vmem:[#allocation2 + $0x2c] sm:$0x3] 0
        %781 = vst [vmem:[#allocation2 + $0x30] sm:$0xf] 0
        %782 = vst [vmem:[#allocation2 + $0x34] sm:$0xf] 0
        %783 = vst [vmem:[#allocation2 + $0x38] sm:$0x3] 0
        %784 = vst [vmem:[#allocation2 + $0x3c] sm:$0xf] 0
        %785 = vst [vmem:[#allocation2 + $0x40] sm:$0xf] 0
        %786 = vst [vmem:[#allocation2 + $0x44] sm:$0x3] 0
        %787 = vst [vmem:[#allocation2 + $0x48] sm:$0xf] 0
        %788 = vst [vmem:[#allocation2 + $0x4c] sm:$0xf] 0
        %789 = vst [vmem:[#allocation2 + $0x50] sm:$0x3] 0
        %790 = vst [vmem:[#allocation2 + $0x54] sm:$0xf] 0
        %791 = vst [vmem:[#allocation2 + $0x58] sm:$0xf] 0
        %792 = vst [vmem:[#allocation2 + $0x5c] sm:$0x3] 0
        %793 = vst [vmem:[#allocation2 + $0x60] sm:$0xf] 0
        %794 = vst [vmem:[#allocation2 + $0x64] sm:$0xf] 0
        %795 = vst [vmem:[#allocation2 + $0x68] sm:$0x3] 0
        %796 = vst [vmem:[#allocation2 + $0x6c] sm:$0xf] 0
        %797 = vst [vmem:[#allocation2 + $0x70] sm:$0xf] 0
        %798 = vst [vmem:[#allocation2 + $0x74] sm:$0x3] 0
        %799 = vst [vmem:[#allocation2 + $0x78] sm:$0xf] 0
        %800 = vst [vmem:[#allocation2 + $0x7c] sm:$0xf] 0
        %801 = vst [vmem:[#allocation2 + $0x80] sm:$0x3] 0
        %802 = vst [vmem:[#allocation2 + $0x84] sm:$0xf] 0
        %803 = vst [vmem:[#allocation2 + $0x88] sm:$0xf] 0
        %804 = vst [vmem:[#allocation2 + $0x8c] sm:$0x3] 0
        %805 = vst [vmem:[#allocation2 + $0x90] sm:$0xf] 0
        %806 = vst [vmem:[#allocation2 + $0x94] sm:$0xf] 0
        %807 = vst [vmem:[#allocation2 + $0x98] sm:$0x3] 0
        %808 = vst [vmem:[#allocation2 + $0x9c] sm:$0xf] 0
        %809 = vst [vmem:[#allocation2 + $0xa0] sm:$0xf] 0
        %810 = vst [vmem:[#allocation2 + $0xa4] sm:$0x3] 0
        %811 = vst [vmem:[#allocation2 + $0xa8] sm:$0xf] 0
        %812 = vst [vmem:[#allocation2 + $0xac] sm:$0xf] 0
        %813 = vst [vmem:[#allocation2 + $0xb0] sm:$0x3] 0
        %814 = vst [vmem:[#allocation2 + $0xb4] sm:$0xf] 0
        %815 = vst [vmem:[#allocation2 + $0xb8] sm:$0xf] 0
        %816 = vst [vmem:[#allocation2 + $0xbc] sm:$0x3] 0
        %817 = vst [vmem:[#allocation2 + $0xc0] sm:$0xf] 0
        %818 = vst [vmem:[#allocation2 + $0xc4] sm:$0xf] 0
        %819 = vst [vmem:[#allocation2 + $0xc8] sm:$0x3] 0
        %820 = vst [vmem:[#allocation2 + $0xcc] sm:$0xf] 0
        %821 = vst [vmem:[#allocation2 + $0xd0] sm:$0xf] 0
        %822 = vst [vmem:[#allocation2 + $0xd4] sm:$0x3] 0
        %823 = vst [vmem:[#allocation2 + $0xd8] sm:$0xf] 0
        %824 = vst [vmem:[#allocation2 + $0xdc] sm:$0xf] 0
        %825 = vst [vmem:[#allocation2 + $0xe0] sm:$0x3] 0
        %826 = vst [vmem:[#allocation2 + $0xe4] sm:$0xf] 0
        %827 = vst [vmem:[#allocation2 + $0xe8] sm:$0xf] 0
        %828 = vst [vmem:[#allocation2 + $0xec] sm:$0x3] 0
        %vm861 = vcmask 1040384
        %vm862 = vcmask 1044484
        %vm863 = vmor %vm861, %vm862
        %v864 = vrot.slane %v737, 7
        %v865 = vrot.slane %v864, 4
        %v866 = vrot.slane %v738, 7
        %v867 = vsel %vm863, %v865, %v866
        %v868 = vrot.slane %v866, 4
        %v869 = vrot.slane %v739, 7
        %v870 = vrot.slane %v869, 4
        %v871 = vrot.slane %v740, 7
        %v872 = vsel %vm863, %v870, %v871
        %v873 = vrot.slane %v871, 4
        %v874 = vrot.slane %v741, 7
        %v875 = vrot.slane %v874, 4
        %v876 = vrot.slane %v742, 7
        %v877 = vsel %vm863, %v875, %v876
        %v878 = vrot.slane %v876, 4
        %v879 = vrot.slane %v743, 7
        %v880 = vrot.slane %v879, 4
        %v881 = vrot.slane %v744, 7
        %v882 = vsel %vm863, %v880, %v881
        %v883 = vrot.slane %v881, 4
        %v884 = vrot.slane %v745, 7
        %v885 = vrot.slane %v884, 4
        %v886 = vrot.slane %v746, 7
        %v887 = vsel %vm863, %v885, %v886
        %v888 = vrot.slane %v886, 4
        %v889 = vrot.slane %v747, 7
        %v890 = vrot.slane %v889, 4
        %v891 = vrot.slane %v748, 7
        %v892 = vsel %vm863, %v890, %v891
        %v893 = vrot.slane %v891, 4
        %v894 = vrot.slane %v749, 7
        %v895 = vrot.slane %v894, 4
        %v896 = vrot.slane %v750, 7
        %v897 = vsel %vm863, %v895, %v896
        %v898 = vrot.slane %v896, 4
        %v899 = vrot.slane %v751, 7
        %v900 = vrot.slane %v899, 4
        %v901 = vrot.slane %v752, 7
        %v902 = vsel %vm863, %v900, %v901
        %v903 = vrot.slane %v901, 4
        %v904 = vrot.slane %v753, 7
        %v905 = vrot.slane %v904, 4
        %v906 = vrot.slane %v754, 7
        %v907 = vsel %vm863, %v905, %v906
        %v908 = vrot.slane %v906, 4
        %v909 = vrot.slane %v755, 7
        %v910 = vrot.slane %v909, 4
        %v911 = vrot.slane %v756, 7
        %v912 = vsel %vm863, %v910, %v911
        %v913 = vrot.slane %v911, 4
        %v914 = vrot.slane %v757, 7
        %v915 = vrot.slane %v914, 4
        %v916 = vrot.slane %v758, 7
        %v917 = vsel %vm863, %v915, %v916
        %v918 = vrot.slane %v916, 4
        %v919 = vrot.slane %v759, 7
        %v920 = vrot.slane %v919, 4
        %v921 = vrot.slane %v760, 7
        %v922 = vsel %vm863, %v920, %v921
        %v923 = vrot.slane %v921, 4
        %v924 = vrot.slane %v761, 7
        %v925 = vrot.slane %v924, 4
        %v926 = vrot.slane %v762, 7
        %v927 = vsel %vm863, %v925, %v926
        %v928 = vrot.slane %v926, 4
        %v929 = vrot.slane %v763, 7
        %v930 = vrot.slane %v929, 4
        %v931 = vrot.slane %v764, 7
        %v932 = vsel %vm863, %v930, %v931
        %v933 = vrot.slane %v931, 4
        %v934 = vrot.slane %v765, 7
        %v935 = vrot.slane %v934, 4
        %v936 = vrot.slane %v766, 7
        %v937 = vsel %vm863, %v935, %v936
        %v938 = vrot.slane %v936, 4
        %v939 = vrot.slane %v767, 7
        %v940 = vrot.slane %v939, 4
        %v941 = vrot.slane %v768, 7
        %v942 = vsel %vm863, %v940, %v941
        %v943 = vrot.slane %v941, 4
        %s992 = scalar_lea.vmem [#allocation2], 24
        %993 = vst [vmem:[%s992] sm:$0xe] %v864
        %994 = vst [vmem:[%s992 + $0x4] sm:$0xf] %v867
        %995 = vst [vmem:[%s992 + $0x8] sm:$0x1] %v868
        %996 = vst [vmem:[%s992 + $0xc] sm:$0xe] %v869
        %997 = vst [vmem:[%s992 + $0x10] sm:$0xf] %v872
        %998 = vst [vmem:[%s992 + $0x14] sm:$0x1] %v873
        %999 = vst [vmem:[%s992 + $0x18] sm:$0xe] %v874
        %1000 = vst [vmem:[%s992 + $0x1c] sm:$0xf] %v877
        %1001 = vst [vmem:[%s992 + $0x20] sm:$0x1] %v878
        %1002 = vst [vmem:[%s992 + $0x24] sm:$0xe] %v879
        %1003 = vst [vmem:[%s992 + $0x28] sm:$0xf] %v882
        %1004 = vst [vmem:[%s992 + $0x2c] sm:$0x1] %v883
        %1005 = vst [vmem:[%s992 + $0x30] sm:$0xe] %v884
        %1006 = vst [vmem:[%s992 + $0x34] sm:$0xf] %v887
        %1007 = vst [vmem:[%s992 + $0x38] sm:$0x1] %v888
        %1008 = vst [vmem:[%s992 + $0x3c] sm:$0xe] %v889
        %1009 = vst [vmem:[%s992 + $0x40] sm:$0xf] %v892
        %1010 = vst [vmem:[%s992 + $0x44] sm:$0x1] %v893
        %1011 = vst [vmem:[%s992 + $0x48] sm:$0xe] %v894
        %1012 = vst [vmem:[%s992 + $0x4c] sm:$0xf] %v897
        %1013 = vst [vmem:[%s992 + $0x50] sm:$0x1] %v898
        %1014 = vst [vmem:[%s992 + $0x54] sm:$0xe] %v899
        %1015 = vst [vmem:[%s992 + $0x58] sm:$0xf] %v902
        %1016 = vst [vmem:[%s992 + $0x5c] sm:$0x1] %v903
        %1017 = vst [vmem:[%s992 + $0x60] sm:$0xe] %v904
        %1018 = vst [vmem:[%s992 + $0x64] sm:$0xf] %v907
        %1019 = vst [vmem:[%s992 + $0x68] sm:$0x1] %v908
        %1020 = vst [vmem:[%s992 + $0x6c] sm:$0xe] %v909
        %1021 = vst [vmem:[%s992 + $0x70] sm:$0xf] %v912
        %1022 = vst [vmem:[%s992 + $0x74] sm:$0x1] %v913
        %1023 = vst [vmem:[%s992 + $0x78] sm:$0xe] %v914
        %1024 = vst [vmem:[%s992 + $0x7c] sm:$0xf] %v917
        %1025 = vst [vmem:[%s992 + $0x80] sm:$0x1] %v918
        %1026 = vst [vmem:[%s992 + $0x84] sm:$0xe] %v919
        %1027 = vst [vmem:[%s992 + $0x88] sm:$0xf] %v922
        %1028 = vst [vmem:[%s992 + $0x8c] sm:$0x1] %v923
        %1029 = vst [vmem:[%s992 + $0x90] sm:$0xe] %v924
        %1030 = vst [vmem:[%s992 + $0x94] sm:$0xf] %v927
        %1031 = vst [vmem:[%s992 + $0x98] sm:$0x1] %v928
        %1032 = vst [vmem:[%s992 + $0x9c] sm:$0xe] %v929
        %1033 = vst [vmem:[%s992 + $0xa0] sm:$0xf] %v932
        %1034 = vst [vmem:[%s992 + $0xa4] sm:$0x1] %v933
        %1035 = vst [vmem:[%s992 + $0xa8] sm:$0xe] %v934
        %1036 = vst [vmem:[%s992 + $0xac] sm:$0xf] %v937
        %1037 = vst [vmem:[%s992 + $0xb0] sm:$0x1] %v938
        %1038 = vst [vmem:[%s992 + $0xb4] sm:$0xe] %v939
        %1039 = vst [vmem:[%s992 + $0xb8] sm:$0xf] %v942
        %1040 = vst [vmem:[%s992 + $0xbc] sm:$0x1] %v943
        %v1041 = vld [vmem:[#allocation2] sm:$0xf]
        %v1042 = vld [vmem:[#allocation2 + $0x4] sm:$0xf]
        %v1043 = vld [vmem:[#allocation2 + $0xc] sm:$0xf]
        %v1044 = vld [vmem:[#allocation2 + $0x10] sm:$0xf]
        %v1045 = vld [vmem:[#allocation2 + $0x18] sm:$0xf]
        %v1046 = vld [vmem:[#allocation2 + $0x1c] sm:$0xf]
        %v1047 = vld [vmem:[#allocation2 + $0x24] sm:$0xf]
        %v1048 = vld [vmem:[#allocation2 + $0x28] sm:$0xf]
        %v1049 = vld [vmem:[#allocation2 + $0x30] sm:$0xf]
        %v1050 = vld [vmem:[#allocation2 + $0x34] sm:$0xf]
        %v1051 = vld [vmem:[#allocation2 + $0x3c] sm:$0xf]
        %v1052 = vld [vmem:[#allocation2 + $0x40] sm:$0xf]
        %v1053 = vld [vmem:[#allocation2 + $0x48] sm:$0xf]
        %v1054 = vld [vmem:[#allocation2 + $0x4c] sm:$0xf]
        %v1055 = vld [vmem:[#allocation2 + $0x54] sm:$0xf]
        %v1056 = vld [vmem:[#allocation2 + $0x58] sm:$0xf]
        %v1057 = vld [vmem:[#allocation2 + $0x60] sm:$0xf]
        %v1058 = vld [vmem:[#allocation2 + $0x64] sm:$0xf]
        %v1059 = vld [vmem:[#allocation2 + $0x6c] sm:$0xf]
        %v1060 = vld [vmem:[#allocation2 + $0x70] sm:$0xf]
        %v1061 = vld [vmem:[#allocation2 + $0x78] sm:$0xf]
        %v1062 = vld [vmem:[#allocation2 + $0x7c] sm:$0xf]
        %v1063 = vld [vmem:[#allocation2 + $0x84] sm:$0xf]
        %v1064 = vld [vmem:[#allocation2 + $0x88] sm:$0xf]
        %v1065 = vld [vmem:[#allocation2 + $0x90] sm:$0xf]
        %v1066 = vld [vmem:[#allocation2 + $0x94] sm:$0xf]
        %v1067 = vld [vmem:[#allocation2 + $0x9c] sm:$0xf]
        %v1068 = vld [vmem:[#allocation2 + $0xa0] sm:$0xf]
        %v1069 = vld [vmem:[#allocation2 + $0xa8] sm:$0xf]
        %v1070 = vld [vmem:[#allocation2 + $0xac] sm:$0xf]
        %v1071 = vld [vmem:[#allocation2 + $0xb4] sm:$0xf]
        %v1072 = vld [vmem:[#allocation2 + $0xb8] sm:$0xf]
        %v1073 = vld [vmem:[#allocation8] sm:$0xf]
        %v1074 = vld [vmem:[#allocation8 + $0x4] sm:$0xf]
        %v1075 = vld [vmem:[#allocation8 + $0x8] sm:$0xf]
        %v1076 = vld [vmem:[#allocation8 + $0xc] sm:$0xf]
        %v1077 = vld [vmem:[#allocation8 + $0x10] sm:$0xf]
        %v1078 = vld [vmem:[#allocation8 + $0x14] sm:$0xf]
        %v1079 = vld [vmem:[#allocation8 + $0x18] sm:$0xf]
        %v1080 = vld [vmem:[#allocation8 + $0x1c] sm:$0xf]
        %v1081 = vld [vmem:[#allocation8 + $0x20] sm:$0xf]
        %v1082 = vld [vmem:[#allocation8 + $0x24] sm:$0xf]
        %v1083 = vld [vmem:[#allocation8 + $0x28] sm:$0xf]
        %v1084 = vld [vmem:[#allocation8 + $0x2c] sm:$0xf]
        %v1085 = vld [vmem:[#allocation8 + $0x30] sm:$0xf]
        %v1086 = vld [vmem:[#allocation8 + $0x34] sm:$0xf]
        %v1087 = vld [vmem:[#allocation8 + $0x38] sm:$0xf]
        %v1088 = vld [vmem:[#allocation8 + $0x3c] sm:$0xf]
        %v1089 = vld [vmem:[#allocation2] sm:$0xe]
        %v1090 = vld [vmem:[#allocation2 + $0x8] sm:$0x1]
        %v1091 = vld [vmem:[#allocation2 + $0xc] sm:$0xe]
        %v1092 = vld [vmem:[#allocation2 + $0x14] sm:$0x1]
        %v1093 = vld [vmem:[#allocation2 + $0x18] sm:$0xe]
        %v1094 = vld [vmem:[#allocation2 + $0x20] sm:$0x1]
        %v1095 = vld [vmem:[#allocation2 + $0x24] sm:$0xe]
        %v1096 = vld [vmem:[#allocation2 + $0x2c] sm:$0x1]
        %v1097 = vld [vmem:[#allocation2 + $0x30] sm:$0xe]
        %v1098 = vld [vmem:[#allocation2 + $0x38] sm:$0x1]
        %v1099 = vld [vmem:[#allocation2 + $0x3c] sm:$0xe]
        %v1100 = vld [vmem:[#allocation2 + $0x44] sm:$0x1]
        %v1101 = vld [vmem:[#allocation2 + $0x48] sm:$0xe]
        %v1102 = vld [vmem:[#allocation2 + $0x50] sm:$0x1]
        %v1103 = vld [vmem:[#allocation2 + $0x54] sm:$0xe]
        %v1104 = vld [vmem:[#allocation2 + $0x5c] sm:$0x1]
        %v1105 = vld [vmem:[#allocation2 + $0x60] sm:$0xe]
        %v1106 = vld [vmem:[#allocation2 + $0x68] sm:$0x1]
        %v1107 = vld [vmem:[#allocation2 + $0x6c] sm:$0xe]
        %v1108 = vld [vmem:[#allocation2 + $0x74] sm:$0x1]
        %v1109 = vld [vmem:[#allocation2 + $0x78] sm:$0xe]
        %v1110 = vld [vmem:[#allocation2 + $0x80] sm:$0x1]
        %v1111 = vld [vmem:[#allocation2 + $0x84] sm:$0xe]
        %v1112 = vld [vmem:[#allocation2 + $0x8c] sm:$0x1]
        %v1113 = vld [vmem:[#allocation2 + $0x90] sm:$0xe]
        %v1114 = vld [vmem:[#allocation2 + $0x98] sm:$0x1]
        %v1115 = vld [vmem:[#allocation2 + $0x9c] sm:$0xe]
        %v1116 = vld [vmem:[#allocation2 + $0xa4] sm:$0x1]
        %v1117 = vld [vmem:[#allocation2 + $0xa8] sm:$0xe]
        %v1118 = vld [vmem:[#allocation2 + $0xb0] sm:$0x1]
        %v1119 = vld [vmem:[#allocation2 + $0xb4] sm:$0xe]
        %v1120 = vld [vmem:[#allocation2 + $0xbc] sm:$0x1]
        %vm1169 = vcmask 1042432
        %vm1170 = vcmask 1046532
        %vm1171 = vmor %vm1169, %vm1170
        %v1172 = vrot.slane %v1089, 5
        %v1173 = vrot.slane %v1172, 4
        %v1174 = vrot.slane %v1042, 5
        %v1175 = vsel %vm1171, %v1173, %v1174
        %v1176 = vrot.slane %v1174, 4
        %v1177 = vrot.slane %v1090, 5
        %v1178 = vsel %vm1171, %v1176, %v1177
        %v1179 = vrot.slane %v1091, 5
        %v1180 = vrot.slane %v1179, 4
        %v1181 = vrot.slane %v1044, 5
        %v1182 = vsel %vm1171, %v1180, %v1181
        %v1183 = vrot.slane %v1181, 4
        %v1184 = vrot.slane %v1092, 5
        %v1185 = vsel %vm1171, %v1183, %v1184
        %v1186 = vrot.slane %v1093, 5
        %v1187 = vrot.slane %v1186, 4
        %v1188 = vrot.slane %v1046, 5
        %v1189 = vsel %vm1171, %v1187, %v1188
        %v1190 = vrot.slane %v1188, 4
        %v1191 = vrot.slane %v1094, 5
        %v1192 = vsel %vm1171, %v1190, %v1191
        %v1193 = vrot.slane %v1095, 5
        %v1194 = vrot.slane %v1193, 4
        %v1195 = vrot.slane %v1048, 5
        %v1196 = vsel %vm1171, %v1194, %v1195
        %v1197 = vrot.slane %v1195, 4
        %v1198 = vrot.slane %v1096, 5
        %v1199 = vsel %vm1171, %v1197, %v1198
        %v1200 = vrot.slane %v1097, 5
        %v1201 = vrot.slane %v1200, 4
        %v1202 = vrot.slane %v1050, 5
        %v1203 = vsel %vm1171, %v1201, %v1202
        %v1204 = vrot.slane %v1202, 4
        %v1205 = vrot.slane %v1098, 5
        %v1206 = vsel %vm1171, %v1204, %v1205
        %v1207 = vrot.slane %v1099, 5
        %v1208 = vrot.slane %v1207, 4
        %v1209 = vrot.slane %v1052, 5
        %v1210 = vsel %vm1171, %v1208, %v1209
        %v1211 = vrot.slane %v1209, 4
        %v1212 = vrot.slane %v1100, 5
        %v1213 = vsel %vm1171, %v1211, %v1212
        %v1214 = vrot.slane %v1101, 5
        %v1215 = vrot.slane %v1214, 4
        %v1216 = vrot.slane %v1054, 5
        %v1217 = vsel %vm1171, %v1215, %v1216
        %v1218 = vrot.slane %v1216, 4
        %v1219 = vrot.slane %v1102, 5
        %v1220 = vsel %vm1171, %v1218, %v1219
        %v1221 = vrot.slane %v1103, 5
        %v1222 = vrot.slane %v1221, 4
        %v1223 = vrot.slane %v1056, 5
        %v1224 = vsel %vm1171, %v1222, %v1223
        %v1225 = vrot.slane %v1223, 4
        %v1226 = vrot.slane %v1104, 5
        %v1227 = vsel %vm1171, %v1225, %v1226
        %v1228 = vrot.slane %v1105, 5
        %v1229 = vrot.slane %v1228, 4
        %v1230 = vrot.slane %v1058, 5
        %v1231 = vsel %vm1171, %v1229, %v1230
        %v1232 = vrot.slane %v1230, 4
        %v1233 = vrot.slane %v1106, 5
        %v1234 = vsel %vm1171, %v1232, %v1233
        %v1235 = vrot.slane %v1107, 5
        %v1236 = vrot.slane %v1235, 4
        %v1237 = vrot.slane %v1060, 5
        %v1238 = vsel %vm1171, %v1236, %v1237
        %v1239 = vrot.slane %v1237, 4
        %v1240 = vrot.slane %v1108, 5
        %v1241 = vsel %vm1171, %v1239, %v1240
        %v1242 = vrot.slane %v1109, 5
        %v1243 = vrot.slane %v1242, 4
        %v1244 = vrot.slane %v1062, 5
        %v1245 = vsel %vm1171, %v1243, %v1244
        %v1246 = vrot.slane %v1244, 4
        %v1247 = vrot.slane %v1110, 5
        %v1248 = vsel %vm1171, %v1246, %v1247
        %v1249 = vrot.slane %v1111, 5
        %v1250 = vrot.slane %v1249, 4
        %v1251 = vrot.slane %v1064, 5
        %v1252 = vsel %vm1171, %v1250, %v1251
        %v1253 = vrot.slane %v1251, 4
        %v1254 = vrot.slane %v1112, 5
        %v1255 = vsel %vm1171, %v1253, %v1254
        %v1256 = vrot.slane %v1113, 5
        %v1257 = vrot.slane %v1256, 4
        %v1258 = vrot.slane %v1066, 5
        %v1259 = vsel %vm1171, %v1257, %v1258
        %v1260 = vrot.slane %v1258, 4
        %v1261 = vrot.slane %v1114, 5
        %v1262 = vsel %vm1171, %v1260, %v1261
        %v1263 = vrot.slane %v1115, 5
        %v1264 = vrot.slane %v1263, 4
        %v1265 = vrot.slane %v1068, 5
        %v1266 = vsel %vm1171, %v1264, %v1265
        %v1267 = vrot.slane %v1265, 4
        %v1268 = vrot.slane %v1116, 5
        %v1269 = vsel %vm1171, %v1267, %v1268
        %v1270 = vrot.slane %v1117, 5
        %v1271 = vrot.slane %v1270, 4
        %v1272 = vrot.slane %v1070, 5
        %v1273 = vsel %vm1171, %v1271, %v1272
        %v1274 = vrot.slane %v1272, 4
        %v1275 = vrot.slane %v1118, 5
        %v1276 = vsel %vm1171, %v1274, %v1275
        %v1277 = vrot.slane %v1119, 5
        %v1278 = vrot.slane %v1277, 4
        %v1279 = vrot.slane %v1072, 5
        %v1280 = vsel %vm1171, %v1278, %v1279
        %v1281 = vrot.slane %v1279, 4
        %v1282 = vrot.slane %v1120, 5
        %v1283 = vsel %vm1171, %v1281, %v1282
        %s1284 = scalar_lea.vmem [#allocation8], 64
        %v1285 = vld [vmem:[%s1284] sm:$0xf]
        %v1286 = vld [vmem:[%s1284 + $0x4] sm:$0xf]
        %v1287 = vld [vmem:[%s1284 + $0x8] sm:$0xf]
        %v1288 = vld [vmem:[%s1284 + $0xc] sm:$0xf]
        %v1289 = vld [vmem:[%s1284 + $0x10] sm:$0xf]
        %v1290 = vld [vmem:[%s1284 + $0x14] sm:$0xf]
        %v1291 = vld [vmem:[%s1284 + $0x18] sm:$0xf]
        %v1292 = vld [vmem:[%s1284 + $0x1c] sm:$0xf]
        %v1293 = vld [vmem:[%s1284 + $0x20] sm:$0xf]
        %v1294 = vld [vmem:[%s1284 + $0x24] sm:$0xf]
        %v1295 = vld [vmem:[%s1284 + $0x28] sm:$0xf]
        %v1296 = vld [vmem:[%s1284 + $0x2c] sm:$0xf]
        %v1297 = vld [vmem:[%s1284 + $0x30] sm:$0xf]
        %v1298 = vld [vmem:[%s1284 + $0x34] sm:$0xf]
        %v1299 = vld [vmem:[%s1284 + $0x38] sm:$0xf]
        %v1300 = vld [vmem:[%s1284 + $0x3c] sm:$0xf]
        %v1301 = vunpack.c.l.b16 %v1175
        %v1302 = vunpack.c.l.b16 %v1178
        %v1303 = vunpack.c.l.b16 %v1182
        %v1304 = vunpack.c.l.b16 %v1185
        %v1305 = vunpack.c.l.b16 %v1189
        %v1306 = vunpack.c.l.b16 %v1192
        %v1307 = vunpack.c.l.b16 %v1196
        %v1308 = vunpack.c.l.b16 %v1199
        %v1309 = vunpack.c.l.b16 %v1203
        %v1310 = vunpack.c.l.b16 %v1206
        %v1311 = vunpack.c.l.b16 %v1210
        %v1312 = vunpack.c.l.b16 %v1213
        %v1313 = vunpack.c.l.b16 %v1217
        %v1314 = vunpack.c.l.b16 %v1220
        %v1315 = vunpack.c.l.b16 %v1224
        %v1316 = vunpack.c.l.b16 %v1227
        %v1317 = vunpack.c.l.b16 %v1231
        %v1318 = vunpack.c.l.b16 %v1234
        %v1319 = vunpack.c.l.b16 %v1238
        %v1320 = vunpack.c.l.b16 %v1241
        %v1321 = vunpack.c.l.b16 %v1245
        %v1322 = vunpack.c.l.b16 %v1248
        %v1323 = vunpack.c.l.b16 %v1252
        %v1324 = vunpack.c.l.b16 %v1255
        %v1325 = vunpack.c.l.b16 %v1259
        %v1326 = vunpack.c.l.b16 %v1262
        %v1327 = vunpack.c.l.b16 %v1266
        %v1328 = vunpack.c.l.b16 %v1269
        %v1329 = vunpack.c.l.b16 %v1273
        %v1330 = vunpack.c.l.b16 %v1276
        %v1331 = vunpack.c.l.b16 %v1280
        %v1332 = vunpack.c.l.b16 %v1283
        %v1333 = vpack.c.b16 %v1302, %v1301
        %v1334 = vpack.c.b16 %v1304, %v1303
        %v1335 = vpack.c.b16 %v1306, %v1305
        %v1336 = vpack.c.b16 %v1308, %v1307
        %v1337 = vpack.c.b16 %v1310, %v1309
        %v1338 = vpack.c.b16 %v1312, %v1311
        %v1339 = vpack.c.b16 %v1314, %v1313
        %v1340 = vpack.c.b16 %v1316, %v1315
        %v1341 = vpack.c.b16 %v1318, %v1317
        %v1342 = vpack.c.b16 %v1320, %v1319
        %v1343 = vpack.c.b16 %v1322, %v1321
        %v1344 = vpack.c.b16 %v1324, %v1323
        %v1345 = vpack.c.b16 %v1326, %v1325
        %v1346 = vpack.c.b16 %v1328, %v1327
        %v1347 = vpack.c.b16 %v1330, %v1329
        %v1348 = vpack.c.b16 %v1332, %v1331
        %v1381 = vunpack.c.l.b16 %v1285
        %v1382 = vunpack.c.l.b16 %v1286
        %v1383 = vunpack.c.l.b16 %v1287
        %v1384 = vunpack.c.l.b16 %v1288
        %v1385 = vunpack.c.l.b16 %v1289
        %v1386 = vunpack.c.l.b16 %v1290
        %v1387 = vunpack.c.l.b16 %v1291
        %v1388 = vunpack.c.l.b16 %v1292
        %v1389 = vunpack.c.l.b16 %v1293
        %v1390 = vunpack.c.l.b16 %v1294
        %v1391 = vunpack.c.l.b16 %v1295
        %v1392 = vunpack.c.l.b16 %v1296
        %v1393 = vunpack.c.l.b16 %v1297
        %v1394 = vunpack.c.l.b16 %v1298
        %v1395 = vunpack.c.l.b16 %v1299
        %v1396 = vunpack.c.l.b16 %v1300
        %v1397 = vpack.c.b16 %v1382, %v1381
        %v1398 = vpack.c.b16 %v1384, %v1383
        %v1399 = vpack.c.b16 %v1386, %v1385
        %v1400 = vpack.c.b16 %v1388, %v1387
        %v1401 = vpack.c.b16 %v1390, %v1389
        %v1402 = vpack.c.b16 %v1392, %v1391
        %v1403 = vpack.c.b16 %v1394, %v1393
        %v1404 = vpack.c.b16 %v1396, %v1395
        %1413 = vmatpush.bf16.msra.mxu0 %v1404
        %1414 = vmatpush.bf16.msra.mxu0 %v1403
        %1415 = vmatpush.bf16.msra.mxu0 %v1402
        %1416 = vmatpush.bf16.msra.mxu0 %v1401
        %1417 = vmatpush.bf16.msra.mxu0 %v1400
        %1418 = vmatpush.bf16.msra.mxu0 %v1399
        %1419 = vmatpush.bf16.msra.mxu0 %v1398
        %1420 = vmatpush.bf16.msra.mxu0 %v1397
        %1421 = vmatmul.bf16.gmra.mxu0 %v1333
        %v1422 = vpop.f32.mrf.mxu0
        %v1423 = vadd.f32 0.0, %v1422
        %v1424 = vpop.f32.mrf.mxu0
        %v1425 = vadd.f32 0.0, %v1424
        %1426 = vmatmul.bf16.gmra.mxu0 %v1334
        %v1427 = vpop.f32.mrf.mxu0
        %v1428 = vadd.f32 0.0, %v1427
        %v1429 = vpop.f32.mrf.mxu0
        %v1430 = vadd.f32 0.0, %v1429
        %1431 = vmatmul.bf16.gmra.mxu0 %v1335
        %v1432 = vpop.f32.mrf.mxu0
        %v1433 = vadd.f32 0.0, %v1432
        %v1434 = vpop.f32.mrf.mxu0
        %v1435 = vadd.f32 0.0, %v1434
        %1436 = vmatmul.bf16.gmra.mxu0 %v1336
        %v1437 = vpop.f32.mrf.mxu0
        %v1438 = vadd.f32 0.0, %v1437
        %v1439 = vpop.f32.mrf.mxu0
        %v1440 = vadd.f32 0.0, %v1439
        %1441 = vmatmul.bf16.gmra.mxu0 %v1337
        %v1442 = vpop.f32.mrf.mxu0
        %v1443 = vadd.f32 0.0, %v1442
        %v1444 = vpop.f32.mrf.mxu0
        %v1445 = vadd.f32 0.0, %v1444
        %1446 = vmatmul.bf16.gmra.mxu0 %v1338
        %v1447 = vpop.f32.mrf.mxu0
        %v1448 = vadd.f32 0.0, %v1447
        %v1449 = vpop.f32.mrf.mxu0
        %v1450 = vadd.f32 0.0, %v1449
        %1451 = vmatmul.bf16.gmra.mxu0 %v1339
        %v1452 = vpop.f32.mrf.mxu0
        %v1453 = vadd.f32 0.0, %v1452
        %v1454 = vpop.f32.mrf.mxu0
        %v1455 = vadd.f32 0.0, %v1454
        %1456 = vmatmul.bf16.gmra.mxu0 %v1340
        %v1457 = vpop.f32.mrf.mxu0
        %v1458 = vadd.f32 0.0, %v1457
        %v1459 = vpop.f32.mrf.mxu0
        %v1460 = vadd.f32 0.0, %v1459
        %1461 = vmatmul.bf16.gmra.mxu0 %v1341
        %v1462 = vpop.f32.mrf.mxu0
        %v1463 = vadd.f32 0.0, %v1462
        %v1464 = vpop.f32.mrf.mxu0
        %v1465 = vadd.f32 0.0, %v1464
        %1466 = vmatmul.bf16.gmra.mxu0 %v1342
        %v1467 = vpop.f32.mrf.mxu0
        %v1468 = vadd.f32 0.0, %v1467
        %v1469 = vpop.f32.mrf.mxu0
        %v1470 = vadd.f32 0.0, %v1469
        %1471 = vmatmul.bf16.gmra.mxu0 %v1343
        %v1472 = vpop.f32.mrf.mxu0
        %v1473 = vadd.f32 0.0, %v1472
        %v1474 = vpop.f32.mrf.mxu0
        %v1475 = vadd.f32 0.0, %v1474
        %1476 = vmatmul.bf16.gmra.mxu0 %v1344
        %v1477 = vpop.f32.mrf.mxu0
        %v1478 = vadd.f32 0.0, %v1477
        %v1479 = vpop.f32.mrf.mxu0
        %v1480 = vadd.f32 0.0, %v1479
        %1481 = vmatmul.bf16.gmra.mxu0 %v1345
        %v1482 = vpop.f32.mrf.mxu0
        %v1483 = vadd.f32 0.0, %v1482
        %v1484 = vpop.f32.mrf.mxu0
        %v1485 = vadd.f32 0.0, %v1484
        %1486 = vmatmul.bf16.gmra.mxu0 %v1346
        %v1487 = vpop.f32.mrf.mxu0
        %v1488 = vadd.f32 0.0, %v1487
        %v1489 = vpop.f32.mrf.mxu0
        %v1490 = vadd.f32 0.0, %v1489
        %1491 = vmatmul.bf16.gmra.mxu0 %v1347
        %v1492 = vpop.f32.mrf.mxu0
        %v1493 = vadd.f32 0.0, %v1492
        %v1494 = vpop.f32.mrf.mxu0
        %v1495 = vadd.f32 0.0, %v1494
        %1496 = vmatmul.bf16.gmra.mxu0 %v1348
        %v1497 = vpop.f32.mrf.mxu0
        %v1498 = vadd.f32 0.0, %v1497
        %v1499 = vpop.f32.mrf.mxu0
        %v1500 = vadd.f32 0.0, %v1499
        %1501 = vdwg.mxu0
        %v1518 = vunpack.c.l.b16 %v1041
        %v1519 = vunpack.c.l.b16 %v1042
        %v1520 = vunpack.c.l.b16 %v1043
        %v1521 = vunpack.c.l.b16 %v1044
        %v1522 = vunpack.c.l.b16 %v1045
        %v1523 = vunpack.c.l.b16 %v1046
        %v1524 = vunpack.c.l.b16 %v1047
        %v1525 = vunpack.c.l.b16 %v1048
        %v1526 = vunpack.c.l.b16 %v1049
        %v1527 = vunpack.c.l.b16 %v1050
        %v1528 = vunpack.c.l.b16 %v1051
        %v1529 = vunpack.c.l.b16 %v1052
        %v1530 = vunpack.c.l.b16 %v1053
        %v1531 = vunpack.c.l.b16 %v1054
        %v1532 = vunpack.c.l.b16 %v1055
        %v1533 = vunpack.c.l.b16 %v1056
        %v1534 = vunpack.c.l.b16 %v1057
        %v1535 = vunpack.c.l.b16 %v1058
        %v1536 = vunpack.c.l.b16 %v1059
        %v1537 = vunpack.c.l.b16 %v1060
        %v1538 = vunpack.c.l.b16 %v1061
        %v1539 = vunpack.c.l.b16 %v1062
        %v1540 = vunpack.c.l.b16 %v1063
        %v1541 = vunpack.c.l.b16 %v1064
        %v1542 = vunpack.c.l.b16 %v1065
        %v1543 = vunpack.c.l.b16 %v1066
        %v1544 = vunpack.c.l.b16 %v1067
        %v1545 = vunpack.c.l.b16 %v1068
        %v1546 = vunpack.c.l.b16 %v1069
        %v1547 = vunpack.c.l.b16 %v1070
        %v1548 = vunpack.c.l.b16 %v1071
        %v1549 = vunpack.c.l.b16 %v1072
        %v1550 = vpack.c.b16 %v1519, %v1518
        %v1551 = vpack.c.b16 %v1521, %v1520
        %v1552 = vpack.c.b16 %v1523, %v1522
        %v1553 = vpack.c.b16 %v1525, %v1524
        %v1554 = vpack.c.b16 %v1527, %v1526
        %v1555 = vpack.c.b16 %v1529, %v1528
        %v1556 = vpack.c.b16 %v1531, %v1530
        %v1557 = vpack.c.b16 %v1533, %v1532
        %v1558 = vpack.c.b16 %v1535, %v1534
        %v1559 = vpack.c.b16 %v1537, %v1536
        %v1560 = vpack.c.b16 %v1539, %v1538
        %v1561 = vpack.c.b16 %v1541, %v1540
        %v1562 = vpack.c.b16 %v1543, %v1542
        %v1563 = vpack.c.b16 %v1545, %v1544
        %v1564 = vpack.c.b16 %v1547, %v1546
        %v1565 = vpack.c.b16 %v1549, %v1548
        %v1598 = vunpack.c.l.b16 %v1073
        %v1599 = vunpack.c.l.b16 %v1074
        %v1600 = vunpack.c.l.b16 %v1075
        %v1601 = vunpack.c.l.b16 %v1076
        %v1602 = vunpack.c.l.b16 %v1077
        %v1603 = vunpack.c.l.b16 %v1078
        %v1604 = vunpack.c.l.b16 %v1079
        %v1605 = vunpack.c.l.b16 %v1080
        %v1606 = vunpack.c.l.b16 %v1081
        %v1607 = vunpack.c.l.b16 %v1082
        %v1608 = vunpack.c.l.b16 %v1083
        %v1609 = vunpack.c.l.b16 %v1084
        %v1610 = vunpack.c.l.b16 %v1085
        %v1611 = vunpack.c.l.b16 %v1086
        %v1612 = vunpack.c.l.b16 %v1087
        %v1613 = vunpack.c.l.b16 %v1088
        %v1614 = vpack.c.b16 %v1599, %v1598
        %v1615 = vpack.c.b16 %v1601, %v1600
        %v1616 = vpack.c.b16 %v1603, %v1602
        %v1617 = vpack.c.b16 %v1605, %v1604
        %v1618 = vpack.c.b16 %v1607, %v1606
        %v1619 = vpack.c.b16 %v1609, %v1608
        %v1620 = vpack.c.b16 %v1611, %v1610
        %v1621 = vpack.c.b16 %v1613, %v1612
        %1630 = vmatpush.bf16.msra.mxu0 %v1621
        %1631 = vmatpush.bf16.msra.mxu0 %v1620
        %1632 = vmatpush.bf16.msra.mxu0 %v1619
        %1633 = vmatpush.bf16.msra.mxu0 %v1618
        %1634 = vmatpush.bf16.msra.mxu0 %v1617
        %1635 = vmatpush.bf16.msra.mxu0 %v1616
        %1636 = vmatpush.bf16.msra.mxu0 %v1615
        %1637 = vmatpush.bf16.msra.mxu0 %v1614
        %1638 = vmatmul.bf16.gmra.mxu0 %v1550
        %v1639 = vpop.f32.mrf.mxu0
        %v1640 = vadd.f32 %v1423, %v1639
        %v1641 = vpop.f32.mrf.mxu0
        %v1642 = vadd.f32 %v1425, %v1641
        %1643 = vmatmul.bf16.gmra.mxu0 %v1551
        %v1644 = vpop.f32.mrf.mxu0
        %v1645 = vadd.f32 %v1428, %v1644
        %v1646 = vpop.f32.mrf.mxu0
        %v1647 = vadd.f32 %v1430, %v1646
        %1648 = vmatmul.bf16.gmra.mxu0 %v1552
        %v1649 = vpop.f32.mrf.mxu0
        %v1650 = vadd.f32 %v1433, %v1649
        %v1651 = vpop.f32.mrf.mxu0
        %v1652 = vadd.f32 %v1435, %v1651
        %1653 = vmatmul.bf16.gmra.mxu0 %v1553
        %v1654 = vpop.f32.mrf.mxu0
        %v1655 = vadd.f32 %v1438, %v1654
        %v1656 = vpop.f32.mrf.mxu0
        %v1657 = vadd.f32 %v1440, %v1656
        %1658 = vmatmul.bf16.gmra.mxu0 %v1554
        %v1659 = vpop.f32.mrf.mxu0
        %v1660 = vadd.f32 %v1443, %v1659
        %v1661 = vpop.f32.mrf.mxu0
        %v1662 = vadd.f32 %v1445, %v1661
        %1663 = vmatmul.bf16.gmra.mxu0 %v1555
        %v1664 = vpop.f32.mrf.mxu0
        %v1665 = vadd.f32 %v1448, %v1664
        %v1666 = vpop.f32.mrf.mxu0
        %v1667 = vadd.f32 %v1450, %v1666
        %1668 = vmatmul.bf16.gmra.mxu0 %v1556
        %v1669 = vpop.f32.mrf.mxu0
        %v1670 = vadd.f32 %v1453, %v1669
        %v1671 = vpop.f32.mrf.mxu0
        %v1672 = vadd.f32 %v1455, %v1671
        %1673 = vmatmul.bf16.gmra.mxu0 %v1557
        %v1674 = vpop.f32.mrf.mxu0
        %v1675 = vadd.f32 %v1458, %v1674
        %v1676 = vpop.f32.mrf.mxu0
        %v1677 = vadd.f32 %v1460, %v1676
        %1678 = vmatmul.bf16.gmra.mxu0 %v1558
        %v1679 = vpop.f32.mrf.mxu0
        %v1680 = vadd.f32 %v1463, %v1679
        %v1681 = vpop.f32.mrf.mxu0
        %v1682 = vadd.f32 %v1465, %v1681
        %1683 = vmatmul.bf16.gmra.mxu0 %v1559
        %v1684 = vpop.f32.mrf.mxu0
        %v1685 = vadd.f32 %v1468, %v1684
        %v1686 = vpop.f32.mrf.mxu0
        %v1687 = vadd.f32 %v1470, %v1686
        %1688 = vmatmul.bf16.gmra.mxu0 %v1560
        %v1689 = vpop.f32.mrf.mxu0
        %v1690 = vadd.f32 %v1473, %v1689
        %v1691 = vpop.f32.mrf.mxu0
        %v1692 = vadd.f32 %v1475, %v1691
        %1693 = vmatmul.bf16.gmra.mxu0 %v1561
        %v1694 = vpop.f32.mrf.mxu0
        %v1695 = vadd.f32 %v1478, %v1694
        %v1696 = vpop.f32.mrf.mxu0
        %v1697 = vadd.f32 %v1480, %v1696
        %1698 = vmatmul.bf16.gmra.mxu0 %v1562
        %v1699 = vpop.f32.mrf.mxu0
        %v1700 = vadd.f32 %v1483, %v1699
        %v1701 = vpop.f32.mrf.mxu0
        %v1702 = vadd.f32 %v1485, %v1701
        %1703 = vmatmul.bf16.gmra.mxu0 %v1563
        %v1704 = vpop.f32.mrf.mxu0
        %v1705 = vadd.f32 %v1488, %v1704
        %v1706 = vpop.f32.mrf.mxu0
        %v1707 = vadd.f32 %v1490, %v1706
        %1708 = vmatmul.bf16.gmra.mxu0 %v1564
        %v1709 = vpop.f32.mrf.mxu0
        %v1710 = vadd.f32 %v1493, %v1709
        %v1711 = vpop.f32.mrf.mxu0
        %v1712 = vadd.f32 %v1495, %v1711
        %1713 = vmatmul.bf16.gmra.mxu0 %v1565
        %v1714 = vpop.f32.mrf.mxu0
        %v1715 = vadd.f32 %v1498, %v1714
        %v1716 = vpop.f32.mrf.mxu0
        %v1717 = vadd.f32 %v1500, %v1716
        %1718 = vdwg.mxu0
        %v1719 = vld [vmem:[#allocation2] sm:$0xc]
        %v1720 = vld [vmem:[#allocation2 + $0x8] sm:$0x3]
        %v1721 = vld [vmem:[#allocation2 + $0xc] sm:$0xc]
        %v1722 = vld [vmem:[#allocation2 + $0x14] sm:$0x3]
        %v1723 = vld [vmem:[#allocation2 + $0x18] sm:$0xc]
        %v1724 = vld [vmem:[#allocation2 + $0x20] sm:$0x3]
        %v1725 = vld [vmem:[#allocation2 + $0x24] sm:$0xc]
        %v1726 = vld [vmem:[#allocation2 + $0x2c] sm:$0x3]
        %v1727 = vld [vmem:[#allocation2 + $0x30] sm:$0xc]
        %v1728 = vld [vmem:[#allocation2 + $0x38] sm:$0x3]
        %v1729 = vld [vmem:[#allocation2 + $0x3c] sm:$0xc]
        %v1730 = vld [vmem:[#allocation2 + $0x44] sm:$0x3]
        %v1731 = vld [vmem:[#allocation2 + $0x48] sm:$0xc]
        %v1732 = vld [vmem:[#allocation2 + $0x50] sm:$0x3]
        %v1733 = vld [vmem:[#allocation2 + $0x54] sm:$0xc]
        %v1734 = vld [vmem:[#allocation2 + $0x5c] sm:$0x3]
        %v1735 = vld [vmem:[#allocation2 + $0x60] sm:$0xc]
        %v1736 = vld [vmem:[#allocation2 + $0x68] sm:$0x3]
        %v1737 = vld [vmem:[#allocation2 + $0x6c] sm:$0xc]
        %v1738 = vld [vmem:[#allocation2 + $0x74] sm:$0x3]
        %v1739 = vld [vmem:[#allocation2 + $0x78] sm:$0xc]
        %v1740 = vld [vmem:[#allocation2 + $0x80] sm:$0x3]
        %v1741 = vld [vmem:[#allocation2 + $0x84] sm:$0xc]
        %v1742 = vld [vmem:[#allocation2 + $0x8c] sm:$0x3]
        %v1743 = vld [vmem:[#allocation2 + $0x90] sm:$0xc]
        %v1744 = vld [vmem:[#allocation2 + $0x98] sm:$0x3]
        %v1745 = vld [vmem:[#allocation2 + $0x9c] sm:$0xc]
        %v1746 = vld [vmem:[#allocation2 + $0xa4] sm:$0x3]
        %v1747 = vld [vmem:[#allocation2 + $0xa8] sm:$0xc]
        %v1748 = vld [vmem:[#allocation2 + $0xb0] sm:$0x3]
        %v1749 = vld [vmem:[#allocation2 + $0xb4] sm:$0xc]
        %v1750 = vld [vmem:[#allocation2 + $0xbc] sm:$0x3]
        %vm1783 = vcmask 1041408
        %vm1784 = vcmask 1045508
        %vm1785 = vmor %vm1783, %vm1784
        %v1786 = vrot.slane %v1719, 6
        %v1787 = vrot.slane %v1786, 4
        %v1788 = vrot.slane %v1042, 6
        %v1789 = vsel %vm1785, %v1787, %v1788
        %v1790 = vrot.slane %v1788, 4
        %v1791 = vrot.slane %v1720, 6
        %v1792 = vsel %vm1785, %v1790, %v1791
        %v1793 = vrot.slane %v1721, 6
        %v1794 = vrot.slane %v1793, 4
        %v1795 = vrot.slane %v1044, 6
        %v1796 = vsel %vm1785, %v1794, %v1795
        %v1797 = vrot.slane %v1795, 4
        %v1798 = vrot.slane %v1722, 6
        %v1799 = vsel %vm1785, %v1797, %v1798
        %v1800 = vrot.slane %v1723, 6
        %v1801 = vrot.slane %v1800, 4
        %v1802 = vrot.slane %v1046, 6
        %v1803 = vsel %vm1785, %v1801, %v1802
        %v1804 = vrot.slane %v1802, 4
        %v1805 = vrot.slane %v1724, 6
        %v1806 = vsel %vm1785, %v1804, %v1805
        %v1807 = vrot.slane %v1725, 6
        %v1808 = vrot.slane %v1807, 4
        %v1809 = vrot.slane %v1048, 6
        %v1810 = vsel %vm1785, %v1808, %v1809
        %v1811 = vrot.slane %v1809, 4
        %v1812 = vrot.slane %v1726, 6
        %v1813 = vsel %vm1785, %v1811, %v1812
        %v1814 = vrot.slane %v1727, 6
        %v1815 = vrot.slane %v1814, 4
        %v1816 = vrot.slane %v1050, 6
        %v1817 = vsel %vm1785, %v1815, %v1816
        %v1818 = vrot.slane %v1816, 4
        %v1819 = vrot.slane %v1728, 6
        %v1820 = vsel %vm1785, %v1818, %v1819
        %v1821 = vrot.slane %v1729, 6
        %v1822 = vrot.slane %v1821, 4
        %v1823 = vrot.slane %v1052, 6
        %v1824 = vsel %vm1785, %v1822, %v1823
        %v1825 = vrot.slane %v1823, 4
        %v1826 = vrot.slane %v1730, 6
        %v1827 = vsel %vm1785, %v1825, %v1826
        %v1828 = vrot.slane %v1731, 6
        %v1829 = vrot.slane %v1828, 4
        %v1830 = vrot.slane %v1054, 6
        %v1831 = vsel %vm1785, %v1829, %v1830
        %v1832 = vrot.slane %v1830, 4
        %v1833 = vrot.slane %v1732, 6
        %v1834 = vsel %vm1785, %v1832, %v1833
        %v1835 = vrot.slane %v1733, 6
        %v1836 = vrot.slane %v1835, 4
        %v1837 = vrot.slane %v1056, 6
        %v1838 = vsel %vm1785, %v1836, %v1837
        %v1839 = vrot.slane %v1837, 4
        %v1840 = vrot.slane %v1734, 6
        %v1841 = vsel %vm1785, %v1839, %v1840
        %v1842 = vrot.slane %v1735, 6
        %v1843 = vrot.slane %v1842, 4
        %v1844 = vrot.slane %v1058, 6
        %v1845 = vsel %vm1785, %v1843, %v1844
        %v1846 = vrot.slane %v1844, 4
        %v1847 = vrot.slane %v1736, 6
        %v1848 = vsel %vm1785, %v1846, %v1847
        %v1849 = vrot.slane %v1737, 6
        %v1850 = vrot.slane %v1849, 4
        %v1851 = vrot.slane %v1060, 6
        %v1852 = vsel %vm1785, %v1850, %v1851
        %v1853 = vrot.slane %v1851, 4
        %v1854 = vrot.slane %v1738, 6
        %v1855 = vsel %vm1785, %v1853, %v1854
        %v1856 = vrot.slane %v1739, 6
        %v1857 = vrot.slane %v1856, 4
        %v1858 = vrot.slane %v1062, 6
        %v1859 = vsel %vm1785, %v1857, %v1858
        %v1860 = vrot.slane %v1858, 4
        %v1861 = vrot.slane %v1740, 6
        %v1862 = vsel %vm1785, %v1860, %v1861
        %v1863 = vrot.slane %v1741, 6
        %v1864 = vrot.slane %v1863, 4
        %v1865 = vrot.slane %v1064, 6
        %v1866 = vsel %vm1785, %v1864, %v1865
        %v1867 = vrot.slane %v1865, 4
        %v1868 = vrot.slane %v1742, 6
        %v1869 = vsel %vm1785, %v1867, %v1868
        %v1870 = vrot.slane %v1743, 6
        %v1871 = vrot.slane %v1870, 4
        %v1872 = vrot.slane %v1066, 6
        %v1873 = vsel %vm1785, %v1871, %v1872
        %v1874 = vrot.slane %v1872, 4
        %v1875 = vrot.slane %v1744, 6
        %v1876 = vsel %vm1785, %v1874, %v1875
        %v1877 = vrot.slane %v1745, 6
        %v1878 = vrot.slane %v1877, 4
        %v1879 = vrot.slane %v1068, 6
        %v1880 = vsel %vm1785, %v1878, %v1879
        %v1881 = vrot.slane %v1879, 4
        %v1882 = vrot.slane %v1746, 6
        %v1883 = vsel %vm1785, %v1881, %v1882
        %v1884 = vrot.slane %v1747, 6
        %v1885 = vrot.slane %v1884, 4
        %v1886 = vrot.slane %v1070, 6
        %v1887 = vsel %vm1785, %v1885, %v1886
        %v1888 = vrot.slane %v1886, 4
        %v1889 = vrot.slane %v1748, 6
        %v1890 = vsel %vm1785, %v1888, %v1889
        %v1891 = vrot.slane %v1749, 6
        %v1892 = vrot.slane %v1891, 4
        %v1893 = vrot.slane %v1072, 6
        %v1894 = vsel %vm1785, %v1892, %v1893
        %v1895 = vrot.slane %v1893, 4
        %v1896 = vrot.slane %v1750, 6
        %v1897 = vsel %vm1785, %v1895, %v1896
        %s1898 = scalar_lea.vmem [#allocation8], 128
        %v1899 = vld [vmem:[%s1898] sm:$0xf]
        %v1900 = vld [vmem:[%s1898 + $0x4] sm:$0xf]
        %v1901 = vld [vmem:[%s1898 + $0x8] sm:$0xf]
        %v1902 = vld [vmem:[%s1898 + $0xc] sm:$0xf]
        %v1903 = vld [vmem:[%s1898 + $0x10] sm:$0xf]
        %v1904 = vld [vmem:[%s1898 + $0x14] sm:$0xf]
        %v1905 = vld [vmem:[%s1898 + $0x18] sm:$0xf]
        %v1906 = vld [vmem:[%s1898 + $0x1c] sm:$0xf]
        %v1907 = vld [vmem:[%s1898 + $0x20] sm:$0xf]
        %v1908 = vld [vmem:[%s1898 + $0x24] sm:$0xf]
        %v1909 = vld [vmem:[%s1898 + $0x28] sm:$0xf]
        %v1910 = vld [vmem:[%s1898 + $0x2c] sm:$0xf]
        %v1911 = vld [vmem:[%s1898 + $0x30] sm:$0xf]
        %v1912 = vld [vmem:[%s1898 + $0x34] sm:$0xf]
        %v1913 = vld [vmem:[%s1898 + $0x38] sm:$0xf]
        %v1914 = vld [vmem:[%s1898 + $0x3c] sm:$0xf]
        %v1915 = vunpack.c.l.b16 %v1789
        %v1916 = vunpack.c.l.b16 %v1792
        %v1917 = vunpack.c.l.b16 %v1796
        %v1918 = vunpack.c.l.b16 %v1799
        %v1919 = vunpack.c.l.b16 %v1803
        %v1920 = vunpack.c.l.b16 %v1806
        %v1921 = vunpack.c.l.b16 %v1810
        %v1922 = vunpack.c.l.b16 %v1813
        %v1923 = vunpack.c.l.b16 %v1817
        %v1924 = vunpack.c.l.b16 %v1820
        %v1925 = vunpack.c.l.b16 %v1824
        %v1926 = vunpack.c.l.b16 %v1827
        %v1927 = vunpack.c.l.b16 %v1831
        %v1928 = vunpack.c.l.b16 %v1834
        %v1929 = vunpack.c.l.b16 %v1838
        %v1930 = vunpack.c.l.b16 %v1841
        %v1931 = vunpack.c.l.b16 %v1845
        %v1932 = vunpack.c.l.b16 %v1848
        %v1933 = vunpack.c.l.b16 %v1852
        %v1934 = vunpack.c.l.b16 %v1855
        %v1935 = vunpack.c.l.b16 %v1859
        %v1936 = vunpack.c.l.b16 %v1862
        %v1937 = vunpack.c.l.b16 %v1866
        %v1938 = vunpack.c.l.b16 %v1869
        %v1939 = vunpack.c.l.b16 %v1873
        %v1940 = vunpack.c.l.b16 %v1876
        %v1941 = vunpack.c.l.b16 %v1880
        %v1942 = vunpack.c.l.b16 %v1883
        %v1943 = vunpack.c.l.b16 %v1887
        %v1944 = vunpack.c.l.b16 %v1890
        %v1945 = vunpack.c.l.b16 %v1894
        %v1946 = vunpack.c.l.b16 %v1897
        %v1947 = vpack.c.b16 %v1916, %v1915
        %v1948 = vpack.c.b16 %v1918, %v1917
        %v1949 = vpack.c.b16 %v1920, %v1919
        %v1950 = vpack.c.b16 %v1922, %v1921
        %v1951 = vpack.c.b16 %v1924, %v1923
        %v1952 = vpack.c.b16 %v1926, %v1925
        %v1953 = vpack.c.b16 %v1928, %v1927
        %v1954 = vpack.c.b16 %v1930, %v1929
        %v1955 = vpack.c.b16 %v1932, %v1931
        %v1956 = vpack.c.b16 %v1934, %v1933
        %v1957 = vpack.c.b16 %v1936, %v1935
        %v1958 = vpack.c.b16 %v1938, %v1937
        %v1959 = vpack.c.b16 %v1940, %v1939
        %v1960 = vpack.c.b16 %v1942, %v1941
        %v1961 = vpack.c.b16 %v1944, %v1943
        %v1962 = vpack.c.b16 %v1946, %v1945
        %v1995 = vunpack.c.l.b16 %v1899
        %v1996 = vunpack.c.l.b16 %v1900
        %v1997 = vunpack.c.l.b16 %v1901
        %v1998 = vunpack.c.l.b16 %v1902
        %v1999 = vunpack.c.l.b16 %v1903
        %v2000 = vunpack.c.l.b16 %v1904
        %v2001 = vunpack.c.l.b16 %v1905
        %v2002 = vunpack.c.l.b16 %v1906
        %v2003 = vunpack.c.l.b16 %v1907
        %v2004 = vunpack.c.l.b16 %v1908
        %v2005 = vunpack.c.l.b16 %v1909
        %v2006 = vunpack.c.l.b16 %v1910
        %v2007 = vunpack.c.l.b16 %v1911
        %v2008 = vunpack.c.l.b16 %v1912
        %v2009 = vunpack.c.l.b16 %v1913
        %v2010 = vunpack.c.l.b16 %v1914
        %v2011 = vpack.c.b16 %v1996, %v1995
        %v2012 = vpack.c.b16 %v1998, %v1997
        %v2013 = vpack.c.b16 %v2000, %v1999
        %v2014 = vpack.c.b16 %v2002, %v2001
        %v2015 = vpack.c.b16 %v2004, %v2003
        %v2016 = vpack.c.b16 %v2006, %v2005
        %v2017 = vpack.c.b16 %v2008, %v2007
        %v2018 = vpack.c.b16 %v2010, %v2009
        %2027 = vmatpush.bf16.msra.mxu0 %v2018
        %2028 = vmatpush.bf16.msra.mxu0 %v2017
        %2029 = vmatpush.bf16.msra.mxu0 %v2016
        %2030 = vmatpush.bf16.msra.mxu0 %v2015
        %2031 = vmatpush.bf16.msra.mxu0 %v2014
        %2032 = vmatpush.bf16.msra.mxu0 %v2013
        %2033 = vmatpush.bf16.msra.mxu0 %v2012
        %2034 = vmatpush.bf16.msra.mxu0 %v2011
        %2035 = vmatmul.bf16.gmra.mxu0 %v1947
        %v2036 = vpop.f32.mrf.mxu0
        %v2037 = vadd.f32 0.0, %v2036
        %v2038 = vpop.f32.mrf.mxu0
        %v2039 = vadd.f32 0.0, %v2038
        %2040 = vmatmul.bf16.gmra.mxu0 %v1948
        %v2041 = vpop.f32.mrf.mxu0
        %v2042 = vadd.f32 0.0, %v2041
        %v2043 = vpop.f32.mrf.mxu0
        %v2044 = vadd.f32 0.0, %v2043
        %2045 = vmatmul.bf16.gmra.mxu0 %v1949
        %v2046 = vpop.f32.mrf.mxu0
        %v2047 = vadd.f32 0.0, %v2046
        %v2048 = vpop.f32.mrf.mxu0
        %v2049 = vadd.f32 0.0, %v2048
        %2050 = vmatmul.bf16.gmra.mxu0 %v1950
        %v2051 = vpop.f32.mrf.mxu0
        %v2052 = vadd.f32 0.0, %v2051
        %v2053 = vpop.f32.mrf.mxu0
        %v2054 = vadd.f32 0.0, %v2053
        %2055 = vmatmul.bf16.gmra.mxu0 %v1951
        %v2056 = vpop.f32.mrf.mxu0
        %v2057 = vadd.f32 0.0, %v2056
        %v2058 = vpop.f32.mrf.mxu0
        %v2059 = vadd.f32 0.0, %v2058
        %2060 = vmatmul.bf16.gmra.mxu0 %v1952
        %v2061 = vpop.f32.mrf.mxu0
        %v2062 = vadd.f32 0.0, %v2061
        %v2063 = vpop.f32.mrf.mxu0
        %v2064 = vadd.f32 0.0, %v2063
        %2065 = vmatmul.bf16.gmra.mxu0 %v1953
        %v2066 = vpop.f32.mrf.mxu0
        %v2067 = vadd.f32 0.0, %v2066
        %v2068 = vpop.f32.mrf.mxu0
        %v2069 = vadd.f32 0.0, %v2068
        %2070 = vmatmul.bf16.gmra.mxu0 %v1954
        %v2071 = vpop.f32.mrf.mxu0
        %v2072 = vadd.f32 0.0, %v2071
        %v2073 = vpop.f32.mrf.mxu0
        %v2074 = vadd.f32 0.0, %v2073
        %2075 = vmatmul.bf16.gmra.mxu0 %v1955
        %v2076 = vpop.f32.mrf.mxu0
        %v2077 = vadd.f32 0.0, %v2076
        %v2078 = vpop.f32.mrf.mxu0
        %v2079 = vadd.f32 0.0, %v2078
        %2080 = vmatmul.bf16.gmra.mxu0 %v1956
        %v2081 = vpop.f32.mrf.mxu0
        %v2082 = vadd.f32 0.0, %v2081
        %v2083 = vpop.f32.mrf.mxu0
        %v2084 = vadd.f32 0.0, %v2083
        %2085 = vmatmul.bf16.gmra.mxu0 %v1957
        %v2086 = vpop.f32.mrf.mxu0
        %v2087 = vadd.f32 0.0, %v2086
        %v2088 = vpop.f32.mrf.mxu0
        %v2089 = vadd.f32 0.0, %v2088
        %2090 = vmatmul.bf16.gmra.mxu0 %v1958
        %v2091 = vpop.f32.mrf.mxu0
        %v2092 = vadd.f32 0.0, %v2091
        %v2093 = vpop.f32.mrf.mxu0
        %v2094 = vadd.f32 0.0, %v2093
        %2095 = vmatmul.bf16.gmra.mxu0 %v1959
        %v2096 = vpop.f32.mrf.mxu0
        %v2097 = vadd.f32 0.0, %v2096
        %v2098 = vpop.f32.mrf.mxu0
        %v2099 = vadd.f32 0.0, %v2098
        %2100 = vmatmul.bf16.gmra.mxu0 %v1960
        %v2101 = vpop.f32.mrf.mxu0
        %v2102 = vadd.f32 0.0, %v2101
        %v2103 = vpop.f32.mrf.mxu0
        %v2104 = vadd.f32 0.0, %v2103
        %2105 = vmatmul.bf16.gmra.mxu0 %v1961
        %v2106 = vpop.f32.mrf.mxu0
        %v2107 = vadd.f32 0.0, %v2106
        %v2108 = vpop.f32.mrf.mxu0
        %v2109 = vadd.f32 0.0, %v2108
        %2110 = vmatmul.bf16.gmra.mxu0 %v1962
        %v2111 = vpop.f32.mrf.mxu0
        %v2112 = vadd.f32 0.0, %v2111
        %v2113 = vpop.f32.mrf.mxu0
        %v2114 = vadd.f32 0.0, %v2113
        %2115 = vdwg.mxu0
        %v2116 = vadd.f32 %v1640, %v2037
        %v2117 = vadd.f32 %v1642, %v2039
        %v2118 = vadd.f32 %v1645, %v2042
        %v2119 = vadd.f32 %v1647, %v2044
        %v2120 = vadd.f32 %v1650, %v2047
        %v2121 = vadd.f32 %v1652, %v2049
        %v2122 = vadd.f32 %v1655, %v2052
        %v2123 = vadd.f32 %v1657, %v2054
        %v2124 = vadd.f32 %v1660, %v2057
        %v2125 = vadd.f32 %v1662, %v2059
        %v2126 = vadd.f32 %v1665, %v2062
        %v2127 = vadd.f32 %v1667, %v2064
        %v2128 = vadd.f32 %v1670, %v2067
        %v2129 = vadd.f32 %v1672, %v2069
        %v2130 = vadd.f32 %v1675, %v2072
        %v2131 = vadd.f32 %v1677, %v2074
        %v2132 = vadd.f32 %v1680, %v2077
        %v2133 = vadd.f32 %v1682, %v2079
        %v2134 = vadd.f32 %v1685, %v2082
        %v2135 = vadd.f32 %v1687, %v2084
        %v2136 = vadd.f32 %v1690, %v2087
        %v2137 = vadd.f32 %v1692, %v2089
        %v2138 = vadd.f32 %v1695, %v2092
        %v2139 = vadd.f32 %v1697, %v2094
        %v2140 = vadd.f32 %v1700, %v2097
        %v2141 = vadd.f32 %v1702, %v2099
        %v2142 = vadd.f32 %v1705, %v2102
        %v2143 = vadd.f32 %v1707, %v2104
        %v2144 = vadd.f32 %v1710, %v2107
        %v2145 = vadd.f32 %v1712, %v2109
        %v2146 = vadd.f32 %v1715, %v2112
        %v2147 = vadd.f32 %v1717, %v2114
        %v2148 = vld [vmem:[%s992] sm:$0xf]
        %v2149 = vld [vmem:[%s992 + $0x4] sm:$0xf]
        %v2150 = vld [vmem:[%s992 + $0xc] sm:$0xf]
        %v2151 = vld [vmem:[%s992 + $0x10] sm:$0xf]
        %v2152 = vld [vmem:[%s992 + $0x18] sm:$0xf]
        %v2153 = vld [vmem:[%s992 + $0x1c] sm:$0xf]
        %v2154 = vld [vmem:[%s992 + $0x24] sm:$0xf]
        %v2155 = vld [vmem:[%s992 + $0x28] sm:$0xf]
        %v2156 = vld [vmem:[%s992 + $0x30] sm:$0xf]
        %v2157 = vld [vmem:[%s992 + $0x34] sm:$0xf]
        %v2158 = vld [vmem:[%s992 + $0x3c] sm:$0xf]
        %v2159 = vld [vmem:[%s992 + $0x40] sm:$0xf]
        %v2160 = vld [vmem:[%s992 + $0x48] sm:$0xf]
        %v2161 = vld [vmem:[%s992 + $0x4c] sm:$0xf]
        %v2162 = vld [vmem:[%s992 + $0x54] sm:$0xf]
        %v2163 = vld [vmem:[%s992 + $0x58] sm:$0xf]
        %v2164 = vld [vmem:[%s992 + $0x60] sm:$0xf]
        %v2165 = vld [vmem:[%s992 + $0x64] sm:$0xf]
        %v2166 = vld [vmem:[%s992 + $0x6c] sm:$0xf]
        %v2167 = vld [vmem:[%s992 + $0x70] sm:$0xf]
        %v2168 = vld [vmem:[%s992 + $0x78] sm:$0xf]
        %v2169 = vld [vmem:[%s992 + $0x7c] sm:$0xf]
        %v2170 = vld [vmem:[%s992 + $0x84] sm:$0xf]
        %v2171 = vld [vmem:[%s992 + $0x88] sm:$0xf]
        %v2172 = vld [vmem:[%s992 + $0x90] sm:$0xf]
        %v2173 = vld [vmem:[%s992 + $0x94] sm:$0xf]
        %v2174 = vld [vmem:[%s992 + $0x9c] sm:$0xf]
        %v2175 = vld [vmem:[%s992 + $0xa0] sm:$0xf]
        %v2176 = vld [vmem:[%s992 + $0xa8] sm:$0xf]
        %v2177 = vld [vmem:[%s992 + $0xac] sm:$0xf]
        %v2178 = vld [vmem:[%s992 + $0xb4] sm:$0xf]
        %v2179 = vld [vmem:[%s992 + $0xb8] sm:$0xf]
        %s2180 = scalar_lea.vmem [#allocation8], 192
        %v2181 = vld [vmem:[%s2180] sm:$0xf]
        %v2182 = vld [vmem:[%s2180 + $0x4] sm:$0xf]
        %v2183 = vld [vmem:[%s2180 + $0x8] sm:$0xf]
        %v2184 = vld [vmem:[%s2180 + $0xc] sm:$0xf]
        %v2185 = vld [vmem:[%s2180 + $0x10] sm:$0xf]
        %v2186 = vld [vmem:[%s2180 + $0x14] sm:$0xf]
        %v2187 = vld [vmem:[%s2180 + $0x18] sm:$0xf]
        %v2188 = vld [vmem:[%s2180 + $0x1c] sm:$0xf]
        %v2189 = vld [vmem:[%s2180 + $0x20] sm:$0xf]
        %v2190 = vld [vmem:[%s2180 + $0x24] sm:$0xf]
        %v2191 = vld [vmem:[%s2180 + $0x28] sm:$0xf]
        %v2192 = vld [vmem:[%s2180 + $0x2c] sm:$0xf]
        %v2193 = vld [vmem:[%s2180 + $0x30] sm:$0xf]
        %v2194 = vld [vmem:[%s2180 + $0x34] sm:$0xf]
        %v2195 = vld [vmem:[%s2180 + $0x38] sm:$0xf]
        %v2196 = vld [vmem:[%s2180 + $0x3c] sm:$0xf]
        %v2229 = vunpack.c.l.b16 %v2148
        %v2230 = vunpack.c.l.b16 %v2149
        %v2231 = vunpack.c.l.b16 %v2150
        %v2232 = vunpack.c.l.b16 %v2151
        %v2233 = vunpack.c.l.b16 %v2152
        %v2234 = vunpack.c.l.b16 %v2153
        %v2235 = vunpack.c.l.b16 %v2154
        %v2236 = vunpack.c.l.b16 %v2155
        %v2237 = vunpack.c.l.b16 %v2156
        %v2238 = vunpack.c.l.b16 %v2157
        %v2239 = vunpack.c.l.b16 %v2158
        %v2240 = vunpack.c.l.b16 %v2159
        %v2241 = vunpack.c.l.b16 %v2160
        %v2242 = vunpack.c.l.b16 %v2161
        %v2243 = vunpack.c.l.b16 %v2162
        %v2244 = vunpack.c.l.b16 %v2163
        %v2245 = vunpack.c.l.b16 %v2164
        %v2246 = vunpack.c.l.b16 %v2165
        %v2247 = vunpack.c.l.b16 %v2166
        %v2248 = vunpack.c.l.b16 %v2167
        %v2249 = vunpack.c.l.b16 %v2168
        %v2250 = vunpack.c.l.b16 %v2169
        %v2251 = vunpack.c.l.b16 %v2170
        %v2252 = vunpack.c.l.b16 %v2171
        %v2253 = vunpack.c.l.b16 %v2172
        %v2254 = vunpack.c.l.b16 %v2173
        %v2255 = vunpack.c.l.b16 %v2174
        %v2256 = vunpack.c.l.b16 %v2175
        %v2257 = vunpack.c.l.b16 %v2176
        %v2258 = vunpack.c.l.b16 %v2177
        %v2259 = vunpack.c.l.b16 %v2178
        %v2260 = vunpack.c.l.b16 %v2179
        %v2261 = vpack.c.b16 %v2230, %v2229
        %v2262 = vpack.c.b16 %v2232, %v2231
        %v2263 = vpack.c.b16 %v2234, %v2233
        %v2264 = vpack.c.b16 %v2236, %v2235
        %v2265 = vpack.c.b16 %v2238, %v2237
        %v2266 = vpack.c.b16 %v2240, %v2239
        %v2267 = vpack.c.b16 %v2242, %v2241
        %v2268 = vpack.c.b16 %v2244, %v2243
        %v2269 = vpack.c.b16 %v2246, %v2245
        %v2270 = vpack.c.b16 %v2248, %v2247
        %v2271 = vpack.c.b16 %v2250, %v2249
        %v2272 = vpack.c.b16 %v2252, %v2251
        %v2273 = vpack.c.b16 %v2254, %v2253
        %v2274 = vpack.c.b16 %v2256, %v2255
        %v2275 = vpack.c.b16 %v2258, %v2257
        %v2276 = vpack.c.b16 %v2260, %v2259
        %v2309 = vunpack.c.l.b16 %v2181
        %v2310 = vunpack.c.l.b16 %v2182
        %v2311 = vunpack.c.l.b16 %v2183
        %v2312 = vunpack.c.l.b16 %v2184
        %v2313 = vunpack.c.l.b16 %v2185
        %v2314 = vunpack.c.l.b16 %v2186
        %v2315 = vunpack.c.l.b16 %v2187
        %v2316 = vunpack.c.l.b16 %v2188
        %v2317 = vunpack.c.l.b16 %v2189
        %v2318 = vunpack.c.l.b16 %v2190
        %v2319 = vunpack.c.l.b16 %v2191
        %v2320 = vunpack.c.l.b16 %v2192
        %v2321 = vunpack.c.l.b16 %v2193
        %v2322 = vunpack.c.l.b16 %v2194
        %v2323 = vunpack.c.l.b16 %v2195
        %v2324 = vunpack.c.l.b16 %v2196
        %v2325 = vpack.c.b16 %v2310, %v2309
        %v2326 = vpack.c.b16 %v2312, %v2311
        %v2327 = vpack.c.b16 %v2314, %v2313
        %v2328 = vpack.c.b16 %v2316, %v2315
        %v2329 = vpack.c.b16 %v2318, %v2317
        %v2330 = vpack.c.b16 %v2320, %v2319
        %v2331 = vpack.c.b16 %v2322, %v2321
        %v2332 = vpack.c.b16 %v2324, %v2323
        %2341 = vmatpush.bf16.msra.mxu0 %v2332
        %2342 = vmatpush.bf16.msra.mxu0 %v2331
        %2343 = vmatpush.bf16.msra.mxu0 %v2330
        %2344 = vmatpush.bf16.msra.mxu0 %v2329
        %2345 = vmatpush.bf16.msra.mxu0 %v2328
        %2346 = vmatpush.bf16.msra.mxu0 %v2327
        %2347 = vmatpush.bf16.msra.mxu0 %v2326
        %2348 = vmatpush.bf16.msra.mxu0 %v2325
        %2349 = vmatmul.bf16.gmra.mxu0 %v2261
        %v2350 = vpop.f32.mrf.mxu0
        %v2351 = vadd.f32 0.0, %v2350
        %v2352 = vpop.f32.mrf.mxu0
        %v2353 = vadd.f32 0.0, %v2352
        %2354 = vmatmul.bf16.gmra.mxu0 %v2262
        %v2355 = vpop.f32.mrf.mxu0
        %v2356 = vadd.f32 0.0, %v2355
        %v2357 = vpop.f32.mrf.mxu0
        %v2358 = vadd.f32 0.0, %v2357
        %2359 = vmatmul.bf16.gmra.mxu0 %v2263
        %v2360 = vpop.f32.mrf.mxu0
        %v2361 = vadd.f32 0.0, %v2360
        %v2362 = vpop.f32.mrf.mxu0
        %v2363 = vadd.f32 0.0, %v2362
        %2364 = vmatmul.bf16.gmra.mxu0 %v2264
        %v2365 = vpop.f32.mrf.mxu0
        %v2366 = vadd.f32 0.0, %v2365
        %v2367 = vpop.f32.mrf.mxu0
        %v2368 = vadd.f32 0.0, %v2367
        %2369 = vmatmul.bf16.gmra.mxu0 %v2265
        %v2370 = vpop.f32.mrf.mxu0
        %v2371 = vadd.f32 0.0, %v2370
        %v2372 = vpop.f32.mrf.mxu0
        %v2373 = vadd.f32 0.0, %v2372
        %2374 = vmatmul.bf16.gmra.mxu0 %v2266
        %v2375 = vpop.f32.mrf.mxu0
        %v2376 = vadd.f32 0.0, %v2375
        %v2377 = vpop.f32.mrf.mxu0
        %v2378 = vadd.f32 0.0, %v2377
        %2379 = vmatmul.bf16.gmra.mxu0 %v2267
        %v2380 = vpop.f32.mrf.mxu0
        %v2381 = vadd.f32 0.0, %v2380
        %v2382 = vpop.f32.mrf.mxu0
        %v2383 = vadd.f32 0.0, %v2382
        %2384 = vmatmul.bf16.gmra.mxu0 %v2268
        %v2385 = vpop.f32.mrf.mxu0
        %v2386 = vadd.f32 0.0, %v2385
        %v2387 = vpop.f32.mrf.mxu0
        %v2388 = vadd.f32 0.0, %v2387
        %2389 = vmatmul.bf16.gmra.mxu0 %v2269
        %v2390 = vpop.f32.mrf.mxu0
        %v2391 = vadd.f32 0.0, %v2390
        %v2392 = vpop.f32.mrf.mxu0
        %v2393 = vadd.f32 0.0, %v2392
        %2394 = vmatmul.bf16.gmra.mxu0 %v2270
        %v2395 = vpop.f32.mrf.mxu0
        %v2396 = vadd.f32 0.0, %v2395
        %v2397 = vpop.f32.mrf.mxu0
        %v2398 = vadd.f32 0.0, %v2397
        %2399 = vmatmul.bf16.gmra.mxu0 %v2271
        %v2400 = vpop.f32.mrf.mxu0
        %v2401 = vadd.f32 0.0, %v2400
        %v2402 = vpop.f32.mrf.mxu0
        %v2403 = vadd.f32 0.0, %v2402
        %2404 = vmatmul.bf16.gmra.mxu0 %v2272
        %v2405 = vpop.f32.mrf.mxu0
        %v2406 = vadd.f32 0.0, %v2405
        %v2407 = vpop.f32.mrf.mxu0
        %v2408 = vadd.f32 0.0, %v2407
        %2409 = vmatmul.bf16.gmra.mxu0 %v2273
        %v2410 = vpop.f32.mrf.mxu0
        %v2411 = vadd.f32 0.0, %v2410
        %v2412 = vpop.f32.mrf.mxu0
        %v2413 = vadd.f32 0.0, %v2412
        %2414 = vmatmul.bf16.gmra.mxu0 %v2274
        %v2415 = vpop.f32.mrf.mxu0
        %v2416 = vadd.f32 0.0, %v2415
        %v2417 = vpop.f32.mrf.mxu0
        %v2418 = vadd.f32 0.0, %v2417
        %2419 = vmatmul.bf16.gmra.mxu0 %v2275
        %v2420 = vpop.f32.mrf.mxu0
        %v2421 = vadd.f32 0.0, %v2420
        %v2422 = vpop.f32.mrf.mxu0
        %v2423 = vadd.f32 0.0, %v2422
        %2424 = vmatmul.bf16.gmra.mxu0 %v2276
        %v2425 = vpop.f32.mrf.mxu0
        %v2426 = vadd.f32 0.0, %v2425
        %v2427 = vpop.f32.mrf.mxu0
        %v2428 = vadd.f32 0.0, %v2427
        %2429 = vdwg.mxu0
        %v2430 = vadd.f32 %v2116, %v2351
        %v2431 = vadd.f32 %v2117, %v2353
        %v2432 = vadd.f32 %v2118, %v2356
        %v2433 = vadd.f32 %v2119, %v2358
        %v2434 = vadd.f32 %v2120, %v2361
        %v2435 = vadd.f32 %v2121, %v2363
        %v2436 = vadd.f32 %v2122, %v2366
        %v2437 = vadd.f32 %v2123, %v2368
        %v2438 = vadd.f32 %v2124, %v2371
        %v2439 = vadd.f32 %v2125, %v2373
        %v2440 = vadd.f32 %v2126, %v2376
        %v2441 = vadd.f32 %v2127, %v2378
        %v2442 = vadd.f32 %v2128, %v2381
        %v2443 = vadd.f32 %v2129, %v2383
        %v2444 = vadd.f32 %v2130, %v2386
        %v2445 = vadd.f32 %v2131, %v2388
        %v2446 = vadd.f32 %v2132, %v2391
        %v2447 = vadd.f32 %v2133, %v2393
        %v2448 = vadd.f32 %v2134, %v2396
        %v2449 = vadd.f32 %v2135, %v2398
        %v2450 = vadd.f32 %v2136, %v2401
        %v2451 = vadd.f32 %v2137, %v2403
        %v2452 = vadd.f32 %v2138, %v2406
        %v2453 = vadd.f32 %v2139, %v2408
        %v2454 = vadd.f32 %v2140, %v2411
        %v2455 = vadd.f32 %v2141, %v2413
        %v2456 = vadd.f32 %v2142, %v2416
        %v2457 = vadd.f32 %v2143, %v2418
        %v2458 = vadd.f32 %v2144, %v2421
        %v2459 = vadd.f32 %v2145, %v2423
        %v2460 = vadd.f32 %v2146, %v2426
        %v2461 = vadd.f32 %v2147, %v2428
        %v2462 = vld [vmem:[%s992] sm:$0xe]
        %v2463 = vld [vmem:[%s992 + $0x4] sm:$0xf]
        %v2464 = vld [vmem:[%s992 + $0x8] sm:$0x1]
        %v2465 = vld [vmem:[%s992 + $0xc] sm:$0xe]
        %v2466 = vld [vmem:[%s992 + $0x10] sm:$0xf]
        %v2467 = vld [vmem:[%s992 + $0x14] sm:$0x1]
        %v2468 = vld [vmem:[%s992 + $0x18] sm:$0xe]
        %v2469 = vld [vmem:[%s992 + $0x1c] sm:$0xf]
        %v2470 = vld [vmem:[%s992 + $0x20] sm:$0x1]
        %v2471 = vld [vmem:[%s992 + $0x24] sm:$0xe]
        %v2472 = vld [vmem:[%s992 + $0x28] sm:$0xf]
        %v2473 = vld [vmem:[%s992 + $0x2c] sm:$0x1]
        %v2474 = vld [vmem:[%s992 + $0x30] sm:$0xe]
        %v2475 = vld [vmem:[%s992 + $0x34] sm:$0xf]
        %v2476 = vld [vmem:[%s992 + $0x38] sm:$0x1]
        %v2477 = vld [vmem:[%s992 + $0x3c] sm:$0xe]
        %v2478 = vld [vmem:[%s992 + $0x40] sm:$0xf]
        %v2479 = vld [vmem:[%s992 + $0x44] sm:$0x1]
        %v2480 = vld [vmem:[%s992 + $0x48] sm:$0xe]
        %v2481 = vld [vmem:[%s992 + $0x4c] sm:$0xf]
        %v2482 = vld [vmem:[%s992 + $0x50] sm:$0x1]
        %v2483 = vld [vmem:[%s992 + $0x54] sm:$0xe]
        %v2484 = vld [vmem:[%s992 + $0x58] sm:$0xf]
        %v2485 = vld [vmem:[%s992 + $0x5c] sm:$0x1]
        %v2486 = vld [vmem:[%s992 + $0x60] sm:$0xe]
        %v2487 = vld [vmem:[%s992 + $0x64] sm:$0xf]
        %v2488 = vld [vmem:[%s992 + $0x68] sm:$0x1]
        %v2489 = vld [vmem:[%s992 + $0x6c] sm:$0xe]
        %v2490 = vld [vmem:[%s992 + $0x70] sm:$0xf]
        %v2491 = vld [vmem:[%s992 + $0x74] sm:$0x1]
        %v2492 = vld [vmem:[%s992 + $0x78] sm:$0xe]
        %v2493 = vld [vmem:[%s992 + $0x7c] sm:$0xf]
        %v2494 = vld [vmem:[%s992 + $0x80] sm:$0x1]
        %v2495 = vld [vmem:[%s992 + $0x84] sm:$0xe]
        %v2496 = vld [vmem:[%s992 + $0x88] sm:$0xf]
        %v2497 = vld [vmem:[%s992 + $0x8c] sm:$0x1]
        %v2498 = vld [vmem:[%s992 + $0x90] sm:$0xe]
        %v2499 = vld [vmem:[%s992 + $0x94] sm:$0xf]
        %v2500 = vld [vmem:[%s992 + $0x98] sm:$0x1]
        %v2501 = vld [vmem:[%s992 + $0x9c] sm:$0xe]
        %v2502 = vld [vmem:[%s992 + $0xa0] sm:$0xf]
        %v2503 = vld [vmem:[%s992 + $0xa4] sm:$0x1]
        %v2504 = vld [vmem:[%s992 + $0xa8] sm:$0xe]
        %v2505 = vld [vmem:[%s992 + $0xac] sm:$0xf]
        %v2506 = vld [vmem:[%s992 + $0xb0] sm:$0x1]
        %v2507 = vld [vmem:[%s992 + $0xb4] sm:$0xe]
        %v2508 = vld [vmem:[%s992 + $0xb8] sm:$0xf]
        %v2509 = vld [vmem:[%s992 + $0xbc] sm:$0x1]
        %v2558 = vrot.slane %v2462, 5
        %v2559 = vrot.slane %v2558, 4
        %v2560 = vrot.slane %v2463, 5
        %v2561 = vsel %vm1171, %v2559, %v2560
        %v2562 = vrot.slane %v2560, 4
        %v2563 = vrot.slane %v2464, 5
        %v2564 = vsel %vm1171, %v2562, %v2563
        %v2565 = vrot.slane %v2465, 5
        %v2566 = vrot.slane %v2565, 4
        %v2567 = vrot.slane %v2466, 5
        %v2568 = vsel %vm1171, %v2566, %v2567
        %v2569 = vrot.slane %v2567, 4
        %v2570 = vrot.slane %v2467, 5
        %v2571 = vsel %vm1171, %v2569, %v2570
        %v2572 = vrot.slane %v2468, 5
        %v2573 = vrot.slane %v2572, 4
        %v2574 = vrot.slane %v2469, 5
        %v2575 = vsel %vm1171, %v2573, %v2574
        %v2576 = vrot.slane %v2574, 4
        %v2577 = vrot.slane %v2470, 5
        %v2578 = vsel %vm1171, %v2576, %v2577
        %v2579 = vrot.slane %v2471, 5
        %v2580 = vrot.slane %v2579, 4
        %v2581 = vrot.slane %v2472, 5
        %v2582 = vsel %vm1171, %v2580, %v2581
        %v2583 = vrot.slane %v2581, 4
        %v2584 = vrot.slane %v2473, 5
        %v2585 = vsel %vm1171, %v2583, %v2584
        %v2586 = vrot.slane %v2474, 5
        %v2587 = vrot.slane %v2586, 4
        %v2588 = vrot.slane %v2475, 5
        %v2589 = vsel %vm1171, %v2587, %v2588
        %v2590 = vrot.slane %v2588, 4
        %v2591 = vrot.slane %v2476, 5
        %v2592 = vsel %vm1171, %v2590, %v2591
        %v2593 = vrot.slane %v2477, 5
        %v2594 = vrot.slane %v2593, 4
        %v2595 = vrot.slane %v2478, 5
        %v2596 = vsel %vm1171, %v2594, %v2595
        %v2597 = vrot.slane %v2595, 4
        %v2598 = vrot.slane %v2479, 5
        %v2599 = vsel %vm1171, %v2597, %v2598
        %v2600 = vrot.slane %v2480, 5
        %v2601 = vrot.slane %v2600, 4
        %v2602 = vrot.slane %v2481, 5
        %v2603 = vsel %vm1171, %v2601, %v2602
        %v2604 = vrot.slane %v2602, 4
        %v2605 = vrot.slane %v2482, 5
        %v2606 = vsel %vm1171, %v2604, %v2605
        %v2607 = vrot.slane %v2483, 5
        %v2608 = vrot.slane %v2607, 4
        %v2609 = vrot.slane %v2484, 5
        %v2610 = vsel %vm1171, %v2608, %v2609
        %v2611 = vrot.slane %v2609, 4
        %v2612 = vrot.slane %v2485, 5
        %v2613 = vsel %vm1171, %v2611, %v2612
        %v2614 = vrot.slane %v2486, 5
        %v2615 = vrot.slane %v2614, 4
        %v2616 = vrot.slane %v2487, 5
        %v2617 = vsel %vm1171, %v2615, %v2616
        %v2618 = vrot.slane %v2616, 4
        %v2619 = vrot.slane %v2488, 5
        %v2620 = vsel %vm1171, %v2618, %v2619
        %v2621 = vrot.slane %v2489, 5
        %v2622 = vrot.slane %v2621, 4
        %v2623 = vrot.slane %v2490, 5
        %v2624 = vsel %vm1171, %v2622, %v2623
        %v2625 = vrot.slane %v2623, 4
        %v2626 = vrot.slane %v2491, 5
        %v2627 = vsel %vm1171, %v2625, %v2626
        %v2628 = vrot.slane %v2492, 5
        %v2629 = vrot.slane %v2628, 4
        %v2630 = vrot.slane %v2493, 5
        %v2631 = vsel %vm1171, %v2629, %v2630
        %v2632 = vrot.slane %v2630, 4
        %v2633 = vrot.slane %v2494, 5
        %v2634 = vsel %vm1171, %v2632, %v2633
        %v2635 = vrot.slane %v2495, 5
        %v2636 = vrot.slane %v2635, 4
        %v2637 = vrot.slane %v2496, 5
        %v2638 = vsel %vm1171, %v2636, %v2637
        %v2639 = vrot.slane %v2637, 4
        %v2640 = vrot.slane %v2497, 5
        %v2641 = vsel %vm1171, %v2639, %v2640
        %v2642 = vrot.slane %v2498, 5
        %v2643 = vrot.slane %v2642, 4
        %v2644 = vrot.slane %v2499, 5
        %v2645 = vsel %vm1171, %v2643, %v2644
        %v2646 = vrot.slane %v2644, 4
        %v2647 = vrot.slane %v2500, 5
        %v2648 = vsel %vm1171, %v2646, %v2647
        %v2649 = vrot.slane %v2501, 5
        %v2650 = vrot.slane %v2649, 4
        %v2651 = vrot.slane %v2502, 5
        %v2652 = vsel %vm1171, %v2650, %v2651
        %v2653 = vrot.slane %v2651, 4
        %v2654 = vrot.slane %v2503, 5
        %v2655 = vsel %vm1171, %v2653, %v2654
        %v2656 = vrot.slane %v2504, 5
        %v2657 = vrot.slane %v2656, 4
        %v2658 = vrot.slane %v2505, 5
        %v2659 = vsel %vm1171, %v2657, %v2658
        %v2660 = vrot.slane %v2658, 4
        %v2661 = vrot.slane %v2506, 5
        %v2662 = vsel %vm1171, %v2660, %v2661
        %v2663 = vrot.slane %v2507, 5
        %v2664 = vrot.slane %v2663, 4
        %v2665 = vrot.slane %v2508, 5
        %v2666 = vsel %vm1171, %v2664, %v2665
        %v2667 = vrot.slane %v2665, 4
        %v2668 = vrot.slane %v2509, 5
        %v2669 = vsel %vm1171, %v2667, %v2668
        %s2670 = scalar_lea.vmem [#allocation8], 256
        %v2671 = vld [vmem:[%s2670] sm:$0xf]
        %v2672 = vld [vmem:[%s2670 + $0x4] sm:$0xf]
        %v2673 = vld [vmem:[%s2670 + $0x8] sm:$0xf]
        %v2674 = vld [vmem:[%s2670 + $0xc] sm:$0xf]
        %v2675 = vld [vmem:[%s2670 + $0x10] sm:$0xf]
        %v2676 = vld [vmem:[%s2670 + $0x14] sm:$0xf]
        %v2677 = vld [vmem:[%s2670 + $0x18] sm:$0xf]
        %v2678 = vld [vmem:[%s2670 + $0x1c] sm:$0xf]
        %v2679 = vld [vmem:[%s2670 + $0x20] sm:$0xf]
        %v2680 = vld [vmem:[%s2670 + $0x24] sm:$0xf]
        %v2681 = vld [vmem:[%s2670 + $0x28] sm:$0xf]
        %v2682 = vld [vmem:[%s2670 + $0x2c] sm:$0xf]
        %v2683 = vld [vmem:[%s2670 + $0x30] sm:$0xf]
        %v2684 = vld [vmem:[%s2670 + $0x34] sm:$0xf]
        %v2685 = vld [vmem:[%s2670 + $0x38] sm:$0xf]
        %v2686 = vld [vmem:[%s2670 + $0x3c] sm:$0xf]
        %v2687 = vunpack.c.l.b16 %v2561
        %v2688 = vunpack.c.l.b16 %v2564
        %v2689 = vunpack.c.l.b16 %v2568
        %v2690 = vunpack.c.l.b16 %v2571
        %v2691 = vunpack.c.l.b16 %v2575
        %v2692 = vunpack.c.l.b16 %v2578
        %v2693 = vunpack.c.l.b16 %v2582
        %v2694 = vunpack.c.l.b16 %v2585
        %v2695 = vunpack.c.l.b16 %v2589
        %v2696 = vunpack.c.l.b16 %v2592
        %v2697 = vunpack.c.l.b16 %v2596
        %v2698 = vunpack.c.l.b16 %v2599
        %v2699 = vunpack.c.l.b16 %v2603
        %v2700 = vunpack.c.l.b16 %v2606
        %v2701 = vunpack.c.l.b16 %v2610
        %v2702 = vunpack.c.l.b16 %v2613
        %v2703 = vunpack.c.l.b16 %v2617
        %v2704 = vunpack.c.l.b16 %v2620
        %v2705 = vunpack.c.l.b16 %v2624
        %v2706 = vunpack.c.l.b16 %v2627
        %v2707 = vunpack.c.l.b16 %v2631
        %v2708 = vunpack.c.l.b16 %v2634
        %v2709 = vunpack.c.l.b16 %v2638
        %v2710 = vunpack.c.l.b16 %v2641
        %v2711 = vunpack.c.l.b16 %v2645
        %v2712 = vunpack.c.l.b16 %v2648
        %v2713 = vunpack.c.l.b16 %v2652
        %v2714 = vunpack.c.l.b16 %v2655
        %v2715 = vunpack.c.l.b16 %v2659
        %v2716 = vunpack.c.l.b16 %v2662
        %v2717 = vunpack.c.l.b16 %v2666
        %v2718 = vunpack.c.l.b16 %v2669
        %v2719 = vpack.c.b16 %v2688, %v2687
        %v2720 = vpack.c.b16 %v2690, %v2689
        %v2721 = vpack.c.b16 %v2692, %v2691
        %v2722 = vpack.c.b16 %v2694, %v2693
        %v2723 = vpack.c.b16 %v2696, %v2695
        %v2724 = vpack.c.b16 %v2698, %v2697
        %v2725 = vpack.c.b16 %v2700, %v2699
        %v2726 = vpack.c.b16 %v2702, %v2701
        %v2727 = vpack.c.b16 %v2704, %v2703
        %v2728 = vpack.c.b16 %v2706, %v2705
        %v2729 = vpack.c.b16 %v2708, %v2707
        %v2730 = vpack.c.b16 %v2710, %v2709
        %v2731 = vpack.c.b16 %v2712, %v2711
        %v2732 = vpack.c.b16 %v2714, %v2713
        %v2733 = vpack.c.b16 %v2716, %v2715
        %v2734 = vpack.c.b16 %v2718, %v2717
        %v2767 = vunpack.c.l.b16 %v2671
        %v2768 = vunpack.c.l.b16 %v2672
        %v2769 = vunpack.c.l.b16 %v2673
        %v2770 = vunpack.c.l.b16 %v2674
        %v2771 = vunpack.c.l.b16 %v2675
        %v2772 = vunpack.c.l.b16 %v2676
        %v2773 = vunpack.c.l.b16 %v2677
        %v2774 = vunpack.c.l.b16 %v2678
        %v2775 = vunpack.c.l.b16 %v2679
        %v2776 = vunpack.c.l.b16 %v2680
        %v2777 = vunpack.c.l.b16 %v2681
        %v2778 = vunpack.c.l.b16 %v2682
        %v2779 = vunpack.c.l.b16 %v2683
        %v2780 = vunpack.c.l.b16 %v2684
        %v2781 = vunpack.c.l.b16 %v2685
        %v2782 = vunpack.c.l.b16 %v2686
        %v2783 = vpack.c.b16 %v2768, %v2767
        %v2784 = vpack.c.b16 %v2770, %v2769
        %v2785 = vpack.c.b16 %v2772, %v2771
        %v2786 = vpack.c.b16 %v2774, %v2773
        %v2787 = vpack.c.b16 %v2776, %v2775
        %v2788 = vpack.c.b16 %v2778, %v2777
        %v2789 = vpack.c.b16 %v2780, %v2779
        %v2790 = vpack.c.b16 %v2782, %v2781
        %2799 = vmatpush.bf16.msra.mxu0 %v2790
        %2800 = vmatpush.bf16.msra.mxu0 %v2789
        %2801 = vmatpush.bf16.msra.mxu0 %v2788
        %2802 = vmatpush.bf16.msra.mxu0 %v2787
        %2803 = vmatpush.bf16.msra.mxu0 %v2786
        %2804 = vmatpush.bf16.msra.mxu0 %v2785
        %2805 = vmatpush.bf16.msra.mxu0 %v2784
        %2806 = vmatpush.bf16.msra.mxu0 %v2783
        %2807 = vmatmul.bf16.gmra.mxu0 %v2719
        %v2808 = vpop.f32.mrf.mxu0
        %v2809 = vadd.f32 0.0, %v2808
        %v2810 = vpop.f32.mrf.mxu0
        %v2811 = vadd.f32 0.0, %v2810
        %2812 = vmatmul.bf16.gmra.mxu0 %v2720
        %v2813 = vpop.f32.mrf.mxu0
        %v2814 = vadd.f32 0.0, %v2813
        %v2815 = vpop.f32.mrf.mxu0
        %v2816 = vadd.f32 0.0, %v2815
        %2817 = vmatmul.bf16.gmra.mxu0 %v2721
        %v2818 = vpop.f32.mrf.mxu0
        %v2819 = vadd.f32 0.0, %v2818
        %v2820 = vpop.f32.mrf.mxu0
        %v2821 = vadd.f32 0.0, %v2820
        %2822 = vmatmul.bf16.gmra.mxu0 %v2722
        %v2823 = vpop.f32.mrf.mxu0
        %v2824 = vadd.f32 0.0, %v2823
        %v2825 = vpop.f32.mrf.mxu0
        %v2826 = vadd.f32 0.0, %v2825
        %2827 = vmatmul.bf16.gmra.mxu0 %v2723
        %v2828 = vpop.f32.mrf.mxu0
        %v2829 = vadd.f32 0.0, %v2828
        %v2830 = vpop.f32.mrf.mxu0
        %v2831 = vadd.f32 0.0, %v2830
        %2832 = vmatmul.bf16.gmra.mxu0 %v2724
        %v2833 = vpop.f32.mrf.mxu0
        %v2834 = vadd.f32 0.0, %v2833
        %v2835 = vpop.f32.mrf.mxu0
        %v2836 = vadd.f32 0.0, %v2835
        %2837 = vmatmul.bf16.gmra.mxu0 %v2725
        %v2838 = vpop.f32.mrf.mxu0
        %v2839 = vadd.f32 0.0, %v2838
        %v2840 = vpop.f32.mrf.mxu0
        %v2841 = vadd.f32 0.0, %v2840
        %2842 = vmatmul.bf16.gmra.mxu0 %v2726
        %v2843 = vpop.f32.mrf.mxu0
        %v2844 = vadd.f32 0.0, %v2843
        %v2845 = vpop.f32.mrf.mxu0
        %v2846 = vadd.f32 0.0, %v2845
        %2847 = vmatmul.bf16.gmra.mxu0 %v2727
        %v2848 = vpop.f32.mrf.mxu0
        %v2849 = vadd.f32 0.0, %v2848
        %v2850 = vpop.f32.mrf.mxu0
        %v2851 = vadd.f32 0.0, %v2850
        %2852 = vmatmul.bf16.gmra.mxu0 %v2728
        %v2853 = vpop.f32.mrf.mxu0
        %v2854 = vadd.f32 0.0, %v2853
        %v2855 = vpop.f32.mrf.mxu0
        %v2856 = vadd.f32 0.0, %v2855
        %2857 = vmatmul.bf16.gmra.mxu0 %v2729
        %v2858 = vpop.f32.mrf.mxu0
        %v2859 = vadd.f32 0.0, %v2858
        %v2860 = vpop.f32.mrf.mxu0
        %v2861 = vadd.f32 0.0, %v2860
        %2862 = vmatmul.bf16.gmra.mxu0 %v2730
        %v2863 = vpop.f32.mrf.mxu0
        %v2864 = vadd.f32 0.0, %v2863
        %v2865 = vpop.f32.mrf.mxu0
        %v2866 = vadd.f32 0.0, %v2865
        %2867 = vmatmul.bf16.gmra.mxu0 %v2731
        %v2868 = vpop.f32.mrf.mxu0
        %v2869 = vadd.f32 0.0, %v2868
        %v2870 = vpop.f32.mrf.mxu0
        %v2871 = vadd.f32 0.0, %v2870
        %2872 = vmatmul.bf16.gmra.mxu0 %v2732
        %v2873 = vpop.f32.mrf.mxu0
        %v2874 = vadd.f32 0.0, %v2873
        %v2875 = vpop.f32.mrf.mxu0
        %v2876 = vadd.f32 0.0, %v2875
        %2877 = vmatmul.bf16.gmra.mxu0 %v2733
        %v2878 = vpop.f32.mrf.mxu0
        %v2879 = vadd.f32 0.0, %v2878
        %v2880 = vpop.f32.mrf.mxu0
        %v2881 = vadd.f32 0.0, %v2880
        %2882 = vmatmul.bf16.gmra.mxu0 %v2734
        %v2883 = vpop.f32.mrf.mxu0
        %v2884 = vadd.f32 0.0, %v2883
        %v2885 = vpop.f32.mrf.mxu0
        %v2886 = vadd.f32 0.0, %v2885
        %2887 = vdwg.mxu0
        %v2888 = vadd.f32 %v2430, %v2809
        %v2889 = vadd.f32 %v2431, %v2811
        %v2890 = vadd.f32 %v2432, %v2814
        %v2891 = vadd.f32 %v2433, %v2816
        %v2892 = vadd.f32 %v2434, %v2819
        %v2893 = vadd.f32 %v2435, %v2821
        %v2894 = vadd.f32 %v2436, %v2824
        %v2895 = vadd.f32 %v2437, %v2826
        %v2896 = vadd.f32 %v2438, %v2829
        %v2897 = vadd.f32 %v2439, %v2831
        %v2898 = vadd.f32 %v2440, %v2834
        %v2899 = vadd.f32 %v2441, %v2836
        %v2900 = vadd.f32 %v2442, %v2839
        %v2901 = vadd.f32 %v2443, %v2841
        %v2902 = vadd.f32 %v2444, %v2844
        %v2903 = vadd.f32 %v2445, %v2846
        %v2904 = vadd.f32 %v2446, %v2849
        %v2905 = vadd.f32 %v2447, %v2851
        %v2906 = vadd.f32 %v2448, %v2854
        %v2907 = vadd.f32 %v2449, %v2856
        %v2908 = vadd.f32 %v2450, %v2859
        %v2909 = vadd.f32 %v2451, %v2861
        %v2910 = vadd.f32 %v2452, %v2864
        %v2911 = vadd.f32 %v2453, %v2866
        %v2912 = vadd.f32 %v2454, %v2869
        %v2913 = vadd.f32 %v2455, %v2871
        %v2914 = vadd.f32 %v2456, %v2874
        %v2915 = vadd.f32 %v2457, %v2876
        %v2916 = vadd.f32 %v2458, %v2879
        %v2917 = vadd.f32 %v2459, %v2881
        %v2918 = vadd.f32 %v2460, %v2884
        %v2919 = vadd.f32 %v2461, %v2886
        %v2920 = vld [vmem:[%s992] sm:$0xc]
        %v2921 = vld [vmem:[%s992 + $0x8] sm:$0x3]
        %v2922 = vld [vmem:[%s992 + $0xc] sm:$0xc]
        %v2923 = vld [vmem:[%s992 + $0x14] sm:$0x3]
        %v2924 = vld [vmem:[%s992 + $0x18] sm:$0xc]
        %v2925 = vld [vmem:[%s992 + $0x20] sm:$0x3]
        %v2926 = vld [vmem:[%s992 + $0x24] sm:$0xc]
        %v2927 = vld [vmem:[%s992 + $0x2c] sm:$0x3]
        %v2928 = vld [vmem:[%s992 + $0x30] sm:$0xc]
        %v2929 = vld [vmem:[%s992 + $0x38] sm:$0x3]
        %v2930 = vld [vmem:[%s992 + $0x3c] sm:$0xc]
        %v2931 = vld [vmem:[%s992 + $0x44] sm:$0x3]
        %v2932 = vld [vmem:[%s992 + $0x48] sm:$0xc]
        %v2933 = vld [vmem:[%s992 + $0x50] sm:$0x3]
        %v2934 = vld [vmem:[%s992 + $0x54] sm:$0xc]
        %v2935 = vld [vmem:[%s992 + $0x5c] sm:$0x3]
        %v2936 = vld [vmem:[%s992 + $0x60] sm:$0xc]
        %v2937 = vld [vmem:[%s992 + $0x68] sm:$0x3]
        %v2938 = vld [vmem:[%s992 + $0x6c] sm:$0xc]
        %v2939 = vld [vmem:[%s992 + $0x74] sm:$0x3]
        %v2940 = vld [vmem:[%s992 + $0x78] sm:$0xc]
        %v2941 = vld [vmem:[%s992 + $0x80] sm:$0x3]
        %v2942 = vld [vmem:[%s992 + $0x84] sm:$0xc]
        %v2943 = vld [vmem:[%s992 + $0x8c] sm:$0x3]
        %v2944 = vld [vmem:[%s992 + $0x90] sm:$0xc]
        %v2945 = vld [vmem:[%s992 + $0x98] sm:$0x3]
        %v2946 = vld [vmem:[%s992 + $0x9c] sm:$0xc]
        %v2947 = vld [vmem:[%s992 + $0xa4] sm:$0x3]
        %v2948 = vld [vmem:[%s992 + $0xa8] sm:$0xc]
        %v2949 = vld [vmem:[%s992 + $0xb0] sm:$0x3]
        %v2950 = vld [vmem:[%s992 + $0xb4] sm:$0xc]
        %v2951 = vld [vmem:[%s992 + $0xbc] sm:$0x3]
        %v2984 = vrot.slane %v2920, 6
        %v2985 = vrot.slane %v2984, 4
        %v2986 = vrot.slane %v2463, 6
        %v2987 = vsel %vm1785, %v2985, %v2986
        %v2988 = vrot.slane %v2986, 4
        %v2989 = vrot.slane %v2921, 6
        %v2990 = vsel %vm1785, %v2988, %v2989
        %v2991 = vrot.slane %v2922, 6
        %v2992 = vrot.slane %v2991, 4
        %v2993 = vrot.slane %v2466, 6
        %v2994 = vsel %vm1785, %v2992, %v2993
        %v2995 = vrot.slane %v2993, 4
        %v2996 = vrot.slane %v2923, 6
        %v2997 = vsel %vm1785, %v2995, %v2996
        %v2998 = vrot.slane %v2924, 6
        %v2999 = vrot.slane %v2998, 4
        %v3000 = vrot.slane %v2469, 6
        %v3001 = vsel %vm1785, %v2999, %v3000
        %v3002 = vrot.slane %v3000, 4
        %v3003 = vrot.slane %v2925, 6
        %v3004 = vsel %vm1785, %v3002, %v3003
        %v3005 = vrot.slane %v2926, 6
        %v3006 = vrot.slane %v3005, 4
        %v3007 = vrot.slane %v2472, 6
        %v3008 = vsel %vm1785, %v3006, %v3007
        %v3009 = vrot.slane %v3007, 4
        %v3010 = vrot.slane %v2927, 6
        %v3011 = vsel %vm1785, %v3009, %v3010
        %v3012 = vrot.slane %v2928, 6
        %v3013 = vrot.slane %v3012, 4
        %v3014 = vrot.slane %v2475, 6
        %v3015 = vsel %vm1785, %v3013, %v3014
        %v3016 = vrot.slane %v3014, 4
        %v3017 = vrot.slane %v2929, 6
        %v3018 = vsel %vm1785, %v3016, %v3017
        %v3019 = vrot.slane %v2930, 6
        %v3020 = vrot.slane %v3019, 4
        %v3021 = vrot.slane %v2478, 6
        %v3022 = vsel %vm1785, %v3020, %v3021
        %v3023 = vrot.slane %v3021, 4
        %v3024 = vrot.slane %v2931, 6
        %v3025 = vsel %vm1785, %v3023, %v3024
        %v3026 = vrot.slane %v2932, 6
        %v3027 = vrot.slane %v3026, 4
        %v3028 = vrot.slane %v2481, 6
        %v3029 = vsel %vm1785, %v3027, %v3028
        %v3030 = vrot.slane %v3028, 4
        %v3031 = vrot.slane %v2933, 6
        %v3032 = vsel %vm1785, %v3030, %v3031
        %v3033 = vrot.slane %v2934, 6
        %v3034 = vrot.slane %v3033, 4
        %v3035 = vrot.slane %v2484, 6
        %v3036 = vsel %vm1785, %v3034, %v3035
        %v3037 = vrot.slane %v3035, 4
        %v3038 = vrot.slane %v2935, 6
        %v3039 = vsel %vm1785, %v3037, %v3038
        %v3040 = vrot.slane %v2936, 6
        %v3041 = vrot.slane %v3040, 4
        %v3042 = vrot.slane %v2487, 6
        %v3043 = vsel %vm1785, %v3041, %v3042
        %v3044 = vrot.slane %v3042, 4
        %v3045 = vrot.slane %v2937, 6
        %v3046 = vsel %vm1785, %v3044, %v3045
        %v3047 = vrot.slane %v2938, 6
        %v3048 = vrot.slane %v3047, 4
        %v3049 = vrot.slane %v2490, 6
        %v3050 = vsel %vm1785, %v3048, %v3049
        %v3051 = vrot.slane %v3049, 4
        %v3052 = vrot.slane %v2939, 6
        %v3053 = vsel %vm1785, %v3051, %v3052
        %v3054 = vrot.slane %v2940, 6
        %v3055 = vrot.slane %v3054, 4
        %v3056 = vrot.slane %v2493, 6
        %v3057 = vsel %vm1785, %v3055, %v3056
        %v3058 = vrot.slane %v3056, 4
        %v3059 = vrot.slane %v2941, 6
        %v3060 = vsel %vm1785, %v3058, %v3059
        %v3061 = vrot.slane %v2942, 6
        %v3062 = vrot.slane %v3061, 4
        %v3063 = vrot.slane %v2496, 6
        %v3064 = vsel %vm1785, %v3062, %v3063
        %v3065 = vrot.slane %v3063, 4
        %v3066 = vrot.slane %v2943, 6
        %v3067 = vsel %vm1785, %v3065, %v3066
        %v3068 = vrot.slane %v2944, 6
        %v3069 = vrot.slane %v3068, 4
        %v3070 = vrot.slane %v2499, 6
        %v3071 = vsel %vm1785, %v3069, %v3070
        %v3072 = vrot.slane %v3070, 4
        %v3073 = vrot.slane %v2945, 6
        %v3074 = vsel %vm1785, %v3072, %v3073
        %v3075 = vrot.slane %v2946, 6
        %v3076 = vrot.slane %v3075, 4
        %v3077 = vrot.slane %v2502, 6
        %v3078 = vsel %vm1785, %v3076, %v3077
        %v3079 = vrot.slane %v3077, 4
        %v3080 = vrot.slane %v2947, 6
        %v3081 = vsel %vm1785, %v3079, %v3080
        %v3082 = vrot.slane %v2948, 6
        %v3083 = vrot.slane %v3082, 4
        %v3084 = vrot.slane %v2505, 6
        %v3085 = vsel %vm1785, %v3083, %v3084
        %v3086 = vrot.slane %v3084, 4
        %v3087 = vrot.slane %v2949, 6
        %v3088 = vsel %vm1785, %v3086, %v3087
        %v3089 = vrot.slane %v2950, 6
        %v3090 = vrot.slane %v3089, 4
        %v3091 = vrot.slane %v2508, 6
        %v3092 = vsel %vm1785, %v3090, %v3091
        %v3093 = vrot.slane %v3091, 4
        %v3094 = vrot.slane %v2951, 6
        %v3095 = vsel %vm1785, %v3093, %v3094
        %s3096 = scalar_lea.vmem [#allocation8], 320
        %v3097 = vld [vmem:[%s3096] sm:$0xf]
        %v3098 = vld [vmem:[%s3096 + $0x4] sm:$0xf]
        %v3099 = vld [vmem:[%s3096 + $0x8] sm:$0xf]
        %v3100 = vld [vmem:[%s3096 + $0xc] sm:$0xf]
        %v3101 = vld [vmem:[%s3096 + $0x10] sm:$0xf]
        %v3102 = vld [vmem:[%s3096 + $0x14] sm:$0xf]
        %v3103 = vld [vmem:[%s3096 + $0x18] sm:$0xf]
        %v3104 = vld [vmem:[%s3096 + $0x1c] sm:$0xf]
        %v3105 = vld [vmem:[%s3096 + $0x20] sm:$0xf]
        %v3106 = vld [vmem:[%s3096 + $0x24] sm:$0xf]
        %v3107 = vld [vmem:[%s3096 + $0x28] sm:$0xf]
        %v3108 = vld [vmem:[%s3096 + $0x2c] sm:$0xf]
        %v3109 = vld [vmem:[%s3096 + $0x30] sm:$0xf]
        %v3110 = vld [vmem:[%s3096 + $0x34] sm:$0xf]
        %v3111 = vld [vmem:[%s3096 + $0x38] sm:$0xf]
        %v3112 = vld [vmem:[%s3096 + $0x3c] sm:$0xf]
        %v3113 = vunpack.c.l.b16 %v2987
        %v3114 = vunpack.c.l.b16 %v2990
        %v3115 = vunpack.c.l.b16 %v2994
        %v3116 = vunpack.c.l.b16 %v2997
        %v3117 = vunpack.c.l.b16 %v3001
        %v3118 = vunpack.c.l.b16 %v3004
        %v3119 = vunpack.c.l.b16 %v3008
        %v3120 = vunpack.c.l.b16 %v3011
        %v3121 = vunpack.c.l.b16 %v3015
        %v3122 = vunpack.c.l.b16 %v3018
        %v3123 = vunpack.c.l.b16 %v3022
        %v3124 = vunpack.c.l.b16 %v3025
        %v3125 = vunpack.c.l.b16 %v3029
        %v3126 = vunpack.c.l.b16 %v3032
        %v3127 = vunpack.c.l.b16 %v3036
        %v3128 = vunpack.c.l.b16 %v3039
        %v3129 = vunpack.c.l.b16 %v3043
        %v3130 = vunpack.c.l.b16 %v3046
        %v3131 = vunpack.c.l.b16 %v3050
        %v3132 = vunpack.c.l.b16 %v3053
        %v3133 = vunpack.c.l.b16 %v3057
        %v3134 = vunpack.c.l.b16 %v3060
        %v3135 = vunpack.c.l.b16 %v3064
        %v3136 = vunpack.c.l.b16 %v3067
        %v3137 = vunpack.c.l.b16 %v3071
        %v3138 = vunpack.c.l.b16 %v3074
        %v3139 = vunpack.c.l.b16 %v3078
        %v3140 = vunpack.c.l.b16 %v3081
        %v3141 = vunpack.c.l.b16 %v3085
        %v3142 = vunpack.c.l.b16 %v3088
        %v3143 = vunpack.c.l.b16 %v3092
        %v3144 = vunpack.c.l.b16 %v3095
        %v3145 = vpack.c.b16 %v3114, %v3113
        %v3146 = vpack.c.b16 %v3116, %v3115
        %v3147 = vpack.c.b16 %v3118, %v3117
        %v3148 = vpack.c.b16 %v3120, %v3119
        %v3149 = vpack.c.b16 %v3122, %v3121
        %v3150 = vpack.c.b16 %v3124, %v3123
        %v3151 = vpack.c.b16 %v3126, %v3125
        %v3152 = vpack.c.b16 %v3128, %v3127
        %v3153 = vpack.c.b16 %v3130, %v3129
        %v3154 = vpack.c.b16 %v3132, %v3131
        %v3155 = vpack.c.b16 %v3134, %v3133
        %v3156 = vpack.c.b16 %v3136, %v3135
        %v3157 = vpack.c.b16 %v3138, %v3137
        %v3158 = vpack.c.b16 %v3140, %v3139
        %v3159 = vpack.c.b16 %v3142, %v3141
        %v3160 = vpack.c.b16 %v3144, %v3143
        %v3193 = vunpack.c.l.b16 %v3097
        %v3194 = vunpack.c.l.b16 %v3098
        %v3195 = vunpack.c.l.b16 %v3099
        %v3196 = vunpack.c.l.b16 %v3100
        %v3197 = vunpack.c.l.b16 %v3101
        %v3198 = vunpack.c.l.b16 %v3102
        %v3199 = vunpack.c.l.b16 %v3103
        %v3200 = vunpack.c.l.b16 %v3104
        %v3201 = vunpack.c.l.b16 %v3105
        %v3202 = vunpack.c.l.b16 %v3106
        %v3203 = vunpack.c.l.b16 %v3107
        %v3204 = vunpack.c.l.b16 %v3108
        %v3205 = vunpack.c.l.b16 %v3109
        %v3206 = vunpack.c.l.b16 %v3110
        %v3207 = vunpack.c.l.b16 %v3111
        %v3208 = vunpack.c.l.b16 %v3112
        %v3209 = vpack.c.b16 %v3194, %v3193
        %v3210 = vpack.c.b16 %v3196, %v3195
        %v3211 = vpack.c.b16 %v3198, %v3197
        %v3212 = vpack.c.b16 %v3200, %v3199
        %v3213 = vpack.c.b16 %v3202, %v3201
        %v3214 = vpack.c.b16 %v3204, %v3203
        %v3215 = vpack.c.b16 %v3206, %v3205
        %v3216 = vpack.c.b16 %v3208, %v3207
        %3225 = vmatpush.bf16.msra.mxu0 %v3216
        %3226 = vmatpush.bf16.msra.mxu0 %v3215
        %3227 = vmatpush.bf16.msra.mxu0 %v3214
        %3228 = vmatpush.bf16.msra.mxu0 %v3213
        %3229 = vmatpush.bf16.msra.mxu0 %v3212
        %3230 = vmatpush.bf16.msra.mxu0 %v3211
        %3231 = vmatpush.bf16.msra.mxu0 %v3210
        %3232 = vmatpush.bf16.msra.mxu0 %v3209
        %3233 = vmatmul.bf16.gmra.mxu0 %v3145
        %v3234 = vpop.f32.mrf.mxu0
        %v3235 = vadd.f32 0.0, %v3234
        %v3236 = vpop.f32.mrf.mxu0
        %v3237 = vadd.f32 0.0, %v3236
        %3238 = vmatmul.bf16.gmra.mxu0 %v3146
        %v3239 = vpop.f32.mrf.mxu0
        %v3240 = vadd.f32 0.0, %v3239
        %v3241 = vpop.f32.mrf.mxu0
        %v3242 = vadd.f32 0.0, %v3241
        %3243 = vmatmul.bf16.gmra.mxu0 %v3147
        %v3244 = vpop.f32.mrf.mxu0
        %v3245 = vadd.f32 0.0, %v3244
        %v3246 = vpop.f32.mrf.mxu0
        %v3247 = vadd.f32 0.0, %v3246
        %3248 = vmatmul.bf16.gmra.mxu0 %v3148
        %v3249 = vpop.f32.mrf.mxu0
        %v3250 = vadd.f32 0.0, %v3249
        %v3251 = vpop.f32.mrf.mxu0
        %v3252 = vadd.f32 0.0, %v3251
        %3253 = vmatmul.bf16.gmra.mxu0 %v3149
        %v3254 = vpop.f32.mrf.mxu0
        %v3255 = vadd.f32 0.0, %v3254
        %v3256 = vpop.f32.mrf.mxu0
        %v3257 = vadd.f32 0.0, %v3256
        %3258 = vmatmul.bf16.gmra.mxu0 %v3150
        %v3259 = vpop.f32.mrf.mxu0
        %v3260 = vadd.f32 0.0, %v3259
        %v3261 = vpop.f32.mrf.mxu0
        %v3262 = vadd.f32 0.0, %v3261
        %3263 = vmatmul.bf16.gmra.mxu0 %v3151
        %v3264 = vpop.f32.mrf.mxu0
        %v3265 = vadd.f32 0.0, %v3264
        %v3266 = vpop.f32.mrf.mxu0
        %v3267 = vadd.f32 0.0, %v3266
        %3268 = vmatmul.bf16.gmra.mxu0 %v3152
        %v3269 = vpop.f32.mrf.mxu0
        %v3270 = vadd.f32 0.0, %v3269
        %v3271 = vpop.f32.mrf.mxu0
        %v3272 = vadd.f32 0.0, %v3271
        %3273 = vmatmul.bf16.gmra.mxu0 %v3153
        %v3274 = vpop.f32.mrf.mxu0
        %v3275 = vadd.f32 0.0, %v3274
        %v3276 = vpop.f32.mrf.mxu0
        %v3277 = vadd.f32 0.0, %v3276
        %3278 = vmatmul.bf16.gmra.mxu0 %v3154
        %v3279 = vpop.f32.mrf.mxu0
        %v3280 = vadd.f32 0.0, %v3279
        %v3281 = vpop.f32.mrf.mxu0
        %v3282 = vadd.f32 0.0, %v3281
        %3283 = vmatmul.bf16.gmra.mxu0 %v3155
        %v3284 = vpop.f32.mrf.mxu0
        %v3285 = vadd.f32 0.0, %v3284
        %v3286 = vpop.f32.mrf.mxu0
        %v3287 = vadd.f32 0.0, %v3286
        %3288 = vmatmul.bf16.gmra.mxu0 %v3156
        %v3289 = vpop.f32.mrf.mxu0
        %v3290 = vadd.f32 0.0, %v3289
        %v3291 = vpop.f32.mrf.mxu0
        %v3292 = vadd.f32 0.0, %v3291
        %3293 = vmatmul.bf16.gmra.mxu0 %v3157
        %v3294 = vpop.f32.mrf.mxu0
        %v3295 = vadd.f32 0.0, %v3294
        %v3296 = vpop.f32.mrf.mxu0
        %v3297 = vadd.f32 0.0, %v3296
        %3298 = vmatmul.bf16.gmra.mxu0 %v3158
        %v3299 = vpop.f32.mrf.mxu0
        %v3300 = vadd.f32 0.0, %v3299
        %v3301 = vpop.f32.mrf.mxu0
        %v3302 = vadd.f32 0.0, %v3301
        %3303 = vmatmul.bf16.gmra.mxu0 %v3159
        %v3304 = vpop.f32.mrf.mxu0
        %v3305 = vadd.f32 0.0, %v3304
        %v3306 = vpop.f32.mrf.mxu0
        %v3307 = vadd.f32 0.0, %v3306
        %3308 = vmatmul.bf16.gmra.mxu0 %v3160
        %v3309 = vpop.f32.mrf.mxu0
        %v3310 = vadd.f32 0.0, %v3309
        %v3311 = vpop.f32.mrf.mxu0
        %v3312 = vadd.f32 0.0, %v3311
        %3313 = vdwg.mxu0
        %v3314 = vadd.f32 %v2888, %v3235
        %v3315 = vadd.f32 %v2889, %v3237
        %v3316 = vadd.f32 %v2890, %v3240
        %v3317 = vadd.f32 %v2891, %v3242
        %v3318 = vadd.f32 %v2892, %v3245
        %v3319 = vadd.f32 %v2893, %v3247
        %v3320 = vadd.f32 %v2894, %v3250
        %v3321 = vadd.f32 %v2895, %v3252
        %v3322 = vadd.f32 %v2896, %v3255
        %v3323 = vadd.f32 %v2897, %v3257
        %v3324 = vadd.f32 %v2898, %v3260
        %v3325 = vadd.f32 %v2899, %v3262
        %v3326 = vadd.f32 %v2900, %v3265
        %v3327 = vadd.f32 %v2901, %v3267
        %v3328 = vadd.f32 %v2902, %v3270
        %v3329 = vadd.f32 %v2903, %v3272
        %v3330 = vadd.f32 %v2904, %v3275
        %v3331 = vadd.f32 %v2905, %v3277
        %v3332 = vadd.f32 %v2906, %v3280
        %v3333 = vadd.f32 %v2907, %v3282
        %v3334 = vadd.f32 %v2908, %v3285
        %v3335 = vadd.f32 %v2909, %v3287
        %v3336 = vadd.f32 %v2910, %v3290
        %v3337 = vadd.f32 %v2911, %v3292
        %v3338 = vadd.f32 %v2912, %v3295
        %v3339 = vadd.f32 %v2913, %v3297
        %v3340 = vadd.f32 %v2914, %v3300
        %v3341 = vadd.f32 %v2915, %v3302
        %v3342 = vadd.f32 %v2916, %v3305
        %v3343 = vadd.f32 %v2917, %v3307
        %v3344 = vadd.f32 %v2918, %v3310
        %v3345 = vadd.f32 %v2919, %v3312
        %s3346 = scalar_lea.vmem [#allocation2], 48
        %v3347 = vld [vmem:[%s3346] sm:$0xf]
        %v3348 = vld [vmem:[%s3346 + $0x4] sm:$0xf]
        %v3349 = vld [vmem:[%s3346 + $0xc] sm:$0xf]
        %v3350 = vld [vmem:[%s3346 + $0x10] sm:$0xf]
        %v3351 = vld [vmem:[%s3346 + $0x18] sm:$0xf]
        %v3352 = vld [vmem:[%s3346 + $0x1c] sm:$0xf]
        %v3353 = vld [vmem:[%s3346 + $0x24] sm:$0xf]
        %v3354 = vld [vmem:[%s3346 + $0x28] sm:$0xf]
        %v3355 = vld [vmem:[%s3346 + $0x30] sm:$0xf]
        %v3356 = vld [vmem:[%s3346 + $0x34] sm:$0xf]
        %v3357 = vld [vmem:[%s3346 + $0x3c] sm:$0xf]
        %v3358 = vld [vmem:[%s3346 + $0x40] sm:$0xf]
        %v3359 = vld [vmem:[%s3346 + $0x48] sm:$0xf]
        %v3360 = vld [vmem:[%s3346 + $0x4c] sm:$0xf]
        %v3361 = vld [vmem:[%s3346 + $0x54] sm:$0xf]
        %v3362 = vld [vmem:[%s3346 + $0x58] sm:$0xf]
        %v3363 = vld [vmem:[%s3346 + $0x60] sm:$0xf]
        %v3364 = vld [vmem:[%s3346 + $0x64] sm:$0xf]
        %v3365 = vld [vmem:[%s3346 + $0x6c] sm:$0xf]
        %v3366 = vld [vmem:[%s3346 + $0x70] sm:$0xf]
        %v3367 = vld [vmem:[%s3346 + $0x78] sm:$0xf]
        %v3368 = vld [vmem:[%s3346 + $0x7c] sm:$0xf]
        %v3369 = vld [vmem:[%s3346 + $0x84] sm:$0xf]
        %v3370 = vld [vmem:[%s3346 + $0x88] sm:$0xf]
        %v3371 = vld [vmem:[%s3346 + $0x90] sm:$0xf]
        %v3372 = vld [vmem:[%s3346 + $0x94] sm:$0xf]
        %v3373 = vld [vmem:[%s3346 + $0x9c] sm:$0xf]
        %v3374 = vld [vmem:[%s3346 + $0xa0] sm:$0xf]
        %v3375 = vld [vmem:[%s3346 + $0xa8] sm:$0xf]
        %v3376 = vld [vmem:[%s3346 + $0xac] sm:$0xf]
        %v3377 = vld [vmem:[%s3346 + $0xb4] sm:$0xf]
        %v3378 = vld [vmem:[%s3346 + $0xb8] sm:$0xf]
        %s3379 = scalar_lea.vmem [#allocation8], 384
        %v3380 = vld [vmem:[%s3379] sm:$0xf]
        %v3381 = vld [vmem:[%s3379 + $0x4] sm:$0xf]
        %v3382 = vld [vmem:[%s3379 + $0x8] sm:$0xf]
        %v3383 = vld [vmem:[%s3379 + $0xc] sm:$0xf]
        %v3384 = vld [vmem:[%s3379 + $0x10] sm:$0xf]
        %v3385 = vld [vmem:[%s3379 + $0x14] sm:$0xf]
        %v3386 = vld [vmem:[%s3379 + $0x18] sm:$0xf]
        %v3387 = vld [vmem:[%s3379 + $0x1c] sm:$0xf]
        %v3388 = vld [vmem:[%s3379 + $0x20] sm:$0xf]
        %v3389 = vld [vmem:[%s3379 + $0x24] sm:$0xf]
        %v3390 = vld [vmem:[%s3379 + $0x28] sm:$0xf]
        %v3391 = vld [vmem:[%s3379 + $0x2c] sm:$0xf]
        %v3392 = vld [vmem:[%s3379 + $0x30] sm:$0xf]
        %v3393 = vld [vmem:[%s3379 + $0x34] sm:$0xf]
        %v3394 = vld [vmem:[%s3379 + $0x38] sm:$0xf]
        %v3395 = vld [vmem:[%s3379 + $0x3c] sm:$0xf]
        %v3428 = vunpack.c.l.b16 %v3347
        %v3429 = vunpack.c.l.b16 %v3348
        %v3430 = vunpack.c.l.b16 %v3349
        %v3431 = vunpack.c.l.b16 %v3350
        %v3432 = vunpack.c.l.b16 %v3351
        %v3433 = vunpack.c.l.b16 %v3352
        %v3434 = vunpack.c.l.b16 %v3353
        %v3435 = vunpack.c.l.b16 %v3354
        %v3436 = vunpack.c.l.b16 %v3355
        %v3437 = vunpack.c.l.b16 %v3356
        %v3438 = vunpack.c.l.b16 %v3357
        %v3439 = vunpack.c.l.b16 %v3358
        %v3440 = vunpack.c.l.b16 %v3359
        %v3441 = vunpack.c.l.b16 %v3360
        %v3442 = vunpack.c.l.b16 %v3361
        %v3443 = vunpack.c.l.b16 %v3362
        %v3444 = vunpack.c.l.b16 %v3363
        %v3445 = vunpack.c.l.b16 %v3364
        %v3446 = vunpack.c.l.b16 %v3365
        %v3447 = vunpack.c.l.b16 %v3366
        %v3448 = vunpack.c.l.b16 %v3367
        %v3449 = vunpack.c.l.b16 %v3368
        %v3450 = vunpack.c.l.b16 %v3369
        %v3451 = vunpack.c.l.b16 %v3370
        %v3452 = vunpack.c.l.b16 %v3371
        %v3453 = vunpack.c.l.b16 %v3372
        %v3454 = vunpack.c.l.b16 %v3373
        %v3455 = vunpack.c.l.b16 %v3374
        %v3456 = vunpack.c.l.b16 %v3375
        %v3457 = vunpack.c.l.b16 %v3376
        %v3458 = vunpack.c.l.b16 %v3377
        %v3459 = vunpack.c.l.b16 %v3378
        %v3460 = vpack.c.b16 %v3429, %v3428
        %v3461 = vpack.c.b16 %v3431, %v3430
        %v3462 = vpack.c.b16 %v3433, %v3432
        %v3463 = vpack.c.b16 %v3435, %v3434
        %v3464 = vpack.c.b16 %v3437, %v3436
        %v3465 = vpack.c.b16 %v3439, %v3438
        %v3466 = vpack.c.b16 %v3441, %v3440
        %v3467 = vpack.c.b16 %v3443, %v3442
        %v3468 = vpack.c.b16 %v3445, %v3444
        %v3469 = vpack.c.b16 %v3447, %v3446
        %v3470 = vpack.c.b16 %v3449, %v3448
        %v3471 = vpack.c.b16 %v3451, %v3450
        %v3472 = vpack.c.b16 %v3453, %v3452
        %v3473 = vpack.c.b16 %v3455, %v3454
        %v3474 = vpack.c.b16 %v3457, %v3456
        %v3475 = vpack.c.b16 %v3459, %v3458
        %v3508 = vunpack.c.l.b16 %v3380
        %v3509 = vunpack.c.l.b16 %v3381
        %v3510 = vunpack.c.l.b16 %v3382
        %v3511 = vunpack.c.l.b16 %v3383
        %v3512 = vunpack.c.l.b16 %v3384
        %v3513 = vunpack.c.l.b16 %v3385
        %v3514 = vunpack.c.l.b16 %v3386
        %v3515 = vunpack.c.l.b16 %v3387
        %v3516 = vunpack.c.l.b16 %v3388
        %v3517 = vunpack.c.l.b16 %v3389
        %v3518 = vunpack.c.l.b16 %v3390
        %v3519 = vunpack.c.l.b16 %v3391
        %v3520 = vunpack.c.l.b16 %v3392
        %v3521 = vunpack.c.l.b16 %v3393
        %v3522 = vunpack.c.l.b16 %v3394
        %v3523 = vunpack.c.l.b16 %v3395
        %v3524 = vpack.c.b16 %v3509, %v3508
        %v3525 = vpack.c.b16 %v3511, %v3510
        %v3526 = vpack.c.b16 %v3513, %v3512
        %v3527 = vpack.c.b16 %v3515, %v3514
        %v3528 = vpack.c.b16 %v3517, %v3516
        %v3529 = vpack.c.b16 %v3519, %v3518
        %v3530 = vpack.c.b16 %v3521, %v3520
        %v3531 = vpack.c.b16 %v3523, %v3522
        %3540 = vmatpush.bf16.msra.mxu0 %v3531
        %3541 = vmatpush.bf16.msra.mxu0 %v3530
        %3542 = vmatpush.bf16.msra.mxu0 %v3529
        %3543 = vmatpush.bf16.msra.mxu0 %v3528
        %3544 = vmatpush.bf16.msra.mxu0 %v3527
        %3545 = vmatpush.bf16.msra.mxu0 %v3526
        %3546 = vmatpush.bf16.msra.mxu0 %v3525
        %3547 = vmatpush.bf16.msra.mxu0 %v3524
        %3548 = vmatmul.bf16.gmra.mxu0 %v3460
        %v3549 = vpop.f32.mrf.mxu0
        %v3550 = vadd.f32 0.0, %v3549
        %v3551 = vpop.f32.mrf.mxu0
        %v3552 = vadd.f32 0.0, %v3551
        %3553 = vmatmul.bf16.gmra.mxu0 %v3461
        %v3554 = vpop.f32.mrf.mxu0
        %v3555 = vadd.f32 0.0, %v3554
        %v3556 = vpop.f32.mrf.mxu0
        %v3557 = vadd.f32 0.0, %v3556
        %3558 = vmatmul.bf16.gmra.mxu0 %v3462
        %v3559 = vpop.f32.mrf.mxu0
        %v3560 = vadd.f32 0.0, %v3559
        %v3561 = vpop.f32.mrf.mxu0
        %v3562 = vadd.f32 0.0, %v3561
        %3563 = vmatmul.bf16.gmra.mxu0 %v3463
        %v3564 = vpop.f32.mrf.mxu0
        %v3565 = vadd.f32 0.0, %v3564
        %v3566 = vpop.f32.mrf.mxu0
        %v3567 = vadd.f32 0.0, %v3566
        %3568 = vmatmul.bf16.gmra.mxu0 %v3464
        %v3569 = vpop.f32.mrf.mxu0
        %v3570 = vadd.f32 0.0, %v3569
        %v3571 = vpop.f32.mrf.mxu0
        %v3572 = vadd.f32 0.0, %v3571
        %3573 = vmatmul.bf16.gmra.mxu0 %v3465
        %v3574 = vpop.f32.mrf.mxu0
        %v3575 = vadd.f32 0.0, %v3574
        %v3576 = vpop.f32.mrf.mxu0
        %v3577 = vadd.f32 0.0, %v3576
        %3578 = vmatmul.bf16.gmra.mxu0 %v3466
        %v3579 = vpop.f32.mrf.mxu0
        %v3580 = vadd.f32 0.0, %v3579
        %v3581 = vpop.f32.mrf.mxu0
        %v3582 = vadd.f32 0.0, %v3581
        %3583 = vmatmul.bf16.gmra.mxu0 %v3467
        %v3584 = vpop.f32.mrf.mxu0
        %v3585 = vadd.f32 0.0, %v3584
        %v3586 = vpop.f32.mrf.mxu0
        %v3587 = vadd.f32 0.0, %v3586
        %3588 = vmatmul.bf16.gmra.mxu0 %v3468
        %v3589 = vpop.f32.mrf.mxu0
        %v3590 = vadd.f32 0.0, %v3589
        %v3591 = vpop.f32.mrf.mxu0
        %v3592 = vadd.f32 0.0, %v3591
        %3593 = vmatmul.bf16.gmra.mxu0 %v3469
        %v3594 = vpop.f32.mrf.mxu0
        %v3595 = vadd.f32 0.0, %v3594
        %v3596 = vpop.f32.mrf.mxu0
        %v3597 = vadd.f32 0.0, %v3596
        %3598 = vmatmul.bf16.gmra.mxu0 %v3470
        %v3599 = vpop.f32.mrf.mxu0
        %v3600 = vadd.f32 0.0, %v3599
        %v3601 = vpop.f32.mrf.mxu0
        %v3602 = vadd.f32 0.0, %v3601
        %3603 = vmatmul.bf16.gmra.mxu0 %v3471
        %v3604 = vpop.f32.mrf.mxu0
        %v3605 = vadd.f32 0.0, %v3604
        %v3606 = vpop.f32.mrf.mxu0
        %v3607 = vadd.f32 0.0, %v3606
        %3608 = vmatmul.bf16.gmra.mxu0 %v3472
        %v3609 = vpop.f32.mrf.mxu0
        %v3610 = vadd.f32 0.0, %v3609
        %v3611 = vpop.f32.mrf.mxu0
        %v3612 = vadd.f32 0.0, %v3611
        %3613 = vmatmul.bf16.gmra.mxu0 %v3473
        %v3614 = vpop.f32.mrf.mxu0
        %v3615 = vadd.f32 0.0, %v3614
        %v3616 = vpop.f32.mrf.mxu0
        %v3617 = vadd.f32 0.0, %v3616
        %3618 = vmatmul.bf16.gmra.mxu0 %v3474
        %v3619 = vpop.f32.mrf.mxu0
        %v3620 = vadd.f32 0.0, %v3619
        %v3621 = vpop.f32.mrf.mxu0
        %v3622 = vadd.f32 0.0, %v3621
        %3623 = vmatmul.bf16.gmra.mxu0 %v3475
        %v3624 = vpop.f32.mrf.mxu0
        %v3625 = vadd.f32 0.0, %v3624
        %v3626 = vpop.f32.mrf.mxu0
        %v3627 = vadd.f32 0.0, %v3626
        %3628 = vdwg.mxu0
        %v3629 = vadd.f32 %v3314, %v3550
        %v3630 = vadd.f32 %v3315, %v3552
        %v3631 = vadd.f32 %v3316, %v3555
        %v3632 = vadd.f32 %v3317, %v3557
        %v3633 = vadd.f32 %v3318, %v3560
        %v3634 = vadd.f32 %v3319, %v3562
        %v3635 = vadd.f32 %v3320, %v3565
        %v3636 = vadd.f32 %v3321, %v3567
        %v3637 = vadd.f32 %v3322, %v3570
        %v3638 = vadd.f32 %v3323, %v3572
        %v3639 = vadd.f32 %v3324, %v3575
        %v3640 = vadd.f32 %v3325, %v3577
        %v3641 = vadd.f32 %v3326, %v3580
        %v3642 = vadd.f32 %v3327, %v3582
        %v3643 = vadd.f32 %v3328, %v3585
        %v3644 = vadd.f32 %v3329, %v3587
        %v3645 = vadd.f32 %v3330, %v3590
        %v3646 = vadd.f32 %v3331, %v3592
        %v3647 = vadd.f32 %v3332, %v3595
        %v3648 = vadd.f32 %v3333, %v3597
        %v3649 = vadd.f32 %v3334, %v3600
        %v3650 = vadd.f32 %v3335, %v3602
        %v3651 = vadd.f32 %v3336, %v3605
        %v3652 = vadd.f32 %v3337, %v3607
        %v3653 = vadd.f32 %v3338, %v3610
        %v3654 = vadd.f32 %v3339, %v3612
        %v3655 = vadd.f32 %v3340, %v3615
        %v3656 = vadd.f32 %v3341, %v3617
        %v3657 = vadd.f32 %v3342, %v3620
        %v3658 = vadd.f32 %v3343, %v3622
        %v3659 = vadd.f32 %v3344, %v3625
        %v3660 = vadd.f32 %v3345, %v3627
        %v3661 = vld [vmem:[%s3346] sm:$0xe]
        %v3662 = vld [vmem:[%s3346 + $0x4] sm:$0xf]
        %v3663 = vld [vmem:[%s3346 + $0x8] sm:$0x1]
        %v3664 = vld [vmem:[%s3346 + $0xc] sm:$0xe]
        %v3665 = vld [vmem:[%s3346 + $0x10] sm:$0xf]
        %v3666 = vld [vmem:[%s3346 + $0x14] sm:$0x1]
        %v3667 = vld [vmem:[%s3346 + $0x18] sm:$0xe]
        %v3668 = vld [vmem:[%s3346 + $0x1c] sm:$0xf]
        %v3669 = vld [vmem:[%s3346 + $0x20] sm:$0x1]
        %v3670 = vld [vmem:[%s3346 + $0x24] sm:$0xe]
        %v3671 = vld [vmem:[%s3346 + $0x28] sm:$0xf]
        %v3672 = vld [vmem:[%s3346 + $0x2c] sm:$0x1]
        %v3673 = vld [vmem:[%s3346 + $0x30] sm:$0xe]
        %v3674 = vld [vmem:[%s3346 + $0x34] sm:$0xf]
        %v3675 = vld [vmem:[%s3346 + $0x38] sm:$0x1]
        %v3676 = vld [vmem:[%s3346 + $0x3c] sm:$0xe]
        %v3677 = vld [vmem:[%s3346 + $0x40] sm:$0xf]
        %v3678 = vld [vmem:[%s3346 + $0x44] sm:$0x1]
        %v3679 = vld [vmem:[%s3346 + $0x48] sm:$0xe]
        %v3680 = vld [vmem:[%s3346 + $0x4c] sm:$0xf]
        %v3681 = vld [vmem:[%s3346 + $0x50] sm:$0x1]
        %v3682 = vld [vmem:[%s3346 + $0x54] sm:$0xe]
        %v3683 = vld [vmem:[%s3346 + $0x58] sm:$0xf]
        %v3684 = vld [vmem:[%s3346 + $0x5c] sm:$0x1]
        %v3685 = vld [vmem:[%s3346 + $0x60] sm:$0xe]
        %v3686 = vld [vmem:[%s3346 + $0x64] sm:$0xf]
        %v3687 = vld [vmem:[%s3346 + $0x68] sm:$0x1]
        %v3688 = vld [vmem:[%s3346 + $0x6c] sm:$0xe]
        %v3689 = vld [vmem:[%s3346 + $0x70] sm:$0xf]
        %v3690 = vld [vmem:[%s3346 + $0x74] sm:$0x1]
        %v3691 = vld [vmem:[%s3346 + $0x78] sm:$0xe]
        %v3692 = vld [vmem:[%s3346 + $0x7c] sm:$0xf]
        %v3693 = vld [vmem:[%s3346 + $0x80] sm:$0x1]
        %v3694 = vld [vmem:[%s3346 + $0x84] sm:$0xe]
        %v3695 = vld [vmem:[%s3346 + $0x88] sm:$0xf]
        %v3696 = vld [vmem:[%s3346 + $0x8c] sm:$0x1]
        %v3697 = vld [vmem:[%s3346 + $0x90] sm:$0xe]
        %v3698 = vld [vmem:[%s3346 + $0x94] sm:$0xf]
        %v3699 = vld [vmem:[%s3346 + $0x98] sm:$0x1]
        %v3700 = vld [vmem:[%s3346 + $0x9c] sm:$0xe]
        %v3701 = vld [vmem:[%s3346 + $0xa0] sm:$0xf]
        %v3702 = vld [vmem:[%s3346 + $0xa4] sm:$0x1]
        %v3703 = vld [vmem:[%s3346 + $0xa8] sm:$0xe]
        %v3704 = vld [vmem:[%s3346 + $0xac] sm:$0xf]
        %v3705 = vld [vmem:[%s3346 + $0xb0] sm:$0x1]
        %v3706 = vld [vmem:[%s3346 + $0xb4] sm:$0xe]
        %v3707 = vld [vmem:[%s3346 + $0xb8] sm:$0xf]
        %v3708 = vld [vmem:[%s3346 + $0xbc] sm:$0x1]
        %v3757 = vrot.slane %v3661, 5
        %v3758 = vrot.slane %v3757, 4
        %v3759 = vrot.slane %v3662, 5
        %v3760 = vsel %vm1171, %v3758, %v3759
        %v3761 = vrot.slane %v3759, 4
        %v3762 = vrot.slane %v3663, 5
        %v3763 = vsel %vm1171, %v3761, %v3762
        %v3764 = vrot.slane %v3664, 5
        %v3765 = vrot.slane %v3764, 4
        %v3766 = vrot.slane %v3665, 5
        %v3767 = vsel %vm1171, %v3765, %v3766
        %v3768 = vrot.slane %v3766, 4
        %v3769 = vrot.slane %v3666, 5
        %v3770 = vsel %vm1171, %v3768, %v3769
        %v3771 = vrot.slane %v3667, 5
        %v3772 = vrot.slane %v3771, 4
        %v3773 = vrot.slane %v3668, 5
        %v3774 = vsel %vm1171, %v3772, %v3773
        %v3775 = vrot.slane %v3773, 4
        %v3776 = vrot.slane %v3669, 5
        %v3777 = vsel %vm1171, %v3775, %v3776
        %v3778 = vrot.slane %v3670, 5
        %v3779 = vrot.slane %v3778, 4
        %v3780 = vrot.slane %v3671, 5
        %v3781 = vsel %vm1171, %v3779, %v3780
        %v3782 = vrot.slane %v3780, 4
        %v3783 = vrot.slane %v3672, 5
        %v3784 = vsel %vm1171, %v3782, %v3783
        %v3785 = vrot.slane %v3673, 5
        %v3786 = vrot.slane %v3785, 4
        %v3787 = vrot.slane %v3674, 5
        %v3788 = vsel %vm1171, %v3786, %v3787
        %v3789 = vrot.slane %v3787, 4
        %v3790 = vrot.slane %v3675, 5
        %v3791 = vsel %vm1171, %v3789, %v3790
        %v3792 = vrot.slane %v3676, 5
        %v3793 = vrot.slane %v3792, 4
        %v3794 = vrot.slane %v3677, 5
        %v3795 = vsel %vm1171, %v3793, %v3794
        %v3796 = vrot.slane %v3794, 4
        %v3797 = vrot.slane %v3678, 5
        %v3798 = vsel %vm1171, %v3796, %v3797
        %v3799 = vrot.slane %v3679, 5
        %v3800 = vrot.slane %v3799, 4
        %v3801 = vrot.slane %v3680, 5
        %v3802 = vsel %vm1171, %v3800, %v3801
        %v3803 = vrot.slane %v3801, 4
        %v3804 = vrot.slane %v3681, 5
        %v3805 = vsel %vm1171, %v3803, %v3804
        %v3806 = vrot.slane %v3682, 5
        %v3807 = vrot.slane %v3806, 4
        %v3808 = vrot.slane %v3683, 5
        %v3809 = vsel %vm1171, %v3807, %v3808
        %v3810 = vrot.slane %v3808, 4
        %v3811 = vrot.slane %v3684, 5
        %v3812 = vsel %vm1171, %v3810, %v3811
        %v3813 = vrot.slane %v3685, 5
        %v3814 = vrot.slane %v3813, 4
        %v3815 = vrot.slane %v3686, 5
        %v3816 = vsel %vm1171, %v3814, %v3815
        %v3817 = vrot.slane %v3815, 4
        %v3818 = vrot.slane %v3687, 5
        %v3819 = vsel %vm1171, %v3817, %v3818
        %v3820 = vrot.slane %v3688, 5
        %v3821 = vrot.slane %v3820, 4
        %v3822 = vrot.slane %v3689, 5
        %v3823 = vsel %vm1171, %v3821, %v3822
        %v3824 = vrot.slane %v3822, 4
        %v3825 = vrot.slane %v3690, 5
        %v3826 = vsel %vm1171, %v3824, %v3825
        %v3827 = vrot.slane %v3691, 5
        %v3828 = vrot.slane %v3827, 4
        %v3829 = vrot.slane %v3692, 5
        %v3830 = vsel %vm1171, %v3828, %v3829
        %v3831 = vrot.slane %v3829, 4
        %v3832 = vrot.slane %v3693, 5
        %v3833 = vsel %vm1171, %v3831, %v3832
        %v3834 = vrot.slane %v3694, 5
        %v3835 = vrot.slane %v3834, 4
        %v3836 = vrot.slane %v3695, 5
        %v3837 = vsel %vm1171, %v3835, %v3836
        %v3838 = vrot.slane %v3836, 4
        %v3839 = vrot.slane %v3696, 5
        %v3840 = vsel %vm1171, %v3838, %v3839
        %v3841 = vrot.slane %v3697, 5
        %v3842 = vrot.slane %v3841, 4
        %v3843 = vrot.slane %v3698, 5
        %v3844 = vsel %vm1171, %v3842, %v3843
        %v3845 = vrot.slane %v3843, 4
        %v3846 = vrot.slane %v3699, 5
        %v3847 = vsel %vm1171, %v3845, %v3846
        %v3848 = vrot.slane %v3700, 5
        %v3849 = vrot.slane %v3848, 4
        %v3850 = vrot.slane %v3701, 5
        %v3851 = vsel %vm1171, %v3849, %v3850
        %v3852 = vrot.slane %v3850, 4
        %v3853 = vrot.slane %v3702, 5
        %v3854 = vsel %vm1171, %v3852, %v3853
        %v3855 = vrot.slane %v3703, 5
        %v3856 = vrot.slane %v3855, 4
        %v3857 = vrot.slane %v3704, 5
        %v3858 = vsel %vm1171, %v3856, %v3857
        %v3859 = vrot.slane %v3857, 4
        %v3860 = vrot.slane %v3705, 5
        %v3861 = vsel %vm1171, %v3859, %v3860
        %v3862 = vrot.slane %v3706, 5
        %v3863 = vrot.slane %v3862, 4
        %v3864 = vrot.slane %v3707, 5
        %v3865 = vsel %vm1171, %v3863, %v3864
        %v3866 = vrot.slane %v3864, 4
        %v3867 = vrot.slane %v3708, 5
        %v3868 = vsel %vm1171, %v3866, %v3867
        %s3869 = scalar_lea.vmem [#allocation8], 448
        %v3870 = vld [vmem:[%s3869] sm:$0xf]
        %v3871 = vld [vmem:[%s3869 + $0x4] sm:$0xf]
        %v3872 = vld [vmem:[%s3869 + $0x8] sm:$0xf]
        %v3873 = vld [vmem:[%s3869 + $0xc] sm:$0xf]
        %v3874 = vld [vmem:[%s3869 + $0x10] sm:$0xf]
        %v3875 = vld [vmem:[%s3869 + $0x14] sm:$0xf]
        %v3876 = vld [vmem:[%s3869 + $0x18] sm:$0xf]
        %v3877 = vld [vmem:[%s3869 + $0x1c] sm:$0xf]
        %v3878 = vld [vmem:[%s3869 + $0x20] sm:$0xf]
        %v3879 = vld [vmem:[%s3869 + $0x24] sm:$0xf]
        %v3880 = vld [vmem:[%s3869 + $0x28] sm:$0xf]
        %v3881 = vld [vmem:[%s3869 + $0x2c] sm:$0xf]
        %v3882 = vld [vmem:[%s3869 + $0x30] sm:$0xf]
        %v3883 = vld [vmem:[%s3869 + $0x34] sm:$0xf]
        %v3884 = vld [vmem:[%s3869 + $0x38] sm:$0xf]
        %v3885 = vld [vmem:[%s3869 + $0x3c] sm:$0xf]
        %v3886 = vunpack.c.l.b16 %v3760
        %v3887 = vunpack.c.l.b16 %v3763
        %v3888 = vunpack.c.l.b16 %v3767
        %v3889 = vunpack.c.l.b16 %v3770
        %v3890 = vunpack.c.l.b16 %v3774
        %v3891 = vunpack.c.l.b16 %v3777
        %v3892 = vunpack.c.l.b16 %v3781
        %v3893 = vunpack.c.l.b16 %v3784
        %v3894 = vunpack.c.l.b16 %v3788
        %v3895 = vunpack.c.l.b16 %v3791
        %v3896 = vunpack.c.l.b16 %v3795
        %v3897 = vunpack.c.l.b16 %v3798
        %v3898 = vunpack.c.l.b16 %v3802
        %v3899 = vunpack.c.l.b16 %v3805
        %v3900 = vunpack.c.l.b16 %v3809
        %v3901 = vunpack.c.l.b16 %v3812
        %v3902 = vunpack.c.l.b16 %v3816
        %v3903 = vunpack.c.l.b16 %v3819
        %v3904 = vunpack.c.l.b16 %v3823
        %v3905 = vunpack.c.l.b16 %v3826
        %v3906 = vunpack.c.l.b16 %v3830
        %v3907 = vunpack.c.l.b16 %v3833
        %v3908 = vunpack.c.l.b16 %v3837
        %v3909 = vunpack.c.l.b16 %v3840
        %v3910 = vunpack.c.l.b16 %v3844
        %v3911 = vunpack.c.l.b16 %v3847
        %v3912 = vunpack.c.l.b16 %v3851
        %v3913 = vunpack.c.l.b16 %v3854
        %v3914 = vunpack.c.l.b16 %v3858
        %v3915 = vunpack.c.l.b16 %v3861
        %v3916 = vunpack.c.l.b16 %v3865
        %v3917 = vunpack.c.l.b16 %v3868
        %v3918 = vpack.c.b16 %v3887, %v3886
        %v3919 = vpack.c.b16 %v3889, %v3888
        %v3920 = vpack.c.b16 %v3891, %v3890
        %v3921 = vpack.c.b16 %v3893, %v3892
        %v3922 = vpack.c.b16 %v3895, %v3894
        %v3923 = vpack.c.b16 %v3897, %v3896
        %v3924 = vpack.c.b16 %v3899, %v3898
        %v3925 = vpack.c.b16 %v3901, %v3900
        %v3926 = vpack.c.b16 %v3903, %v3902
        %v3927 = vpack.c.b16 %v3905, %v3904
        %v3928 = vpack.c.b16 %v3907, %v3906
        %v3929 = vpack.c.b16 %v3909, %v3908
        %v3930 = vpack.c.b16 %v3911, %v3910
        %v3931 = vpack.c.b16 %v3913, %v3912
        %v3932 = vpack.c.b16 %v3915, %v3914
        %v3933 = vpack.c.b16 %v3917, %v3916
        %v3966 = vunpack.c.l.b16 %v3870
        %v3967 = vunpack.c.l.b16 %v3871
        %v3968 = vunpack.c.l.b16 %v3872
        %v3969 = vunpack.c.l.b16 %v3873
        %v3970 = vunpack.c.l.b16 %v3874
        %v3971 = vunpack.c.l.b16 %v3875
        %v3972 = vunpack.c.l.b16 %v3876
        %v3973 = vunpack.c.l.b16 %v3877
        %v3974 = vunpack.c.l.b16 %v3878
        %v3975 = vunpack.c.l.b16 %v3879
        %v3976 = vunpack.c.l.b16 %v3880
        %v3977 = vunpack.c.l.b16 %v3881
        %v3978 = vunpack.c.l.b16 %v3882
        %v3979 = vunpack.c.l.b16 %v3883
        %v3980 = vunpack.c.l.b16 %v3884
        %v3981 = vunpack.c.l.b16 %v3885
        %v3982 = vpack.c.b16 %v3967, %v3966
        %v3983 = vpack.c.b16 %v3969, %v3968
        %v3984 = vpack.c.b16 %v3971, %v3970
        %v3985 = vpack.c.b16 %v3973, %v3972
        %v3986 = vpack.c.b16 %v3975, %v3974
        %v3987 = vpack.c.b16 %v3977, %v3976
        %v3988 = vpack.c.b16 %v3979, %v3978
        %v3989 = vpack.c.b16 %v3981, %v3980
        %3998 = vmatpush.bf16.msra.mxu0 %v3989
        %3999 = vmatpush.bf16.msra.mxu0 %v3988
        %4000 = vmatpush.bf16.msra.mxu0 %v3987
        %4001 = vmatpush.bf16.msra.mxu0 %v3986
        %4002 = vmatpush.bf16.msra.mxu0 %v3985
        %4003 = vmatpush.bf16.msra.mxu0 %v3984
        %4004 = vmatpush.bf16.msra.mxu0 %v3983
        %4005 = vmatpush.bf16.msra.mxu0 %v3982
        %4006 = vmatmul.bf16.gmra.mxu0 %v3918
        %v4007 = vpop.f32.mrf.mxu0
        %v4008 = vadd.f32 0.0, %v4007
        %v4009 = vpop.f32.mrf.mxu0
        %v4010 = vadd.f32 0.0, %v4009
        %4011 = vmatmul.bf16.gmra.mxu0 %v3919
        %v4012 = vpop.f32.mrf.mxu0
        %v4013 = vadd.f32 0.0, %v4012
        %v4014 = vpop.f32.mrf.mxu0
        %v4015 = vadd.f32 0.0, %v4014
        %4016 = vmatmul.bf16.gmra.mxu0 %v3920
        %v4017 = vpop.f32.mrf.mxu0
        %v4018 = vadd.f32 0.0, %v4017
        %v4019 = vpop.f32.mrf.mxu0
        %v4020 = vadd.f32 0.0, %v4019
        %4021 = vmatmul.bf16.gmra.mxu0 %v3921
        %v4022 = vpop.f32.mrf.mxu0
        %v4023 = vadd.f32 0.0, %v4022
        %v4024 = vpop.f32.mrf.mxu0
        %v4025 = vadd.f32 0.0, %v4024
        %4026 = vmatmul.bf16.gmra.mxu0 %v3922
        %v4027 = vpop.f32.mrf.mxu0
        %v4028 = vadd.f32 0.0, %v4027
        %v4029 = vpop.f32.mrf.mxu0
        %v4030 = vadd.f32 0.0, %v4029
        %4031 = vmatmul.bf16.gmra.mxu0 %v3923
        %v4032 = vpop.f32.mrf.mxu0
        %v4033 = vadd.f32 0.0, %v4032
        %v4034 = vpop.f32.mrf.mxu0
        %v4035 = vadd.f32 0.0, %v4034
        %4036 = vmatmul.bf16.gmra.mxu0 %v3924
        %v4037 = vpop.f32.mrf.mxu0
        %v4038 = vadd.f32 0.0, %v4037
        %v4039 = vpop.f32.mrf.mxu0
        %v4040 = vadd.f32 0.0, %v4039
        %4041 = vmatmul.bf16.gmra.mxu0 %v3925
        %v4042 = vpop.f32.mrf.mxu0
        %v4043 = vadd.f32 0.0, %v4042
        %v4044 = vpop.f32.mrf.mxu0
        %v4045 = vadd.f32 0.0, %v4044
        %4046 = vmatmul.bf16.gmra.mxu0 %v3926
        %v4047 = vpop.f32.mrf.mxu0
        %v4048 = vadd.f32 0.0, %v4047
        %v4049 = vpop.f32.mrf.mxu0
        %v4050 = vadd.f32 0.0, %v4049
        %4051 = vmatmul.bf16.gmra.mxu0 %v3927
        %v4052 = vpop.f32.mrf.mxu0
        %v4053 = vadd.f32 0.0, %v4052
        %v4054 = vpop.f32.mrf.mxu0
        %v4055 = vadd.f32 0.0, %v4054
        %4056 = vmatmul.bf16.gmra.mxu0 %v3928
        %v4057 = vpop.f32.mrf.mxu0
        %v4058 = vadd.f32 0.0, %v4057
        %v4059 = vpop.f32.mrf.mxu0
        %v4060 = vadd.f32 0.0, %v4059
        %4061 = vmatmul.bf16.gmra.mxu0 %v3929
        %v4062 = vpop.f32.mrf.mxu0
        %v4063 = vadd.f32 0.0, %v4062
        %v4064 = vpop.f32.mrf.mxu0
        %v4065 = vadd.f32 0.0, %v4064
        %4066 = vmatmul.bf16.gmra.mxu0 %v3930
        %v4067 = vpop.f32.mrf.mxu0
        %v4068 = vadd.f32 0.0, %v4067
        %v4069 = vpop.f32.mrf.mxu0
        %v4070 = vadd.f32 0.0, %v4069
        %4071 = vmatmul.bf16.gmra.mxu0 %v3931
        %v4072 = vpop.f32.mrf.mxu0
        %v4073 = vadd.f32 0.0, %v4072
        %v4074 = vpop.f32.mrf.mxu0
        %v4075 = vadd.f32 0.0, %v4074
        %4076 = vmatmul.bf16.gmra.mxu0 %v3932
        %v4077 = vpop.f32.mrf.mxu0
        %v4078 = vadd.f32 0.0, %v4077
        %v4079 = vpop.f32.mrf.mxu0
        %v4080 = vadd.f32 0.0, %v4079
        %4081 = vmatmul.bf16.gmra.mxu0 %v3933
        %v4082 = vpop.f32.mrf.mxu0
        %v4083 = vadd.f32 0.0, %v4082
        %v4084 = vpop.f32.mrf.mxu0
        %v4085 = vadd.f32 0.0, %v4084
        %4086 = vdwg.mxu0
        %v4087 = vadd.f32 %v3629, %v4008
        %v4088 = vadd.f32 %v3630, %v4010
        %v4089 = vadd.f32 %v3631, %v4013
        %v4090 = vadd.f32 %v3632, %v4015
        %v4091 = vadd.f32 %v3633, %v4018
        %v4092 = vadd.f32 %v3634, %v4020
        %v4093 = vadd.f32 %v3635, %v4023
        %v4094 = vadd.f32 %v3636, %v4025
        %v4095 = vadd.f32 %v3637, %v4028
        %v4096 = vadd.f32 %v3638, %v4030
        %v4097 = vadd.f32 %v3639, %v4033
        %v4098 = vadd.f32 %v3640, %v4035
        %v4099 = vadd.f32 %v3641, %v4038
        %v4100 = vadd.f32 %v3642, %v4040
        %v4101 = vadd.f32 %v3643, %v4043
        %v4102 = vadd.f32 %v3644, %v4045
        %v4103 = vadd.f32 %v3645, %v4048
        %v4104 = vadd.f32 %v3646, %v4050
        %v4105 = vadd.f32 %v3647, %v4053
        %v4106 = vadd.f32 %v3648, %v4055
        %v4107 = vadd.f32 %v3649, %v4058
        %v4108 = vadd.f32 %v3650, %v4060
        %v4109 = vadd.f32 %v3651, %v4063
        %v4110 = vadd.f32 %v3652, %v4065
        %v4111 = vadd.f32 %v3653, %v4068
        %v4112 = vadd.f32 %v3654, %v4070
        %v4113 = vadd.f32 %v3655, %v4073
        %v4114 = vadd.f32 %v3656, %v4075
        %v4115 = vadd.f32 %v3657, %v4078
        %v4116 = vadd.f32 %v3658, %v4080
        %v4117 = vadd.f32 %v3659, %v4083
        %v4118 = vadd.f32 %v3660, %v4085
        %v4119 = vld [vmem:[%s3346] sm:$0xc]
        %v4120 = vld [vmem:[%s3346 + $0x8] sm:$0x3]
        %v4121 = vld [vmem:[%s3346 + $0xc] sm:$0xc]
        %v4122 = vld [vmem:[%s3346 + $0x14] sm:$0x3]
        %v4123 = vld [vmem:[%s3346 + $0x18] sm:$0xc]
        %v4124 = vld [vmem:[%s3346 + $0x20] sm:$0x3]
        %v4125 = vld [vmem:[%s3346 + $0x24] sm:$0xc]
        %v4126 = vld [vmem:[%s3346 + $0x2c] sm:$0x3]
        %v4127 = vld [vmem:[%s3346 + $0x30] sm:$0xc]
        %v4128 = vld [vmem:[%s3346 + $0x38] sm:$0x3]
        %v4129 = vld [vmem:[%s3346 + $0x3c] sm:$0xc]
        %v4130 = vld [vmem:[%s3346 + $0x44] sm:$0x3]
        %v4131 = vld [vmem:[%s3346 + $0x48] sm:$0xc]
        %v4132 = vld [vmem:[%s3346 + $0x50] sm:$0x3]
        %v4133 = vld [vmem:[%s3346 + $0x54] sm:$0xc]
        %v4134 = vld [vmem:[%s3346 + $0x5c] sm:$0x3]
        %v4135 = vld [vmem:[%s3346 + $0x60] sm:$0xc]
        %v4136 = vld [vmem:[%s3346 + $0x68] sm:$0x3]
        %v4137 = vld [vmem:[%s3346 + $0x6c] sm:$0xc]
        %v4138 = vld [vmem:[%s3346 + $0x74] sm:$0x3]
        %v4139 = vld [vmem:[%s3346 + $0x78] sm:$0xc]
        %v4140 = vld [vmem:[%s3346 + $0x80] sm:$0x3]
        %v4141 = vld [vmem:[%s3346 + $0x84] sm:$0xc]
        %v4142 = vld [vmem:[%s3346 + $0x8c] sm:$0x3]
        %v4143 = vld [vmem:[%s3346 + $0x90] sm:$0xc]
        %v4144 = vld [vmem:[%s3346 + $0x98] sm:$0x3]
        %v4145 = vld [vmem:[%s3346 + $0x9c] sm:$0xc]
        %v4146 = vld [vmem:[%s3346 + $0xa4] sm:$0x3]
        %v4147 = vld [vmem:[%s3346 + $0xa8] sm:$0xc]
        %v4148 = vld [vmem:[%s3346 + $0xb0] sm:$0x3]
        %v4149 = vld [vmem:[%s3346 + $0xb4] sm:$0xc]
        %v4150 = vld [vmem:[%s3346 + $0xbc] sm:$0x3]
        %v4183 = vrot.slane %v4119, 6
        %v4184 = vrot.slane %v4183, 4
        %v4185 = vrot.slane %v3662, 6
        %v4186 = vsel %vm1785, %v4184, %v4185
        %v4187 = vrot.slane %v4185, 4
        %v4188 = vrot.slane %v4120, 6
        %v4189 = vsel %vm1785, %v4187, %v4188
        %v4190 = vrot.slane %v4121, 6
        %v4191 = vrot.slane %v4190, 4
        %v4192 = vrot.slane %v3665, 6
        %v4193 = vsel %vm1785, %v4191, %v4192
        %v4194 = vrot.slane %v4192, 4
        %v4195 = vrot.slane %v4122, 6
        %v4196 = vsel %vm1785, %v4194, %v4195
        %v4197 = vrot.slane %v4123, 6
        %v4198 = vrot.slane %v4197, 4
        %v4199 = vrot.slane %v3668, 6
        %v4200 = vsel %vm1785, %v4198, %v4199
        %v4201 = vrot.slane %v4199, 4
        %v4202 = vrot.slane %v4124, 6
        %v4203 = vsel %vm1785, %v4201, %v4202
        %v4204 = vrot.slane %v4125, 6
        %v4205 = vrot.slane %v4204, 4
        %v4206 = vrot.slane %v3671, 6
        %v4207 = vsel %vm1785, %v4205, %v4206
        %v4208 = vrot.slane %v4206, 4
        %v4209 = vrot.slane %v4126, 6
        %v4210 = vsel %vm1785, %v4208, %v4209
        %v4211 = vrot.slane %v4127, 6
        %v4212 = vrot.slane %v4211, 4
        %v4213 = vrot.slane %v3674, 6
        %v4214 = vsel %vm1785, %v4212, %v4213
        %v4215 = vrot.slane %v4213, 4
        %v4216 = vrot.slane %v4128, 6
        %v4217 = vsel %vm1785, %v4215, %v4216
        %v4218 = vrot.slane %v4129, 6
        %v4219 = vrot.slane %v4218, 4
        %v4220 = vrot.slane %v3677, 6
        %v4221 = vsel %vm1785, %v4219, %v4220
        %v4222 = vrot.slane %v4220, 4
        %v4223 = vrot.slane %v4130, 6
        %v4224 = vsel %vm1785, %v4222, %v4223
        %v4225 = vrot.slane %v4131, 6
        %v4226 = vrot.slane %v4225, 4
        %v4227 = vrot.slane %v3680, 6
        %v4228 = vsel %vm1785, %v4226, %v4227
        %v4229 = vrot.slane %v4227, 4
        %v4230 = vrot.slane %v4132, 6
        %v4231 = vsel %vm1785, %v4229, %v4230
        %v4232 = vrot.slane %v4133, 6
        %v4233 = vrot.slane %v4232, 4
        %v4234 = vrot.slane %v3683, 6
        %v4235 = vsel %vm1785, %v4233, %v4234
        %v4236 = vrot.slane %v4234, 4
        %v4237 = vrot.slane %v4134, 6
        %v4238 = vsel %vm1785, %v4236, %v4237
        %v4239 = vrot.slane %v4135, 6
        %v4240 = vrot.slane %v4239, 4
        %v4241 = vrot.slane %v3686, 6
        %v4242 = vsel %vm1785, %v4240, %v4241
        %v4243 = vrot.slane %v4241, 4
        %v4244 = vrot.slane %v4136, 6
        %v4245 = vsel %vm1785, %v4243, %v4244
        %v4246 = vrot.slane %v4137, 6
        %v4247 = vrot.slane %v4246, 4
        %v4248 = vrot.slane %v3689, 6
        %v4249 = vsel %vm1785, %v4247, %v4248
        %v4250 = vrot.slane %v4248, 4
        %v4251 = vrot.slane %v4138, 6
        %v4252 = vsel %vm1785, %v4250, %v4251
        %v4253 = vrot.slane %v4139, 6
        %v4254 = vrot.slane %v4253, 4
        %v4255 = vrot.slane %v3692, 6
        %v4256 = vsel %vm1785, %v4254, %v4255
        %v4257 = vrot.slane %v4255, 4
        %v4258 = vrot.slane %v4140, 6
        %v4259 = vsel %vm1785, %v4257, %v4258
        %v4260 = vrot.slane %v4141, 6
        %v4261 = vrot.slane %v4260, 4
        %v4262 = vrot.slane %v3695, 6
        %v4263 = vsel %vm1785, %v4261, %v4262
        %v4264 = vrot.slane %v4262, 4
        %v4265 = vrot.slane %v4142, 6
        %v4266 = vsel %vm1785, %v4264, %v4265
        %v4267 = vrot.slane %v4143, 6
        %v4268 = vrot.slane %v4267, 4
        %v4269 = vrot.slane %v3698, 6
        %v4270 = vsel %vm1785, %v4268, %v4269
        %v4271 = vrot.slane %v4269, 4
        %v4272 = vrot.slane %v4144, 6
        %v4273 = vsel %vm1785, %v4271, %v4272
        %v4274 = vrot.slane %v4145, 6
        %v4275 = vrot.slane %v4274, 4
        %v4276 = vrot.slane %v3701, 6
        %v4277 = vsel %vm1785, %v4275, %v4276
        %v4278 = vrot.slane %v4276, 4
        %v4279 = vrot.slane %v4146, 6
        %v4280 = vsel %vm1785, %v4278, %v4279
        %v4281 = vrot.slane %v4147, 6
        %v4282 = vrot.slane %v4281, 4
        %v4283 = vrot.slane %v3704, 6
        %v4284 = vsel %vm1785, %v4282, %v4283
        %v4285 = vrot.slane %v4283, 4
        %v4286 = vrot.slane %v4148, 6
        %v4287 = vsel %vm1785, %v4285, %v4286
        %v4288 = vrot.slane %v4149, 6
        %v4289 = vrot.slane %v4288, 4
        %v4290 = vrot.slane %v3707, 6
        %v4291 = vsel %vm1785, %v4289, %v4290
        %v4292 = vrot.slane %v4290, 4
        %v4293 = vrot.slane %v4150, 6
        %v4294 = vsel %vm1785, %v4292, %v4293
        %s4295 = scalar_lea.vmem [#allocation8], 512
        %v4296 = vld [vmem:[%s4295] sm:$0xf]
        %v4297 = vld [vmem:[%s4295 + $0x4] sm:$0xf]
        %v4298 = vld [vmem:[%s4295 + $0x8] sm:$0xf]
        %v4299 = vld [vmem:[%s4295 + $0xc] sm:$0xf]
        %v4300 = vld [vmem:[%s4295 + $0x10] sm:$0xf]
        %v4301 = vld [vmem:[%s4295 + $0x14] sm:$0xf]
        %v4302 = vld [vmem:[%s4295 + $0x18] sm:$0xf]
        %v4303 = vld [vmem:[%s4295 + $0x1c] sm:$0xf]
        %v4304 = vld [vmem:[%s4295 + $0x20] sm:$0xf]
        %v4305 = vld [vmem:[%s4295 + $0x24] sm:$0xf]
        %v4306 = vld [vmem:[%s4295 + $0x28] sm:$0xf]
        %v4307 = vld [vmem:[%s4295 + $0x2c] sm:$0xf]
        %v4308 = vld [vmem:[%s4295 + $0x30] sm:$0xf]
        %v4309 = vld [vmem:[%s4295 + $0x34] sm:$0xf]
        %v4310 = vld [vmem:[%s4295 + $0x38] sm:$0xf]
        %v4311 = vld [vmem:[%s4295 + $0x3c] sm:$0xf]
        %v4312 = vunpack.c.l.b16 %v4186
        %v4313 = vunpack.c.l.b16 %v4189
        %v4314 = vunpack.c.l.b16 %v4193
        %v4315 = vunpack.c.l.b16 %v4196
        %v4316 = vunpack.c.l.b16 %v4200
        %v4317 = vunpack.c.l.b16 %v4203
        %v4318 = vunpack.c.l.b16 %v4207
        %v4319 = vunpack.c.l.b16 %v4210
        %v4320 = vunpack.c.l.b16 %v4214
        %v4321 = vunpack.c.l.b16 %v4217
        %v4322 = vunpack.c.l.b16 %v4221
        %v4323 = vunpack.c.l.b16 %v4224
        %v4324 = vunpack.c.l.b16 %v4228
        %v4325 = vunpack.c.l.b16 %v4231
        %v4326 = vunpack.c.l.b16 %v4235
        %v4327 = vunpack.c.l.b16 %v4238
        %v4328 = vunpack.c.l.b16 %v4242
        %v4329 = vunpack.c.l.b16 %v4245
        %v4330 = vunpack.c.l.b16 %v4249
        %v4331 = vunpack.c.l.b16 %v4252
        %v4332 = vunpack.c.l.b16 %v4256
        %v4333 = vunpack.c.l.b16 %v4259
        %v4334 = vunpack.c.l.b16 %v4263
        %v4335 = vunpack.c.l.b16 %v4266
        %v4336 = vunpack.c.l.b16 %v4270
        %v4337 = vunpack.c.l.b16 %v4273
        %v4338 = vunpack.c.l.b16 %v4277
        %v4339 = vunpack.c.l.b16 %v4280
        %v4340 = vunpack.c.l.b16 %v4284
        %v4341 = vunpack.c.l.b16 %v4287
        %v4342 = vunpack.c.l.b16 %v4291
        %v4343 = vunpack.c.l.b16 %v4294
        %v4344 = vpack.c.b16 %v4313, %v4312
        %v4345 = vpack.c.b16 %v4315, %v4314
        %v4346 = vpack.c.b16 %v4317, %v4316
        %v4347 = vpack.c.b16 %v4319, %v4318
        %v4348 = vpack.c.b16 %v4321, %v4320
        %v4349 = vpack.c.b16 %v4323, %v4322
        %v4350 = vpack.c.b16 %v4325, %v4324
        %v4351 = vpack.c.b16 %v4327, %v4326
        %v4352 = vpack.c.b16 %v4329, %v4328
        %v4353 = vpack.c.b16 %v4331, %v4330
        %v4354 = vpack.c.b16 %v4333, %v4332
        %v4355 = vpack.c.b16 %v4335, %v4334
        %v4356 = vpack.c.b16 %v4337, %v4336
        %v4357 = vpack.c.b16 %v4339, %v4338
        %v4358 = vpack.c.b16 %v4341, %v4340
        %v4359 = vpack.c.b16 %v4343, %v4342
        %v4392 = vunpack.c.l.b16 %v4296
        %v4393 = vunpack.c.l.b16 %v4297
        %v4394 = vunpack.c.l.b16 %v4298
        %v4395 = vunpack.c.l.b16 %v4299
        %v4396 = vunpack.c.l.b16 %v4300
        %v4397 = vunpack.c.l.b16 %v4301
        %v4398 = vunpack.c.l.b16 %v4302
        %v4399 = vunpack.c.l.b16 %v4303
        %v4400 = vunpack.c.l.b16 %v4304
        %v4401 = vunpack.c.l.b16 %v4305
        %v4402 = vunpack.c.l.b16 %v4306
        %v4403 = vunpack.c.l.b16 %v4307
        %v4404 = vunpack.c.l.b16 %v4308
        %v4405 = vunpack.c.l.b16 %v4309
        %v4406 = vunpack.c.l.b16 %v4310
        %v4407 = vunpack.c.l.b16 %v4311
        %v4408 = vpack.c.b16 %v4393, %v4392
        %v4409 = vpack.c.b16 %v4395, %v4394
        %v4410 = vpack.c.b16 %v4397, %v4396
        %v4411 = vpack.c.b16 %v4399, %v4398
        %v4412 = vpack.c.b16 %v4401, %v4400
        %v4413 = vpack.c.b16 %v4403, %v4402
        %v4414 = vpack.c.b16 %v4405, %v4404
        %v4415 = vpack.c.b16 %v4407, %v4406
        %4424 = vmatpush.bf16.msra.mxu0 %v4415
        %4425 = vmatpush.bf16.msra.mxu0 %v4414
        %4426 = vmatpush.bf16.msra.mxu0 %v4413
        %4427 = vmatpush.bf16.msra.mxu0 %v4412
        %4428 = vmatpush.bf16.msra.mxu0 %v4411
        %4429 = vmatpush.bf16.msra.mxu0 %v4410
        %4430 = vmatpush.bf16.msra.mxu0 %v4409
        %4431 = vmatpush.bf16.msra.mxu0 %v4408
        %4432 = vmatmul.bf16.gmra.mxu0 %v4344
        %v4433 = vpop.f32.mrf.mxu0
        %v4434 = vadd.f32 0.0, %v4433
        %v4435 = vpop.f32.mrf.mxu0
        %v4436 = vadd.f32 0.0, %v4435
        %4437 = vmatmul.bf16.gmra.mxu0 %v4345
        %v4438 = vpop.f32.mrf.mxu0
        %v4439 = vadd.f32 0.0, %v4438
        %v4440 = vpop.f32.mrf.mxu0
        %v4441 = vadd.f32 0.0, %v4440
        %4442 = vmatmul.bf16.gmra.mxu0 %v4346
        %v4443 = vpop.f32.mrf.mxu0
        %v4444 = vadd.f32 0.0, %v4443
        %v4445 = vpop.f32.mrf.mxu0
        %v4446 = vadd.f32 0.0, %v4445
        %4447 = vmatmul.bf16.gmra.mxu0 %v4347
        %v4448 = vpop.f32.mrf.mxu0
        %v4449 = vadd.f32 0.0, %v4448
        %v4450 = vpop.f32.mrf.mxu0
        %v4451 = vadd.f32 0.0, %v4450
        %4452 = vmatmul.bf16.gmra.mxu0 %v4348
        %v4453 = vpop.f32.mrf.mxu0
        %v4454 = vadd.f32 0.0, %v4453
        %v4455 = vpop.f32.mrf.mxu0
        %v4456 = vadd.f32 0.0, %v4455
        %4457 = vmatmul.bf16.gmra.mxu0 %v4349
        %v4458 = vpop.f32.mrf.mxu0
        %v4459 = vadd.f32 0.0, %v4458
        %v4460 = vpop.f32.mrf.mxu0
        %v4461 = vadd.f32 0.0, %v4460
        %4462 = vmatmul.bf16.gmra.mxu0 %v4350
        %v4463 = vpop.f32.mrf.mxu0
        %v4464 = vadd.f32 0.0, %v4463
        %v4465 = vpop.f32.mrf.mxu0
        %v4466 = vadd.f32 0.0, %v4465
        %4467 = vmatmul.bf16.gmra.mxu0 %v4351
        %v4468 = vpop.f32.mrf.mxu0
        %v4469 = vadd.f32 0.0, %v4468
        %v4470 = vpop.f32.mrf.mxu0
        %v4471 = vadd.f32 0.0, %v4470
        %4472 = vmatmul.bf16.gmra.mxu0 %v4352
        %v4473 = vpop.f32.mrf.mxu0
        %v4474 = vadd.f32 0.0, %v4473
        %v4475 = vpop.f32.mrf.mxu0
        %v4476 = vadd.f32 0.0, %v4475
        %4477 = vmatmul.bf16.gmra.mxu0 %v4353
        %v4478 = vpop.f32.mrf.mxu0
        %v4479 = vadd.f32 0.0, %v4478
        %v4480 = vpop.f32.mrf.mxu0
        %v4481 = vadd.f32 0.0, %v4480
        %4482 = vmatmul.bf16.gmra.mxu0 %v4354
        %v4483 = vpop.f32.mrf.mxu0
        %v4484 = vadd.f32 0.0, %v4483
        %v4485 = vpop.f32.mrf.mxu0
        %v4486 = vadd.f32 0.0, %v4485
        %4487 = vmatmul.bf16.gmra.mxu0 %v4355
        %v4488 = vpop.f32.mrf.mxu0
        %v4489 = vadd.f32 0.0, %v4488
        %v4490 = vpop.f32.mrf.mxu0
        %v4491 = vadd.f32 0.0, %v4490
        %4492 = vmatmul.bf16.gmra.mxu0 %v4356
        %v4493 = vpop.f32.mrf.mxu0
        %v4494 = vadd.f32 0.0, %v4493
        %v4495 = vpop.f32.mrf.mxu0
        %v4496 = vadd.f32 0.0, %v4495
        %4497 = vmatmul.bf16.gmra.mxu0 %v4357
        %v4498 = vpop.f32.mrf.mxu0
        %v4499 = vadd.f32 0.0, %v4498
        %v4500 = vpop.f32.mrf.mxu0
        %v4501 = vadd.f32 0.0, %v4500
        %4502 = vmatmul.bf16.gmra.mxu0 %v4358
        %v4503 = vpop.f32.mrf.mxu0
        %v4504 = vadd.f32 0.0, %v4503
        %v4505 = vpop.f32.mrf.mxu0
        %v4506 = vadd.f32 0.0, %v4505
        %4507 = vmatmul.bf16.gmra.mxu0 %v4359
        %v4508 = vpop.f32.mrf.mxu0
        %v4509 = vadd.f32 0.0, %v4508
        %v4510 = vpop.f32.mrf.mxu0
        %v4511 = vadd.f32 0.0, %v4510
        %4512 = vdwg.mxu0
        %v4513 = vadd.f32 %v4087, %v4434
        %v4514 = vadd.f32 %v4088, %v4436
        %v4515 = vadd.f32 %v4089, %v4439
        %v4516 = vadd.f32 %v4090, %v4441
        %v4517 = vadd.f32 %v4091, %v4444
        %v4518 = vadd.f32 %v4092, %v4446
        %v4519 = vadd.f32 %v4093, %v4449
        %v4520 = vadd.f32 %v4094, %v4451
        %v4521 = vadd.f32 %v4095, %v4454
        %v4522 = vadd.f32 %v4096, %v4456
        %v4523 = vadd.f32 %v4097, %v4459
        %v4524 = vadd.f32 %v4098, %v4461
        %v4525 = vadd.f32 %v4099, %v4464
        %v4526 = vadd.f32 %v4100, %v4466
        %v4527 = vadd.f32 %v4101, %v4469
        %v4528 = vadd.f32 %v4102, %v4471
        %v4529 = vadd.f32 %v4103, %v4474
        %v4530 = vadd.f32 %v4104, %v4476
        %v4531 = vadd.f32 %v4105, %v4479
        %v4532 = vadd.f32 %v4106, %v4481
        %v4533 = vadd.f32 %v4107, %v4484
        %v4534 = vadd.f32 %v4108, %v4486
        %v4535 = vadd.f32 %v4109, %v4489
        %v4536 = vadd.f32 %v4110, %v4491
        %v4537 = vadd.f32 %v4111, %v4494
        %v4538 = vadd.f32 %v4112, %v4496
        %v4539 = vadd.f32 %v4113, %v4499
        %v4540 = vadd.f32 %v4114, %v4501
        %v4541 = vadd.f32 %v4115, %v4504
        %v4542 = vadd.f32 %v4116, %v4506
        %v4543 = vadd.f32 %v4117, %v4509
        %v4544 = vadd.f32 %v4118, %v4511
        %v4545 = vld [vmem:[%s4] sm:$0x1]
        %v4547 = vperm.slane %v4545, 0
        %v4549 = vadd.f32 %v4513, %v4547
        %v4550 = vadd.f32 %v4514, %v4547
        %v4551 = vadd.f32 %v4515, %v4547
        %v4552 = vadd.f32 %v4516, %v4547
        %v4553 = vadd.f32 %v4517, %v4547
        %v4554 = vadd.f32 %v4518, %v4547
        %v4555 = vadd.f32 %v4519, %v4547
        %v4556 = vadd.f32 %v4520, %v4547
        %v4557 = vadd.f32 %v4521, %v4547
        %v4558 = vadd.f32 %v4522, %v4547
        %v4559 = vadd.f32 %v4523, %v4547
        %v4560 = vadd.f32 %v4524, %v4547
        %v4561 = vadd.f32 %v4525, %v4547
        %v4562 = vadd.f32 %v4526, %v4547
        %v4563 = vadd.f32 %v4527, %v4547
        %v4564 = vadd.f32 %v4528, %v4547
        %v4565 = vadd.f32 %v4529, %v4547
        %v4566 = vadd.f32 %v4530, %v4547
        %v4567 = vadd.f32 %v4531, %v4547
        %v4568 = vadd.f32 %v4532, %v4547
        %v4569 = vadd.f32 %v4533, %v4547
        %v4570 = vadd.f32 %v4534, %v4547
        %v4571 = vadd.f32 %v4535, %v4547
        %v4572 = vadd.f32 %v4536, %v4547
        %v4573 = vadd.f32 %v4537, %v4547
        %v4574 = vadd.f32 %v4538, %v4547
        %v4575 = vadd.f32 %v4539, %v4547
        %v4576 = vadd.f32 %v4540, %v4547
        %v4577 = vadd.f32 %v4541, %v4547
        %v4578 = vadd.f32 %v4542, %v4547
        %v4579 = vadd.f32 %v4543, %v4547
        %v4580 = vadd.f32 %v4544, %v4547
        %v4581 = vmax.f32 %v4549, 0.0
        %v4582 = vmax.f32 %v4550, 0.0
        %v4583 = vmax.f32 %v4551, 0.0
        %v4584 = vmax.f32 %v4552, 0.0
        %v4585 = vmax.f32 %v4553, 0.0
        %v4586 = vmax.f32 %v4554, 0.0
        %v4587 = vmax.f32 %v4555, 0.0
        %v4588 = vmax.f32 %v4556, 0.0
        %v4589 = vmax.f32 %v4557, 0.0
        %v4590 = vmax.f32 %v4558, 0.0
        %v4591 = vmax.f32 %v4559, 0.0
        %v4592 = vmax.f32 %v4560, 0.0
        %v4593 = vmax.f32 %v4561, 0.0
        %v4594 = vmax.f32 %v4562, 0.0
        %v4595 = vmax.f32 %v4563, 0.0
        %v4596 = vmax.f32 %v4564, 0.0
        %v4597 = vmax.f32 %v4565, 0.0
        %v4598 = vmax.f32 %v4566, 0.0
        %v4599 = vmax.f32 %v4567, 0.0
        %v4600 = vmax.f32 %v4568, 0.0
        %v4601 = vmax.f32 %v4569, 0.0
        %v4602 = vmax.f32 %v4570, 0.0
        %v4603 = vmax.f32 %v4571, 0.0
        %v4604 = vmax.f32 %v4572, 0.0
        %v4605 = vmax.f32 %v4573, 0.0
        %v4606 = vmax.f32 %v4574, 0.0
        %v4607 = vmax.f32 %v4575, 0.0
        %v4608 = vmax.f32 %v4576, 0.0
        %v4609 = vmax.f32 %v4577, 0.0
        %v4610 = vmax.f32 %v4578, 0.0
        %v4611 = vmax.f32 %v4579, 0.0
        %v4612 = vmax.f32 %v4580, 0.0
        %v4613 = vpack.c.bf16 %v4582, %v4581
        %v4614 = vpack.c.bf16 %v4584, %v4583
        %v4615 = vpack.c.bf16 %v4586, %v4585
        %v4616 = vpack.c.bf16 %v4588, %v4587
        %v4617 = vpack.c.bf16 %v4590, %v4589
        %v4618 = vpack.c.bf16 %v4592, %v4591
        %v4619 = vpack.c.bf16 %v4594, %v4593
        %v4620 = vpack.c.bf16 %v4596, %v4595
        %v4621 = vpack.c.bf16 %v4598, %v4597
        %v4622 = vpack.c.bf16 %v4600, %v4599
        %v4623 = vpack.c.bf16 %v4602, %v4601
        %v4624 = vpack.c.bf16 %v4604, %v4603
        %v4625 = vpack.c.bf16 %v4606, %v4605
        %v4626 = vpack.c.bf16 %v4608, %v4607
        %v4627 = vpack.c.bf16 %v4610, %v4609
        %v4628 = vpack.c.bf16 %v4612, %v4611
        %v4629 = vld [vmem:[#allocation9] sm:$0xf]
        %v4630 = vld [vmem:[#allocation9 + $0x4] sm:$0xf]
        %v4631 = vld [vmem:[#allocation9 + $0x8] sm:$0xf]
        %v4632 = vld [vmem:[#allocation9 + $0xc] sm:$0xf]
        %v4633 = vld [vmem:[#allocation9 + $0x10] sm:$0xf]
        %v4634 = vld [vmem:[#allocation9 + $0x14] sm:$0xf]
        %v4635 = vld [vmem:[#allocation9 + $0x18] sm:$0xf]
        %v4636 = vld [vmem:[#allocation9 + $0x1c] sm:$0xf]
        %v4637 = vld [vmem:[#allocation9 + $0x20] sm:$0xf]
        %v4638 = vld [vmem:[#allocation9 + $0x24] sm:$0xf]
        %v4639 = vld [vmem:[#allocation9 + $0x28] sm:$0xf]
        %v4640 = vld [vmem:[#allocation9 + $0x2c] sm:$0xf]
        %v4641 = vld [vmem:[#allocation9 + $0x30] sm:$0xf]
        %v4642 = vld [vmem:[#allocation9 + $0x34] sm:$0xf]
        %v4643 = vld [vmem:[#allocation9 + $0x38] sm:$0xf]
        %v4644 = vld [vmem:[#allocation9 + $0x3c] sm:$0xf]
        %v4645 = vld [vmem:[%s6] sm:$0x1]
        %v4647 = vperm.slane %v4645, 0
        %v4665 = vunpack.c.l.b16 %v4629
        %v4666 = vunpack.c.l.b16 %v4630
        %v4667 = vunpack.c.l.b16 %v4631
        %v4668 = vunpack.c.l.b16 %v4632
        %v4669 = vunpack.c.l.b16 %v4633
        %v4670 = vunpack.c.l.b16 %v4634
        %v4671 = vunpack.c.l.b16 %v4635
        %v4672 = vunpack.c.l.b16 %v4636
        %v4673 = vunpack.c.l.b16 %v4637
        %v4674 = vunpack.c.l.b16 %v4638
        %v4675 = vunpack.c.l.b16 %v4639
        %v4676 = vunpack.c.l.b16 %v4640
        %v4677 = vunpack.c.l.b16 %v4641
        %v4678 = vunpack.c.l.b16 %v4642
        %v4679 = vunpack.c.l.b16 %v4643
        %v4680 = vunpack.c.l.b16 %v4644
        %v4681 = vpack.c.b16 %v4666, %v4665
        %v4682 = vpack.c.b16 %v4668, %v4667
        %v4683 = vpack.c.b16 %v4670, %v4669
        %v4684 = vpack.c.b16 %v4672, %v4671
        %v4685 = vpack.c.b16 %v4674, %v4673
        %v4686 = vpack.c.b16 %v4676, %v4675
        %v4687 = vpack.c.b16 %v4678, %v4677
        %v4688 = vpack.c.b16 %v4680, %v4679
        %4697 = vmatpush.bf16.msra.mxu0 %v4688
        %4698 = vmatpush.bf16.msra.mxu0 %v4687
        %4699 = vmatpush.bf16.msra.mxu0 %v4686
        %4700 = vmatpush.bf16.msra.mxu0 %v4685
        %4701 = vmatpush.bf16.msra.mxu0 %v4684
        %4702 = vmatpush.bf16.msra.mxu0 %v4683
        %4703 = vmatpush.bf16.msra.mxu0 %v4682
        %4704 = vmatpush.bf16.msra.mxu0 %v4681
        %4705 = vmatmul.bf16.gmra.mxu0 %v4613
        %v4706 = vpop.f32.mrf.mxu0
        %v4707 = vadd.f32 %v4647, %v4706
        %v4708 = vpop.f32.mrf.mxu0
        %v4709 = vadd.f32 %v4647, %v4708
        %4710 = vmatmul.bf16.gmra.mxu0 %v4614
        %v4711 = vpop.f32.mrf.mxu0
        %v4712 = vadd.f32 %v4647, %v4711
        %v4713 = vpop.f32.mrf.mxu0
        %v4714 = vadd.f32 %v4647, %v4713
        %4715 = vmatmul.bf16.gmra.mxu0 %v4615
        %v4716 = vpop.f32.mrf.mxu0
        %v4717 = vadd.f32 %v4647, %v4716
        %v4718 = vpop.f32.mrf.mxu0
        %v4719 = vadd.f32 %v4647, %v4718
        %4720 = vmatmul.bf16.gmra.mxu0 %v4616
        %v4721 = vpop.f32.mrf.mxu0
        %v4722 = vadd.f32 %v4647, %v4721
        %v4723 = vpop.f32.mrf.mxu0
        %v4724 = vadd.f32 %v4647, %v4723
        %4725 = vmatmul.bf16.gmra.mxu0 %v4617
        %v4726 = vpop.f32.mrf.mxu0
        %v4727 = vadd.f32 %v4647, %v4726
        %v4728 = vpop.f32.mrf.mxu0
        %v4729 = vadd.f32 %v4647, %v4728
        %4730 = vmatmul.bf16.gmra.mxu0 %v4618
        %v4731 = vpop.f32.mrf.mxu0
        %v4732 = vadd.f32 %v4647, %v4731
        %v4733 = vpop.f32.mrf.mxu0
        %v4734 = vadd.f32 %v4647, %v4733
        %4735 = vmatmul.bf16.gmra.mxu0 %v4619
        %v4736 = vpop.f32.mrf.mxu0
        %v4737 = vadd.f32 %v4647, %v4736
        %v4738 = vpop.f32.mrf.mxu0
        %v4739 = vadd.f32 %v4647, %v4738
        %4740 = vmatmul.bf16.gmra.mxu0 %v4620
        %v4741 = vpop.f32.mrf.mxu0
        %v4742 = vadd.f32 %v4647, %v4741
        %v4743 = vpop.f32.mrf.mxu0
        %v4744 = vadd.f32 %v4647, %v4743
        %4745 = vmatmul.bf16.gmra.mxu0 %v4621
        %v4746 = vpop.f32.mrf.mxu0
        %v4747 = vadd.f32 %v4647, %v4746
        %v4748 = vpop.f32.mrf.mxu0
        %v4749 = vadd.f32 %v4647, %v4748
        %4750 = vmatmul.bf16.gmra.mxu0 %v4622
        %v4751 = vpop.f32.mrf.mxu0
        %v4752 = vadd.f32 %v4647, %v4751
        %v4753 = vpop.f32.mrf.mxu0
        %v4754 = vadd.f32 %v4647, %v4753
        %4755 = vmatmul.bf16.gmra.mxu0 %v4623
        %v4756 = vpop.f32.mrf.mxu0
        %v4757 = vadd.f32 %v4647, %v4756
        %v4758 = vpop.f32.mrf.mxu0
        %v4759 = vadd.f32 %v4647, %v4758
        %4760 = vmatmul.bf16.gmra.mxu0 %v4624
        %v4761 = vpop.f32.mrf.mxu0
        %v4762 = vadd.f32 %v4647, %v4761
        %v4763 = vpop.f32.mrf.mxu0
        %v4764 = vadd.f32 %v4647, %v4763
        %4765 = vmatmul.bf16.gmra.mxu0 %v4625
        %v4766 = vpop.f32.mrf.mxu0
        %v4767 = vadd.f32 %v4647, %v4766
        %v4768 = vpop.f32.mrf.mxu0
        %v4769 = vadd.f32 %v4647, %v4768
        %4770 = vmatmul.bf16.gmra.mxu0 %v4626
        %v4771 = vpop.f32.mrf.mxu0
        %v4772 = vadd.f32 %v4647, %v4771
        %v4773 = vpop.f32.mrf.mxu0
        %v4774 = vadd.f32 %v4647, %v4773
        %4775 = vmatmul.bf16.gmra.mxu0 %v4627
        %v4776 = vpop.f32.mrf.mxu0
        %v4777 = vadd.f32 %v4647, %v4776
        %v4778 = vpop.f32.mrf.mxu0
        %v4779 = vadd.f32 %v4647, %v4778
        %4780 = vmatmul.bf16.gmra.mxu0 %v4628
        %v4781 = vpop.f32.mrf.mxu0
        %v4782 = vadd.f32 %v4647, %v4781
        %v4783 = vpop.f32.mrf.mxu0
        %v4784 = vadd.f32 %v4647, %v4783
        %4785 = vdwg.mxu0
        %v4786 = vld [vmem:[#allocation11] sm:$0xf]
        %v4787 = vld [vmem:[#allocation11 + $0x4] sm:$0xf]
        %v4788 = vld [vmem:[#allocation11 + $0x8] sm:$0xf]
        %v4789 = vld [vmem:[#allocation11 + $0xc] sm:$0xf]
        %v4790 = vld [vmem:[#allocation11 + $0x10] sm:$0xf]
        %v4791 = vld [vmem:[#allocation11 + $0x14] sm:$0xf]
        %v4792 = vld [vmem:[#allocation11 + $0x18] sm:$0xf]
        %v4793 = vld [vmem:[#allocation11 + $0x1c] sm:$0xf]
        %v4794 = vld [vmem:[#allocation11 + $0x20] sm:$0xf]
        %v4795 = vld [vmem:[#allocation11 + $0x24] sm:$0xf]
        %v4796 = vld [vmem:[#allocation11 + $0x28] sm:$0xf]
        %v4797 = vld [vmem:[#allocation11 + $0x2c] sm:$0xf]
        %v4798 = vld [vmem:[#allocation11 + $0x30] sm:$0xf]
        %v4799 = vld [vmem:[#allocation11 + $0x34] sm:$0xf]
        %v4800 = vld [vmem:[#allocation11 + $0x38] sm:$0xf]
        %v4801 = vld [vmem:[#allocation11 + $0x3c] sm:$0xf]
        %v4802 = vld [vmem:[%s8] sm:$0x1]
        %v4804 = vperm.slane %v4802, 0
        %v4822 = vunpack.c.l.b16 %v4786
        %v4823 = vunpack.c.l.b16 %v4787
        %v4824 = vunpack.c.l.b16 %v4788
        %v4825 = vunpack.c.l.b16 %v4789
        %v4826 = vunpack.c.l.b16 %v4790
        %v4827 = vunpack.c.l.b16 %v4791
        %v4828 = vunpack.c.l.b16 %v4792
        %v4829 = vunpack.c.l.b16 %v4793
        %v4830 = vunpack.c.l.b16 %v4794
        %v4831 = vunpack.c.l.b16 %v4795
        %v4832 = vunpack.c.l.b16 %v4796
        %v4833 = vunpack.c.l.b16 %v4797
        %v4834 = vunpack.c.l.b16 %v4798
        %v4835 = vunpack.c.l.b16 %v4799
        %v4836 = vunpack.c.l.b16 %v4800
        %v4837 = vunpack.c.l.b16 %v4801
        %v4838 = vpack.c.b16 %v4823, %v4822
        %v4839 = vpack.c.b16 %v4825, %v4824
        %v4840 = vpack.c.b16 %v4827, %v4826
        %v4841 = vpack.c.b16 %v4829, %v4828
        %v4842 = vpack.c.b16 %v4831, %v4830
        %v4843 = vpack.c.b16 %v4833, %v4832
        %v4844 = vpack.c.b16 %v4835, %v4834
        %v4845 = vpack.c.b16 %v4837, %v4836
        %4854 = vmatpush.bf16.msra.mxu0 %v4845
        %4855 = vmatpush.bf16.msra.mxu0 %v4844
        %4856 = vmatpush.bf16.msra.mxu0 %v4843
        %4857 = vmatpush.bf16.msra.mxu0 %v4842
        %4858 = vmatpush.bf16.msra.mxu0 %v4841
        %4859 = vmatpush.bf16.msra.mxu0 %v4840
        %4860 = vmatpush.bf16.msra.mxu0 %v4839
        %4861 = vmatpush.bf16.msra.mxu0 %v4838
        %4862 = vmatmul.bf16.gmra.mxu0 %v536
        %v4863 = vpop.f32.mrf.mxu0
        %v4864 = vadd.f32 %v4804, %v4863
        %v4865 = vpop.f32.mrf.mxu0
        %v4866 = vadd.f32 %v4804, %v4865
        %4867 = vmatmul.bf16.gmra.mxu0 %v537
        %v4868 = vpop.f32.mrf.mxu0
        %v4869 = vadd.f32 %v4804, %v4868
        %v4870 = vpop.f32.mrf.mxu0
        %v4871 = vadd.f32 %v4804, %v4870
        %4872 = vmatmul.bf16.gmra.mxu0 %v538
        %v4873 = vpop.f32.mrf.mxu0
        %v4874 = vadd.f32 %v4804, %v4873
        %v4875 = vpop.f32.mrf.mxu0
        %v4876 = vadd.f32 %v4804, %v4875
        %4877 = vmatmul.bf16.gmra.mxu0 %v539
        %v4878 = vpop.f32.mrf.mxu0
        %v4879 = vadd.f32 %v4804, %v4878
        %v4880 = vpop.f32.mrf.mxu0
        %v4881 = vadd.f32 %v4804, %v4880
        %4882 = vmatmul.bf16.gmra.mxu0 %v540
        %v4883 = vpop.f32.mrf.mxu0
        %v4884 = vadd.f32 %v4804, %v4883
        %v4885 = vpop.f32.mrf.mxu0
        %v4886 = vadd.f32 %v4804, %v4885
        %4887 = vmatmul.bf16.gmra.mxu0 %v541
        %v4888 = vpop.f32.mrf.mxu0
        %v4889 = vadd.f32 %v4804, %v4888
        %v4890 = vpop.f32.mrf.mxu0
        %v4891 = vadd.f32 %v4804, %v4890
        %4892 = vmatmul.bf16.gmra.mxu0 %v542
        %v4893 = vpop.f32.mrf.mxu0
        %v4894 = vadd.f32 %v4804, %v4893
        %v4895 = vpop.f32.mrf.mxu0
        %v4896 = vadd.f32 %v4804, %v4895
        %4897 = vmatmul.bf16.gmra.mxu0 %v543
        %v4898 = vpop.f32.mrf.mxu0
        %v4899 = vadd.f32 %v4804, %v4898
        %v4900 = vpop.f32.mrf.mxu0
        %v4901 = vadd.f32 %v4804, %v4900
        %4902 = vmatmul.bf16.gmra.mxu0 %v544
        %v4903 = vpop.f32.mrf.mxu0
        %v4904 = vadd.f32 %v4804, %v4903
        %v4905 = vpop.f32.mrf.mxu0
        %v4906 = vadd.f32 %v4804, %v4905
        %4907 = vmatmul.bf16.gmra.mxu0 %v545
        %v4908 = vpop.f32.mrf.mxu0
        %v4909 = vadd.f32 %v4804, %v4908
        %v4910 = vpop.f32.mrf.mxu0
        %v4911 = vadd.f32 %v4804, %v4910
        %4912 = vmatmul.bf16.gmra.mxu0 %v546
        %v4913 = vpop.f32.mrf.mxu0
        %v4914 = vadd.f32 %v4804, %v4913
        %v4915 = vpop.f32.mrf.mxu0
        %v4916 = vadd.f32 %v4804, %v4915
        %4917 = vmatmul.bf16.gmra.mxu0 %v547
        %v4918 = vpop.f32.mrf.mxu0
        %v4919 = vadd.f32 %v4804, %v4918
        %v4920 = vpop.f32.mrf.mxu0
        %v4921 = vadd.f32 %v4804, %v4920
        %4922 = vmatmul.bf16.gmra.mxu0 %v548
        %v4923 = vpop.f32.mrf.mxu0
        %v4924 = vadd.f32 %v4804, %v4923
        %v4925 = vpop.f32.mrf.mxu0
        %v4926 = vadd.f32 %v4804, %v4925
        %4927 = vmatmul.bf16.gmra.mxu0 %v549
        %v4928 = vpop.f32.mrf.mxu0
        %v4929 = vadd.f32 %v4804, %v4928
        %v4930 = vpop.f32.mrf.mxu0
        %v4931 = vadd.f32 %v4804, %v4930
        %4932 = vmatmul.bf16.gmra.mxu0 %v550
        %v4933 = vpop.f32.mrf.mxu0
        %v4934 = vadd.f32 %v4804, %v4933
        %v4935 = vpop.f32.mrf.mxu0
        %v4936 = vadd.f32 %v4804, %v4935
        %4937 = vmatmul.bf16.gmra.mxu0 %v551
        %v4938 = vpop.f32.mrf.mxu0
        %v4939 = vadd.f32 %v4804, %v4938
        %v4940 = vpop.f32.mrf.mxu0
        %v4941 = vadd.f32 %v4804, %v4940
        %4942 = vdwg.mxu0
        %v4943 = vadd.f32 %v4707, %v4864
        %v4944 = vadd.f32 %v4709, %v4866
        %v4945 = vadd.f32 %v4712, %v4869
        %v4946 = vadd.f32 %v4714, %v4871
        %v4947 = vadd.f32 %v4717, %v4874
        %v4948 = vadd.f32 %v4719, %v4876
        %v4949 = vadd.f32 %v4722, %v4879
        %v4950 = vadd.f32 %v4724, %v4881
        %v4951 = vadd.f32 %v4727, %v4884
        %v4952 = vadd.f32 %v4729, %v4886
        %v4953 = vadd.f32 %v4732, %v4889
        %v4954 = vadd.f32 %v4734, %v4891
        %v4955 = vadd.f32 %v4737, %v4894
        %v4956 = vadd.f32 %v4739, %v4896
        %v4957 = vadd.f32 %v4742, %v4899
        %v4958 = vadd.f32 %v4744, %v4901
        %v4959 = vadd.f32 %v4747, %v4904
        %v4960 = vadd.f32 %v4749, %v4906
        %v4961 = vadd.f32 %v4752, %v4909
        %v4962 = vadd.f32 %v4754, %v4911
        %v4963 = vadd.f32 %v4757, %v4914
        %v4964 = vadd.f32 %v4759, %v4916
        %v4965 = vadd.f32 %v4762, %v4919
        %v4966 = vadd.f32 %v4764, %v4921
        %v4967 = vadd.f32 %v4767, %v4924
        %v4968 = vadd.f32 %v4769, %v4926
        %v4969 = vadd.f32 %v4772, %v4929
        %v4970 = vadd.f32 %v4774, %v4931
        %v4971 = vadd.f32 %v4777, %v4934
        %v4972 = vadd.f32 %v4779, %v4936
        %v4973 = vadd.f32 %v4782, %v4939
        %v4974 = vadd.f32 %v4784, %v4941
        %v4975 = vmax.f32 %v4943, 0.0
        %v4976 = vmax.f32 %v4944, 0.0
        %v4977 = vmax.f32 %v4945, 0.0
        %v4978 = vmax.f32 %v4946, 0.0
        %v4979 = vmax.f32 %v4947, 0.0
        %v4980 = vmax.f32 %v4948, 0.0
        %v4981 = vmax.f32 %v4949, 0.0
        %v4982 = vmax.f32 %v4950, 0.0
        %v4983 = vmax.f32 %v4951, 0.0
        %v4984 = vmax.f32 %v4952, 0.0
        %v4985 = vmax.f32 %v4953, 0.0
        %v4986 = vmax.f32 %v4954, 0.0
        %v4987 = vmax.f32 %v4955, 0.0
        %v4988 = vmax.f32 %v4956, 0.0
        %v4989 = vmax.f32 %v4957, 0.0
        %v4990 = vmax.f32 %v4958, 0.0
        %v4991 = vmax.f32 %v4959, 0.0
        %v4992 = vmax.f32 %v4960, 0.0
        %v4993 = vmax.f32 %v4961, 0.0
        %v4994 = vmax.f32 %v4962, 0.0
        %v4995 = vmax.f32 %v4963, 0.0
        %v4996 = vmax.f32 %v4964, 0.0
        %v4997 = vmax.f32 %v4965, 0.0
        %v4998 = vmax.f32 %v4966, 0.0
        %v4999 = vmax.f32 %v4967, 0.0
        %v5000 = vmax.f32 %v4968, 0.0
        %v5001 = vmax.f32 %v4969, 0.0
        %v5002 = vmax.f32 %v4970, 0.0
        %v5003 = vmax.f32 %v4971, 0.0
        %v5004 = vmax.f32 %v4972, 0.0
        %v5005 = vmax.f32 %v4973, 0.0
        %v5006 = vmax.f32 %v4974, 0.0
        %v5007 = vpack.c.bf16 %v4975, %v4975
        %v5008 = vpack.c.bf16 %v4976, %v4976
        %v5009 = vpack.c.bf16 %v4977, %v4977
        %v5010 = vpack.c.bf16 %v4978, %v4978
        %v5011 = vpack.c.bf16 %v4979, %v4979
        %v5012 = vpack.c.bf16 %v4980, %v4980
        %v5013 = vpack.c.bf16 %v4981, %v4981
        %v5014 = vpack.c.bf16 %v4982, %v4982
        %v5015 = vpack.c.bf16 %v4983, %v4983
        %v5016 = vpack.c.bf16 %v4984, %v4984
        %v5017 = vpack.c.bf16 %v4985, %v4985
        %v5018 = vpack.c.bf16 %v4986, %v4986
        %v5019 = vpack.c.bf16 %v4987, %v4987
        %v5020 = vpack.c.bf16 %v4988, %v4988
        %v5021 = vpack.c.bf16 %v4989, %v4989
        %v5022 = vpack.c.bf16 %v4990, %v4990
        %v5023 = vpack.c.bf16 %v4991, %v4991
        %v5024 = vpack.c.bf16 %v4992, %v4992
        %v5025 = vpack.c.bf16 %v4993, %v4993
        %v5026 = vpack.c.bf16 %v4994, %v4994
        %v5027 = vpack.c.bf16 %v4995, %v4995
        %v5028 = vpack.c.bf16 %v4996, %v4996
        %v5029 = vpack.c.bf16 %v4997, %v4997
        %v5030 = vpack.c.bf16 %v4998, %v4998
        %v5031 = vpack.c.bf16 %v4999, %v4999
        %v5032 = vpack.c.bf16 %v5000, %v5000
        %v5033 = vpack.c.bf16 %v5001, %v5001
        %v5034 = vpack.c.bf16 %v5002, %v5002
        %v5035 = vpack.c.bf16 %v5003, %v5003
        %v5036 = vpack.c.bf16 %v5004, %v5004
        %v5037 = vpack.c.bf16 %v5005, %v5005
        %v5038 = vpack.c.bf16 %v5006, %v5006
        %5039 = vst [vmem:[%s418] sm:$0xf] %v5007
        %5040 = vst [vmem:[%s418 + $0x4] sm:$0xf] %v5008
        %5041 = vst [vmem:[%s418 + $0x8] sm:$0xf] %v5009
        %5042 = vst [vmem:[%s418 + $0xc] sm:$0xf] %v5010
        %5043 = vst [vmem:[%s418 + $0x10] sm:$0xf] %v5011
        %5044 = vst [vmem:[%s418 + $0x14] sm:$0xf] %v5012
        %5045 = vst [vmem:[%s418 + $0x18] sm:$0xf] %v5013
        %5046 = vst [vmem:[%s418 + $0x1c] sm:$0xf] %v5014
        %5047 = vst [vmem:[%s418 + $0x20] sm:$0xf] %v5015
        %5048 = vst [vmem:[%s418 + $0x24] sm:$0xf] %v5016
        %5049 = vst [vmem:[%s418 + $0x28] sm:$0xf] %v5017
        %5050 = vst [vmem:[%s418 + $0x2c] sm:$0xf] %v5018
        %5051 = vst [vmem:[%s418 + $0x30] sm:$0xf] %v5019
        %5052 = vst [vmem:[%s418 + $0x34] sm:$0xf] %v5020
        %5053 = vst [vmem:[%s418 + $0x38] sm:$0xf] %v5021
        %5054 = vst [vmem:[%s418 + $0x3c] sm:$0xf] %v5022
        %5055 = vst [vmem:[%s418 + $0x40] sm:$0xf] %v5023
        %5056 = vst [vmem:[%s418 + $0x44] sm:$0xf] %v5024
        %5057 = vst [vmem:[%s418 + $0x48] sm:$0xf] %v5025
        %5058 = vst [vmem:[%s418 + $0x4c] sm:$0xf] %v5026
        %5059 = vst [vmem:[%s418 + $0x50] sm:$0xf] %v5027
        %5060 = vst [vmem:[%s418 + $0x54] sm:$0xf] %v5028
        %5061 = vst [vmem:[%s418 + $0x58] sm:$0xf] %v5029
        %5062 = vst [vmem:[%s418 + $0x5c] sm:$0xf] %v5030
        %5063 = vst [vmem:[%s418 + $0x60] sm:$0xf] %v5031
        %5064 = vst [vmem:[%s418 + $0x64] sm:$0xf] %v5032
        %5065 = vst [vmem:[%s418 + $0x68] sm:$0xf] %v5033
        %5066 = vst [vmem:[%s418 + $0x6c] sm:$0xf] %v5034
        %5067 = vst [vmem:[%s418 + $0x70] sm:$0xf] %v5035
        %5068 = vst [vmem:[%s418 + $0x74] sm:$0xf] %v5036
        %5069 = vst [vmem:[%s418 + $0x78] sm:$0xf] %v5037
        %5070 = vst [vmem:[%s418 + $0x7c] sm:$0xf] %v5038
        %s5071 = sand.u32 %s230, 1
        %s5072 = scalar_lea.sflag [#allocation5], %s5071
        %s5073 = sand.u32 %s230, 1
        %s5074 = smul.addr %s5073, 128
        %s5075 = scalar_lea.vmem [#allocation12], %s5074
        // Predicated region
        $region77: #{tpu_custom_call.1} parent=55 // pred_check
          %p5076 = pneg %p240
        $region78: #{tpu_custom_call.1} parent=55 // pred_check_branch
          %5078 = sbr.rel (%p5076) target = $region80
        $region79: #{tpu_custom_call.1} parent=55 // pred_region
          %5080 = vsyncadd %s5072, 0
          %s5081 = smul.addr %s28, 32
          %s5082 = smul.addr %s5081, 4
          %s5083 = scalar_lea.hbm %s9, %s5082
          %s5084 = sshll.u32 %s5075, 4
          %s5085 = int_to_ptr.vmem [resolvable:$true] %s5084
          %s5086 = sshll.u32 %s5083, 4
          %s5087 = int_to_ptr.hbm [resolvable:$true] %s5086
          %5092 = dma.vmem_to_hbm [thread:$0]  %s5085, 2048, %s5087, %s5072, 64, 64, 4
        $region80: #{tpu_custom_call.1} parent=55 // pred_fallthru
          _
      $region56: #{tpu_custom_call.1} parent=5 // pred_fallthru
        _
      %p5093 = scmp.le.s32.totalorder 2, %s23
      // Predicated region
      $region81: #{tpu_custom_call.1} parent=5 // pred_check
        %p5094 = pneg %p5093
      $region82: #{tpu_custom_call.1} parent=5 // pred_check_branch
        %5096 = sbr.rel (%p5094) target = $region84
      $region83: #{tpu_custom_call.1} parent=5 // pred_region
        %s5097 = ssub.s32 %s23, 2
        // Predicated region
        $region85: #{tpu_custom_call.1} parent=83 // pred_check
          %p5098 = pneg %p246
        $region86: #{tpu_custom_call.1} parent=83 // pred_check_branch
          %5100 = sbr.rel (%p5098) target = $region88
        $region87: #{tpu_custom_call.1} parent=83 // pred_region
          %s5101 = sand.u32 %s231, 1
          %s5102 = scalar_lea.sflag [#allocation5], %s5101
          %s5103 = sand.u32 %s231, 1
          %s5104 = smul.addr %s5103, 128
          %s5105 = scalar_lea.vmem [#allocation12], %s5104
          %5107 = dma.done %s5102, 2048
        $region88: #{tpu_custom_call.1} parent=83 // pred_fallthru
          _
      $region84: #{tpu_custom_call.1} parent=5 // pred_fallthru
        _
    $region6: #{tpu_custom_call.1} parent=1 // loop_footer
      %s27 = sadd.s32 1, %s23
    $region7: #{tpu_custom_call.1} parent=1 // loop_footer_branch
      %22 = sbr.rel target = $region3
    $region8: #{tpu_custom_call.1} parent=1 // loop_exit
      _
    %5108 = vsyncpa [#allocation4], 1
    %s5109 = scalar_lea.sflag [#allocation4], 1
    %5110 = vsyncpa %s5109, 1
    %5111 = vsyncpa [#allocation7], 1
    %5112 = vsyncpa [#allocation10], 1
    %5113 = vsyncpa [#allocation5], 1
    %s5114 = scalar_lea.sflag [#allocation5], 1
    %5115 = vsyncpa %s5114, 1

</llo_original>
